<compile_context>
chip_gen: v5e
topology: v5e:2x2
jax: 0.10.0
libtpu: 0.0.40
codegen_flags: <defaults>
</compile_context>

<pallas_src>
import jax
import jax.numpy as jnp
from jax.experimental import pallas as pl
from jax.experimental.pallas import tpu as pltpu


def _block_kernel(x_ref, s1_ref, b1_ref, w1_ref, b2_ref, w2_ref, o_ref):
    # x_ref : (Nb, H, WC)   Nb images per grid step, lane-dense last dim (WC=128)
    # s1/b1 : (1, WC)       folded bn1 scale / bias, tiled over W
    # w1/w2 : (3*WC, WC)    K-stacked banded conv weights (one band per vertical tap)
    # b2    : (1, WC)       folded bn2 bias (bn2 scale is pre-folded into w1)
    nb, h, wc = x_ref.shape
    m = nb * h

    x = x_ref[...].reshape(m, wc)                            # (M, WC), layout no-op

    # Per-image vertical-halo masks, hoisted once and reused by both convs.
    row = jax.lax.broadcasted_iota(jnp.int32, (m, wc), 0)
    row_in_img = row % h
    not_top = row_in_img != 0                                # row above is same image
    not_bot = row_in_img != (h - 1)                          # row below is same image

    # bn1 (inference, folded) + relu  -- full-width f32 VPU ops
    h1 = jnp.maximum(x * s1_ref[...] + b1_ref[...], 0.0)

    def conv3x3(act, w_ref):
        # SAME 3x3 conv as ONE MXU matmul: vertical taps concatenated along the
        # lane axis (K = 3*WC) against K-stacked banded weights; horizontal taps
        # + channel contraction live inside the bands (SAME W-padding for free).
        up = jnp.where(not_top, pltpu.roll(act, shift=1, axis=0), 0.0)      # act[r-1]
        dn = jnp.where(not_bot, pltpu.roll(act, shift=m - 1, axis=0), 0.0)  # act[r+1]
        stacked = jnp.concatenate([up, act, dn], axis=-1).astype(w_ref.dtype)
        return jnp.dot(stacked, w_ref[...], preferred_element_type=jnp.float32)

    y1 = conv3x3(h1, w1_ref)                   # conv1 (bn2 scale pre-folded in)
    h2 = jnp.maximum(y1 + b2_ref[...], 0.0)    # bn2 bias + relu
    y2 = conv3x3(h2, w2_ref)                   # conv2

    # identity (= original x, down_sample=False) + residual
    o_ref[...] = (x + y2).reshape(nb, h, wc).astype(o_ref.dtype)


def _banded_weight_kstacked(w_hwio, w_spatial):
    """(3,3,Cin,Cout) HWIO -> (3*W*Cin, W*Cout) K-stacked banded matrix.

    Band[ky*W*Cin + w_in*Cin + ci, w_out*Cout + co] = w[ky, w_in - w_out + 1, ci, co]
    when |w_in - w_out| <= 1, else 0.  Missing bands at the W boundary give SAME
    zero-padding in W for free.  Built once at trace time.
    """
    kh, kw, cin, cout = w_hwio.shape
    w_in = jnp.arange(w_spatial)[:, None]
    w_out = jnp.arange(w_spatial)[None, :]
    kx = w_in - w_out + 1                                    # (W, W)
    valid = ((kx >= 0) & (kx < kw)).astype(w_hwio.dtype)
    kx_c = jnp.clip(kx, 0, kw - 1)
    mat = w_hwio[:, kx_c, :, :]                              # (kh, W, W, Cin, Cout)
    mat = mat * valid[None, :, :, None, None]
    mat = jnp.transpose(mat, (0, 1, 3, 2, 4))                # (kh, W_in, Cin, W_out, Cout)
    return mat.reshape(kh * w_spatial * cin, w_spatial * cout)


def _pick_batch_tile(n, h, max_rows=256):
    """Largest Nb dividing N with Nb*H <= max_rows, preferring >= 2 grid steps."""
    divisors = [d for d in range(1, n + 1) if n % d == 0 and d * h <= max_rows]
    if not divisors:
        return 1
    multi_step = [d for d in divisors if n // d >= 2]
    return max(multi_step) if multi_step else max(divisors)


def resnet_block_nhwc(x_nhwc, scale1, bias1, w1_hwio, scale2, bias2, w2_hwio,
                      *, mxu_dtype=jnp.bfloat16):
    """down_sample=False Block forward, NHWC in / NHWC out (no layout glue).
    mxu_dtype only affects matmul operands; all elementwise math stays f32."""
    N, H, W, C = x_nhwc.shape
    WC = W * C
    assert WC % 128 == 0, "lane-dense layout needs W*C to be a multiple of 128"
    assert w1_hwio.shape == (3, 3, C, C) and w2_hwio.shape == (3, 3, C, C)

    # Fold bn2's per-channel scale into conv1's output channels (trace-time).
    w1_folded = w1_hwio * scale2.reshape(1, 1, 1, C)

    w1s = _banded_weight_kstacked(w1_folded, W).astype(mxu_dtype)   # (3*WC, WC)
    w2s = _banded_weight_kstacked(w2_hwio, W).astype(mxu_dtype)     # (3*WC, WC)

    # Per-channel BN params tiled over W so they broadcast in the (M, W*C) layout.
    s1 = jnp.tile(scale1.reshape(C), W).reshape(1, WC).astype(jnp.float32)
    b1 = jnp.tile(bias1.reshape(C), W).reshape(1, WC).astype(jnp.float32)
    b2 = jnp.tile(bias2.reshape(C), W).reshape(1, WC).astype(jnp.float32)

    x_flat = x_nhwc.reshape(N, H, WC)                        # pure view in NHWC

    Nb = _pick_batch_tile(N, H)                              # images per grid step
    grid = (N // Nb,)

    flops = 2 * 2 * N * H * (3 * WC) * WC                    # two (M,3WC)x(3WC,WC) dots
    bytes_accessed = (2 * x_flat.size * x_flat.dtype.itemsize
                      + (w1s.size + w2s.size) * jnp.dtype(mxu_dtype).itemsize
                      + (s1.size + b1.size + b2.size) * 4)
    cost = pl.CostEstimate(flops=flops, transcendentals=0,
                           bytes_accessed=bytes_accessed)

    def call(single_buffer_consts):
        const_kw = ({"pipeline_mode": pl.Buffered(1)}
                    if single_buffer_consts else {})
        grid_spec = pltpu.PrefetchScalarGridSpec(
            num_scalar_prefetch=0,
            grid=grid,                                       # "parallel" axis (megacore)
            in_specs=[
                pl.BlockSpec((Nb, H, WC), lambda n: (n, 0, 0)),            # x
                pl.BlockSpec((1, WC), lambda n: (0, 0), **const_kw),       # bn1 scale
                pl.BlockSpec((1, WC), lambda n: (0, 0), **const_kw),       # bn1 bias
                pl.BlockSpec((3 * WC, WC), lambda n: (0, 0), **const_kw),  # conv1 bands
                pl.BlockSpec((1, WC), lambda n: (0, 0), **const_kw),       # bn2 bias
                pl.BlockSpec((3 * WC, WC), lambda n: (0, 0), **const_kw),  # conv2 bands
            ],
            out_specs=pl.BlockSpec((Nb, H, WC), lambda n: (n, 0, 0)),
        )
        return pl.pallas_call(
            _block_kernel,
            out_shape=jax.ShapeDtypeStruct((N, H, WC), x_nhwc.dtype),
            grid_spec=grid_spec,
            compiler_params=pltpu.CompilerParams(
                dimension_semantics=("parallel",)),
            cost_estimate=cost,
        )(x_flat, s1, b1, w1s, b2, w2s)

    try:
        out = call(single_buffer_consts=True)
    except Exception:  # pragma: no cover - fall back if Buffered(1) is unsupported
        out = call(single_buffer_consts=False)

    return out.reshape(N, H, W, C)


def resnet_block(x_nchw, scale1, bias1, w1_hwio, scale2, bias2, w2_hwio,
                 *, mxu_dtype=jnp.bfloat16):
    """NCHW adapter matching the PyTorch module interface.  In a real model keep
    activations NHWC end-to-end and call resnet_block_nhwc directly so these
    boundary transposes never hit the hot path."""
    x = jnp.transpose(x_nchw, (0, 2, 3, 1))                  # glue only
    out = resnet_block_nhwc(x, scale1, bias1, w1_hwio, scale2, bias2, w2_hwio,
                            mxu_dtype=mxu_dtype)
    return jnp.transpose(out, (0, 3, 1, 2))


def _reference_block(x_nchw, scale1, bias1, w1, scale2, bias2, w2):
    """Pure-JAX reference (same math, XLA convs at HIGHEST precision)."""
    x = jnp.transpose(x_nchw, (0, 2, 3, 1))
    dn = ("NHWC", "HWIO", "NHWC")
    hp = jax.lax.Precision.HIGHEST
    h = jnp.maximum(x * scale1 + bias1, 0.0)
    y1 = jax.lax.conv_general_dilated(h, w1, (1, 1), "SAME",
                                      dimension_numbers=dn, precision=hp)
    h2 = jnp.maximum(y1 * scale2 + bias2, 0.0)
    y2 = jax.lax.conv_general_dilated(h2, w2, (1, 1), "SAME",
                                      dimension_numbers=dn, precision=hp)
    return jnp.transpose(x + y2, (0, 3, 1, 2))


def _fold_bn(gamma, beta, running_mean, running_var, eps=1e-5):
    scale = gamma / jnp.sqrt(running_var + eps)
    bias = beta - running_mean * scale
    return scale, bias


if __name__ == "__main__":
    C = 8                    # n_feature_maps (down_sample=False: Cin == Cout)
    N, H, W = 16, 16, 16     # W * C = 128 lane-dense; Nb=8 -> M=128 rows/step, 2 steps

    key = jax.random.PRNGKey(0)
    keys = jax.random.split(key, 11)

    x = jax.random.normal(keys[0], (N, C, H, W), jnp.float32)

    # bn1 parameters / running stats (inference-mode BN)
    g1 = jax.random.uniform(keys[1], (C,), minval=0.5, maxval=1.5)
    be1 = 0.1 * jax.random.normal(keys[2], (C,))
    rm1 = 0.1 * jax.random.normal(keys[3], (C,))
    rv1 = jax.random.uniform(keys[4], (C,), minval=0.5, maxval=1.5)
    scale1, bias1 = _fold_bn(g1, be1, rm1, rv1)

    # bn2
    g2 = jax.random.uniform(keys[5], (C,), minval=0.5, maxval=1.5)
    be2 = 0.1 * jax.random.normal(keys[6], (C,))
    rm2 = 0.1 * jax.random.normal(keys[7], (C,))
    rv2 = jax.random.uniform(keys[8], (C,), minval=0.5, maxval=1.5)
    scale2, bias2 = _fold_bn(g2, be2, rm2, rv2)

    # conv weights, HWIO layout (3, 3, Cin, Cout), no bias (nn.Conv2d bias=False)
    fan_in = 3 * 3 * C
    w1 = jax.random.normal(keys[9], (3, 3, C, C), jnp.float32) * (2.0 / fan_in) ** 0.5
    w2 = jax.random.normal(keys[10], (3, 3, C, C), jnp.float32) * (2.0 / fan_in) ** 0.5

    ref = _reference_block(x, scale1, bias1, w1, scale2, bias2, w2)

    # f32 matmul-operand path: structural correctness check (tolerance covers any
    # internal MXU pass-count choice while still catching real bugs).
    out_f32 = jax.block_until_ready(
        resnet_block(x, scale1, bias1, w1, scale2, bias2, w2,
                     mxu_dtype=jnp.float32))
    assert out_f32.shape == (N, C, H, W)
    assert bool(jnp.allclose(out_f32, ref, atol=2e-2, rtol=2e-2))

    # bf16 matmul-operand path (default; recommended on v5e/v6e/v7x): looser check.
    out_bf16 = jax.block_until_ready(
        resnet_block(x, scale1, bias1, w1, scale2, bias2, w2))
    assert out_bf16.shape == (N, C, H, W)
    assert bool(jnp.allclose(out_bf16, ref, atol=1e-1, rtol=1e-1))

    print("KERNEL_OK")
</pallas_src>

<mosaic_0001>
module attributes {stable_mosaic.version = 11 : i64} {
  func.func @_block_kernel(%arg0: i32, %arg1: memref<8x16x128xf32, #tpu.memory_space<vmem>>, %arg2: memref<1x128xf32, #tpu.memory_space<vmem>>, %arg3: memref<1x128xf32, #tpu.memory_space<vmem>>, %arg4: memref<384x128xf32, #tpu.memory_space<vmem>>, %arg5: memref<1x128xf32, #tpu.memory_space<vmem>>, %arg6: memref<384x128xf32, #tpu.memory_space<vmem>>, %arg7: memref<8x16x128xf32, #tpu.memory_space<vmem>>) attributes {dimension_semantics = [#tpu.dimension_semantics<parallel>], iteration_bounds = array<i64: 2>, scalar_prefetch = 0 : i64, scratch_operands = 0 : i64, tpu.core_type = #tpu.core_type<tc>, window_params = [{transform_indices = @transform_0, window_bounds = array<i64: 8, 16, 128>}, {pipeline_mode = #tpu.pipeline_mode<synchronous>, transform_indices = @transform_1, window_bounds = array<i64: 1, 128>}, {pipeline_mode = #tpu.pipeline_mode<synchronous>, transform_indices = @transform_2, window_bounds = array<i64: 1, 128>}, {pipeline_mode = #tpu.pipeline_mode<synchronous>, transform_indices = @transform_3, window_bounds = array<i64: 384, 128>}, {pipeline_mode = #tpu.pipeline_mode<synchronous>, transform_indices = @transform_4, window_bounds = array<i64: 1, 128>}, {pipeline_mode = #tpu.pipeline_mode<synchronous>, transform_indices = @transform_5, window_bounds = array<i64: 384, 128>}, {transform_indices = @transform_6, window_bounds = array<i64: 8, 16, 128>}]} {
    %c0 = arith.constant 0 : index
    %c0_0 = arith.constant 0 : index
    %c0_1 = arith.constant 0 : index
    %0 = vector.load %arg1[%c0, %c0_0, %c0_1] : memref<8x16x128xf32, #tpu.memory_space<vmem>>, vector<8x16x128xf32>
    %1 = vector.shape_cast %0 : vector<8x16x128xf32> to vector<128x128xf32>
    %2 = tpu.iota {dimensions = array<i32: 0>} : vector<128x128xi32>
    %c16_i32 = arith.constant 16 : i32
    %c0_i32 = arith.constant 0 : i32
    %3 = arith.cmpi eq, %c16_i32, %c0_i32 : i32
    %c1_i32 = arith.constant 1 : i32
    %4 = arith.select %3, %c1_i32, %c16_i32 : i32
    %5 = vector.broadcast %4 : i32 to vector<128x128xi32>
    %6 = arith.remsi %2, %5 : vector<128x128xi32>
    %c0_i32_2 = arith.constant 0 : i32
    %7 = vector.broadcast %c0_i32_2 : i32 to vector<128x128xi32>
    %8 = arith.cmpi ne, %6, %7 : vector<128x128xi32>
    %c0_i32_3 = arith.constant 0 : i32
    %9 = vector.broadcast %c0_i32_3 : i32 to vector<128x128xi32>
    %10 = arith.cmpi slt, %6, %9 : vector<128x128xi32>
    %c0_i32_4 = arith.constant 0 : i32
    %11 = arith.cmpi slt, %4, %c0_i32_4 : i32
    %12 = vector.broadcast %11 : i1 to vector<128x128xi1>
    %13 = vector.broadcast %12 : vector<128x128xi1> to vector<128x128xi1>
    %14 = arith.xori %10, %13 : vector<128x128xi1>
    %15 = arith.andi %14, %8 : vector<128x128xi1>
    %16 = vector.broadcast %4 : i32 to vector<128x128xi32>
    %17 = arith.addi %6, %16 : vector<128x128xi32>
    %18 = arith.select %15, %17, %6 : vector<128x128xi1>, vector<128x128xi32>
    %c0_i32_5 = arith.constant 0 : i32
    %19 = vector.broadcast %c0_i32_5 : i32 to vector<128x128xi32>
    %20 = arith.cmpi ne, %18, %19 : vector<128x128xi32>
    %c15_i32 = arith.constant 15 : i32
    %21 = vector.broadcast %c15_i32 : i32 to vector<128x128xi32>
    %22 = arith.cmpi ne, %18, %21 : vector<128x128xi32>
    %c0_6 = arith.constant 0 : index
    %c0_7 = arith.constant 0 : index
    %23 = vector.load %arg2[%c0_6, %c0_7] : memref<1x128xf32, #tpu.memory_space<vmem>>, vector<1x128xf32>
    %24 = vector.broadcast %23 : vector<1x128xf32> to vector<128x128xf32>
    %25 = arith.mulf %1, %24 : vector<128x128xf32>
    %c0_8 = arith.constant 0 : index
    %c0_9 = arith.constant 0 : index
    %26 = vector.load %arg3[%c0_8, %c0_9] : memref<1x128xf32, #tpu.memory_space<vmem>>, vector<1x128xf32>
    %27 = vector.broadcast %26 : vector<1x128xf32> to vector<128x128xf32>
    %28 = arith.addf %25, %27 : vector<128x128xf32>
    %cst = arith.constant 0.000000e+00 : f32
    %29 = vector.broadcast %cst : f32 to vector<128x128xf32>
    %30 = arith.maximumf %28, %29 : vector<128x128xf32>
    %c1_i32_10 = arith.constant 1 : i32
    %31 = tpu.dynamic_rotate %30 by %c1_i32_10 dim 0 : vector<128x128xf32>, i32 -> vector<128x128xf32>
    %cst_11 = arith.constant 0.000000e+00 : f32
    %32 = vector.broadcast %cst_11 : f32 to vector<128x128xf32>
    %33 = arith.select %20, %31, %32 : vector<128x128xi1>, vector<128x128xf32>
    %c127_i32 = arith.constant 127 : i32
    %34 = tpu.dynamic_rotate %30 by %c127_i32 dim 0 : vector<128x128xf32>, i32 -> vector<128x128xf32>
    %cst_12 = arith.constant 0.000000e+00 : f32
    %35 = vector.broadcast %cst_12 : f32 to vector<128x128xf32>
    %36 = arith.select %22, %34, %35 : vector<128x128xi1>, vector<128x128xf32>
    %37 = tpu.concatenate %33, %30, %36 in 1 : vector<128x128xf32>, vector<128x128xf32>, vector<128x128xf32> -> vector<128x384xf32>
    %c0_13 = arith.constant 0 : index
    %c0_14 = arith.constant 0 : index
    %38 = vector.load %arg4[%c0_13, %c0_14] : memref<384x128xf32, #tpu.memory_space<vmem>>, vector<384x128xf32>
    %cst_15 = arith.constant dense<0.000000e+00> : vector<128x128xf32>
    %39 = tpu.matmul %37, %38, %cst_15 {dimension_numbers = #tpu.dot_dimension_numbers<[1], [0], [0], [1], [0, 0, 1, 1], [], []>} : vector<128x384xf32>, vector<384x128xf32>, vector<128x128xf32> -> vector<128x128xf32>
    %c0_16 = arith.constant 0 : index
    %c0_17 = arith.constant 0 : index
    %40 = vector.load %arg5[%c0_16, %c0_17] : memref<1x128xf32, #tpu.memory_space<vmem>>, vector<1x128xf32>
    %41 = vector.broadcast %40 : vector<1x128xf32> to vector<128x128xf32>
    %42 = arith.addf %39, %41 : vector<128x128xf32>
    %cst_18 = arith.constant 0.000000e+00 : f32
    %43 = vector.broadcast %cst_18 : f32 to vector<128x128xf32>
    %44 = arith.maximumf %42, %43 : vector<128x128xf32>
    %c1_i32_19 = arith.constant 1 : i32
    %45 = tpu.dynamic_rotate %44 by %c1_i32_19 dim 0 : vector<128x128xf32>, i32 -> vector<128x128xf32>
    %cst_20 = arith.constant 0.000000e+00 : f32
    %46 = vector.broadcast %cst_20 : f32 to vector<128x128xf32>
    %47 = arith.select %20, %45, %46 : vector<128x128xi1>, vector<128x128xf32>
    %c127_i32_21 = arith.constant 127 : i32
    %48 = tpu.dynamic_rotate %44 by %c127_i32_21 dim 0 : vector<128x128xf32>, i32 -> vector<128x128xf32>
    %cst_22 = arith.constant 0.000000e+00 : f32
    %49 = vector.broadcast %cst_22 : f32 to vector<128x128xf32>
    %50 = arith.select %22, %48, %49 : vector<128x128xi1>, vector<128x128xf32>
    %51 = tpu.concatenate %47, %44, %50 in 1 : vector<128x128xf32>, vector<128x128xf32>, vector<128x128xf32> -> vector<128x384xf32>
    %c0_23 = arith.constant 0 : index
    %c0_24 = arith.constant 0 : index
    %52 = vector.load %arg6[%c0_23, %c0_24] : memref<384x128xf32, #tpu.memory_space<vmem>>, vector<384x128xf32>
    %cst_25 = arith.constant dense<0.000000e+00> : vector<128x128xf32>
    %53 = tpu.matmul %51, %52, %cst_25 {dimension_numbers = #tpu.dot_dimension_numbers<[1], [0], [0], [1], [0, 0, 1, 1], [], []>} : vector<128x384xf32>, vector<384x128xf32>, vector<128x128xf32> -> vector<128x128xf32>
    %54 = arith.addf %1, %53 : vector<128x128xf32>
    %55 = vector.shape_cast %54 : vector<128x128xf32> to vector<8x16x128xf32>
    %c0_26 = arith.constant 0 : index
    %c0_27 = arith.constant 0 : index
    %c0_28 = arith.constant 0 : index
    %56 = vector.load %arg7[%c0_26, %c0_27, %c0_28] : memref<8x16x128xf32, #tpu.memory_space<vmem>>, vector<8x16x128xf32>
    tpu.vector_store %arg7[%c0_26, %c0_27, %c0_28], %55 {strides = array<i32>} : memref<8x16x128xf32, #tpu.memory_space<vmem>>, vector<8x16x128xf32>,
    return
  }
  func.func @transform_0(%arg0: i32) -> (i32, i32, i32) {
    %c0_i32 = arith.constant 0 : i32
    %c0_i32_0 = arith.constant 0 : i32
    %c0_i32_1 = arith.constant 0 : i32
    return %arg0, %c0_i32, %c0_i32_0 : i32, i32, i32
  }
  func.func @transform_1(%arg0: i32) -> (i32, i32) {
    %c0_i32 = arith.constant 0 : i32
    %c0_i32_0 = arith.constant 0 : i32
    %c0_i32_1 = arith.constant 0 : i32
    return %c0_i32, %c0_i32_0 : i32, i32
  }
  func.func @transform_2(%arg0: i32) -> (i32, i32) {
    %c0_i32 = arith.constant 0 : i32
    %c0_i32_0 = arith.constant 0 : i32
    %c0_i32_1 = arith.constant 0 : i32
    return %c0_i32, %c0_i32_0 : i32, i32
  }
  func.func @transform_3(%arg0: i32) -> (i32, i32) {
    %c0_i32 = arith.constant 0 : i32
    %c0_i32_0 = arith.constant 0 : i32
    %c0_i32_1 = arith.constant 0 : i32
    return %c0_i32, %c0_i32_0 : i32, i32
  }
  func.func @transform_4(%arg0: i32) -> (i32, i32) {
    %c0_i32 = arith.constant 0 : i32
    %c0_i32_0 = arith.constant 0 : i32
    %c0_i32_1 = arith.constant 0 : i32
    return %c0_i32, %c0_i32_0 : i32, i32
  }
  func.func @transform_5(%arg0: i32) -> (i32, i32) {
    %c0_i32 = arith.constant 0 : i32
    %c0_i32_0 = arith.constant 0 : i32
    %c0_i32_1 = arith.constant 0 : i32
    return %c0_i32, %c0_i32_0 : i32, i32
  }
  func.func @transform_6(%arg0: i32) -> (i32, i32, i32) {
    %c0_i32 = arith.constant 0 : i32
    %c0_i32_0 = arith.constant 0 : i32
    %c0_i32_1 = arith.constant 0 : i32
    return %arg0, %c0_i32, %c0_i32_0 : i32, i32, i32
  }
}

module attributes {stable_mosaic.version = 11 : i64} {
  func.func @_block_kernel(%arg0: i32, %arg1: memref<8x16x128xf32, #tpu.memory_space<vmem>>, %arg2: memref<1x128xf32, #tpu.memory_space<vmem>>, %arg3: memref<1x128xf32, #tpu.memory_space<vmem>>, %arg4: memref<384x128xf32, #tpu.memory_space<vmem>>, %arg5: memref<1x128xf32, #tpu.memory_space<vmem>>, %arg6: memref<384x128xf32, #tpu.memory_space<vmem>>, %arg7: memref<8x16x128xf32, #tpu.memory_space<vmem>>) attributes {dimension_semantics = [#tpu.dimension_semantics<parallel>], iteration_bounds = array<i64: 2>, scalar_prefetch = 0 : i64, scratch_operands = 0 : i64, tpu.core_type = #tpu.core_type<tc>, window_params = [{transform_indices = @transform_0, window_bounds = array<i64: 8, 16, 128>}, {pipeline_mode = #tpu.pipeline_mode<synchronous>, transform_indices = @transform_1, window_bounds = array<i64: 1, 128>}, {pipeline_mode = #tpu.pipeline_mode<synchronous>, transform_indices = @transform_2, window_bounds = array<i64: 1, 128>}, {pipeline_mode = #tpu.pipeline_mode<synchronous>, transform_indices = @transform_3, window_bounds = array<i64: 384, 128>}, {pipeline_mode = #tpu.pipeline_mode<synchronous>, transform_indices = @transform_4, window_bounds = array<i64: 1, 128>}, {pipeline_mode = #tpu.pipeline_mode<synchronous>, transform_indices = @transform_5, window_bounds = array<i64: 384, 128>}, {transform_indices = @transform_6, window_bounds = array<i64: 8, 16, 128>}]} {
    %c0 = arith.constant 0 : index
    %c0_0 = arith.constant 0 : index
    %c0_1 = arith.constant 0 : index
    %0 = vector.load %arg1[%c0, %c0_0, %c0_1] : memref<8x16x128xf32, #tpu.memory_space<vmem>>, vector<8x16x128xf32>
    %1 = vector.shape_cast %0 : vector<8x16x128xf32> to vector<128x128xf32>
    %2 = tpu.iota {dimensions = array<i32: 0>} : vector<128x128xi32>
    %c16_i32 = arith.constant 16 : i32
    %c0_i32 = arith.constant 0 : i32
    %3 = arith.cmpi eq, %c16_i32, %c0_i32 : i32
    %c1_i32 = arith.constant 1 : i32
    %4 = arith.select %3, %c1_i32, %c16_i32 : i32
    %5 = vector.broadcast %4 : i32 to vector<128x128xi32>
    %6 = arith.remsi %2, %5 : vector<128x128xi32>
    %c0_i32_2 = arith.constant 0 : i32
    %7 = vector.broadcast %c0_i32_2 : i32 to vector<128x128xi32>
    %8 = arith.cmpi ne, %6, %7 : vector<128x128xi32>
    %c0_i32_3 = arith.constant 0 : i32
    %9 = vector.broadcast %c0_i32_3 : i32 to vector<128x128xi32>
    %10 = arith.cmpi slt, %6, %9 : vector<128x128xi32>
    %c0_i32_4 = arith.constant 0 : i32
    %11 = arith.cmpi slt, %4, %c0_i32_4 : i32
    %12 = vector.broadcast %11 : i1 to vector<128x128xi1>
    %13 = vector.broadcast %12 : vector<128x128xi1> to vector<128x128xi1>
    %14 = arith.xori %10, %13 : vector<128x128xi1>
    %15 = arith.andi %14, %8 : vector<128x128xi1>
    %16 = vector.broadcast %4 : i32 to vector<128x128xi32>
    %17 = arith.addi %6, %16 : vector<128x128xi32>
    %18 = arith.select %15, %17, %6 : vector<128x128xi1>, vector<128x128xi32>
    %c0_i32_5 = arith.constant 0 : i32
    %19 = vector.broadcast %c0_i32_5 : i32 to vector<128x128xi32>
    %20 = arith.cmpi ne, %18, %19 : vector<128x128xi32>
    %c15_i32 = arith.constant 15 : i32
    %21 = vector.broadcast %c15_i32 : i32 to vector<128x128xi32>
    %22 = arith.cmpi ne, %18, %21 : vector<128x128xi32>
    %c0_6 = arith.constant 0 : index
    %c0_7 = arith.constant 0 : index
    %23 = vector.load %arg2[%c0_6, %c0_7] : memref<1x128xf32, #tpu.memory_space<vmem>>, vector<1x128xf32>
    %24 = vector.broadcast %23 : vector<1x128xf32> to vector<128x128xf32>
    %25 = arith.mulf %1, %24 : vector<128x128xf32>
    %c0_8 = arith.constant 0 : index
    %c0_9 = arith.constant 0 : index
    %26 = vector.load %arg3[%c0_8, %c0_9] : memref<1x128xf32, #tpu.memory_space<vmem>>, vector<1x128xf32>
    %27 = vector.broadcast %26 : vector<1x128xf32> to vector<128x128xf32>
    %28 = arith.addf %25, %27 : vector<128x128xf32>
    %cst = arith.constant 0.000000e+00 : f32
    %29 = vector.broadcast %cst : f32 to vector<128x128xf32>
    %30 = arith.maximumf %28, %29 : vector<128x128xf32>
    %c1_i32_10 = arith.constant 1 : i32
    %31 = tpu.dynamic_rotate %30 by %c1_i32_10 dim 0 : vector<128x128xf32>, i32 -> vector<128x128xf32>
    %cst_11 = arith.constant 0.000000e+00 : f32
    %32 = vector.broadcast %cst_11 : f32 to vector<128x128xf32>
    %33 = arith.select %20, %31, %32 : vector<128x128xi1>, vector<128x128xf32>
    %c127_i32 = arith.constant 127 : i32
    %34 = tpu.dynamic_rotate %30 by %c127_i32 dim 0 : vector<128x128xf32>, i32 -> vector<128x128xf32>
    %cst_12 = arith.constant 0.000000e+00 : f32
    %35 = vector.broadcast %cst_12 : f32 to vector<128x128xf32>
    %36 = arith.select %22, %34, %35 : vector<128x128xi1>, vector<128x128xf32>
    %37 = tpu.concatenate %33, %30, %36 in 1 : vector<128x128xf32>, vector<128x128xf32>, vector<128x128xf32> -> vector<128x384xf32>
    %c0_13 = arith.constant 0 : index
    %c0_14 = arith.constant 0 : index
    %38 = vector.load %arg4[%c0_13, %c0_14] : memref<384x128xf32, #tpu.memory_space<vmem>>, vector<384x128xf32>
    %cst_15 = arith.constant dense<0.000000e+00> : vector<128x128xf32>
    %39 = tpu.matmul %37, %38, %cst_15 {dimension_numbers = #tpu.dot_dimension_numbers<[1], [0], [0], [1], [0, 0, 1, 1], [], []>} : vector<128x384xf32>, vector<384x128xf32>, vector<128x128xf32> -> vector<128x128xf32>
    %c0_16 = arith.constant 0 : index
    %c0_17 = arith.constant 0 : index
    %40 = vector.load %arg5[%c0_16, %c0_17] : memref<1x128xf32, #tpu.memory_space<vmem>>, vector<1x128xf32>
    %41 = vector.broadcast %40 : vector<1x128xf32> to vector<128x128xf32>
    %42 = arith.addf %39, %41 : vector<128x128xf32>
    %cst_18 = arith.constant 0.000000e+00 : f32
    %43 = vector.broadcast %cst_18 : f32 to vector<128x128xf32>
    %44 = arith.maximumf %42, %43 : vector<128x128xf32>
    %c1_i32_19 = arith.constant 1 : i32
    %45 = tpu.dynamic_rotate %44 by %c1_i32_19 dim 0 : vector<128x128xf32>, i32 -> vector<128x128xf32>
    %cst_20 = arith.constant 0.000000e+00 : f32
    %46 = vector.broadcast %cst_20 : f32 to vector<128x128xf32>
    %47 = arith.select %20, %45, %46 : vector<128x128xi1>, vector<128x128xf32>
    %c127_i32_21 = arith.constant 127 : i32
    %48 = tpu.dynamic_rotate %44 by %c127_i32_21 dim 0 : vector<128x128xf32>, i32 -> vector<128x128xf32>
    %cst_22 = arith.constant 0.000000e+00 : f32
    %49 = vector.broadcast %cst_22 : f32 to vector<128x128xf32>
    %50 = arith.select %22, %48, %49 : vector<128x128xi1>, vector<128x128xf32>
    %51 = tpu.concatenate %47, %44, %50 in 1 : vector<128x128xf32>, vector<128x128xf32>, vector<128x128xf32> -> vector<128x384xf32>
    %c0_23 = arith.constant 0 : index
    %c0_24 = arith.constant 0 : index
    %52 = vector.load %arg6[%c0_23, %c0_24] : memref<384x128xf32, #tpu.memory_space<vmem>>, vector<384x128xf32>
    %cst_25 = arith.constant dense<0.000000e+00> : vector<128x128xf32>
    %53 = tpu.matmul %51, %52, %cst_25 {dimension_numbers = #tpu.dot_dimension_numbers<[1], [0], [0], [1], [0, 0, 1, 1], [], []>} : vector<128x384xf32>, vector<384x128xf32>, vector<128x128xf32> -> vector<128x128xf32>
    %54 = arith.addf %1, %53 : vector<128x128xf32>
    %55 = vector.shape_cast %54 : vector<128x128xf32> to vector<8x16x128xf32>
    %c0_26 = arith.constant 0 : index
    %c0_27 = arith.constant 0 : index
    %c0_28 = arith.constant 0 : index
    %56 = vector.load %arg7[%c0_26, %c0_27, %c0_28] : memref<8x16x128xf32, #tpu.memory_space<vmem>>, vector<8x16x128xf32>
    tpu.vector_store %arg7[%c0_26, %c0_27, %c0_28], %55 {strides = array<i32>} : memref<8x16x128xf32, #tpu.memory_space<vmem>>, vector<8x16x128xf32>,
    return
  }
  func.func @transform_0(%arg0: i32) -> (i32, i32, i32) {
    %c0_i32 = arith.constant 0 : i32
    %c0_i32_0 = arith.constant 0 : i32
    %c0_i32_1 = arith.constant 0 : i32
    return %arg0, %c0_i32, %c0_i32_0 : i32, i32, i32
  }
  func.func @transform_1(%arg0: i32) -> (i32, i32) {
    %c0_i32 = arith.constant 0 : i32
    %c0_i32_0 = arith.constant 0 : i32
    %c0_i32_1 = arith.constant 0 : i32
    return %c0_i32, %c0_i32_0 : i32, i32
  }
  func.func @transform_2(%arg0: i32) -> (i32, i32) {
    %c0_i32 = arith.constant 0 : i32
    %c0_i32_0 = arith.constant 0 : i32
    %c0_i32_1 = arith.constant 0 : i32
    return %c0_i32, %c0_i32_0 : i32, i32
  }
  func.func @transform_3(%arg0: i32) -> (i32, i32) {
    %c0_i32 = arith.constant 0 : i32
    %c0_i32_0 = arith.constant 0 : i32
    %c0_i32_1 = arith.constant 0 : i32
    return %c0_i32, %c0_i32_0 : i32, i32
  }
  func.func @transform_4(%arg0: i32) -> (i32, i32) {
    %c0_i32 = arith.constant 0 : i32
    %c0_i32_0 = arith.constant 0 : i32
    %c0_i32_1 = arith.constant 0 : i32
    return %c0_i32, %c0_i32_0 : i32, i32
  }
  func.func @transform_5(%arg0: i32) -> (i32, i32) {
    %c0_i32 = arith.constant 0 : i32
    %c0_i32_0 = arith.constant 0 : i32
    %c0_i32_1 = arith.constant 0 : i32
    return %c0_i32, %c0_i32_0 : i32, i32
  }
  func.func @transform_6(%arg0: i32) -> (i32, i32, i32) {
    %c0_i32 = arith.constant 0 : i32
    %c0_i32_0 = arith.constant 0 : i32
    %c0_i32_1 = arith.constant 0 : i32
    return %arg0, %c0_i32, %c0_i32_0 : i32, i32, i32
  }
}

</mosaic_0001>

<llo_original>
// kernel: tpu_custom_call.1
$region0: #{tpu_custom_call.1}
  #allocation0 [shape = 'u32[]', space=smem, size = 0x4, offset = 0x4, fixed_abs, tag = 'smem constant byte address 0x4 - core index']
  #allocation1 [shape = 'u32[72,128]{1,0:T(1,128)}', space=vmem, size = 0x9000, scoped, tag = 'internal scratch']
  %s0 = inlined_call_operand.hbm [shape: f32[16,16,128], index: 0, kind: input, shape index: {}]
  %s1 = inlined_call_operand.hbm [shape: f32[1,128], index: 1, kind: input, shape index: {}]
  %s2 = inlined_call_operand.vmem [shape: f32[1,128], index: 2, kind: input, shape index: {}]
  %s3 = inlined_call_operand.hbm [shape: f32[384,128], index: 3, kind: input, shape index: {}]
  %s4 = inlined_call_operand.vmem [shape: f32[1,128], index: 4, kind: input, shape index: {}]
  %s5 = inlined_call_operand.hbm [shape: f32[384,128], index: 5, kind: input, shape index: {}]
  %s6 = inlined_call_operand.hbm [shape: f32[16,16,128], index: 6, kind: output, shape index: {}]
  %s7 = sld [smem:[#allocation0]]
  $region73: #{tpu_custom_call.1} parent=0
    _
  %s9 = ssub.s32 1, %s7
  %s10 = scalar_select 0, %s9, %s7
  $region1: #{tpu_custom_call.1} parent=0
    #allocation2 [shape = 'u8[131072]{0}', space=vmem, size = 0x20000, scoped, tag = 'input window, operand 0']
    #allocation3 [shape = 's32[2]{0}', space=sflag, size = 0x8, scoped, tag = 'scoped memory for tpu_custom_call.1']
    #allocation4 [shape = 's32[2]{0}', space=sflag, size = 0x8, scoped, tag = 'scoped memory for tpu_custom_call.1']
    #allocation5 [shape = 'u8[512]{0}', space=vmem, size = 0x400, scoped, tag = 'input window, operand 1, single buffered']
    #allocation6 [shape = 's32[1]{0}', space=sflag, size = 0x4, scoped, tag = 'scoped memory for tpu_custom_call.1']
    #allocation7 [shape = 'u8[196608]{0}', space=vmem, size = 0x30000, scoped, tag = 'input window, operand 3, single buffered']
    #allocation8 [shape = 'u8[196608]{0}', space=vmem, size = 0x30000, scoped, tag = 'input window, operand 5, single buffered']
    #allocation9 [shape = 's32[1]{0}', space=sflag, size = 0x4, scoped, tag = 'scoped memory for tpu_custom_call.1']
    #allocation10 [shape = 'u8[131072]{0}', space=vmem, size = 0x20000, scoped, tag = 'output window, operand 0']
    %11 = vsyncpa [#allocation3], 0
    %s12 = scalar_lea.sflag [#allocation3], 1
    %13 = vsyncpa %s12, 0
    %14 = vsyncpa [#allocation6], 0
    %15 = vsyncpa [#allocation9], 0
    %16 = vsyncpa [#allocation4], 0
    %s17 = scalar_lea.sflag [#allocation4], 1
    %18 = vsyncpa %s17, 0
    loop: start=0, step=1, limit=4
    $region2: #{tpu_custom_call.1} parent=1 // loop_pre_header
      _
    $region3: #{tpu_custom_call.1} parent=1 // loop_header
      %s20 = sphi 0, %s24
      %p21 = scmp.ge.s32.totalorder %s20, 4
      %s30 = sphi 0, %s32
      %s33 = sphi 0, %s30
      %s34 = sphi 0, %s33
      %s50 = sphi 0, %s34
      %s54 = sphi 0, %s54
      %s56 = sphi 0, %s54
      %s57 = sphi 0, %s56
      %s71 = sphi 0, %s57
      %s75 = sphi 0, %s75
      %s77 = sphi 0, %s75
      %s78 = sphi 0, %s77
      %s92 = sphi 0, %s78
      %s96 = sphi 0, %s96
      %s98 = sphi 0, %s96
      %s99 = sphi 0, %s98
      %s113 = sphi 0, %s99
      %s117 = sphi 0, %s117
      %s119 = sphi 0, %s117
      %s120 = sphi 0, %s119
      %s134 = sphi 0, %s120
      %s138 = sphi 0, %s138
      %s140 = sphi 0, %s138
      %s141 = sphi 0, %s140
      %s155 = sphi 0, %s141
      %s161 = sphi 0, %s163
      %s164 = sphi 0, %s161
      %s165 = sphi 0, %s164
      %s181 = sphi 0, %s165
    $region4: #{tpu_custom_call.1} parent=1 // loop_header_branch
      %23 = sbr.rel (%p21) target = $region8
    $region5: #{tpu_custom_call.1} parent=1 // loop_body
      %s25 = ssub.s32 %s20, 1
      %s26 = ssub.s32 %s20, 2
      %s27 = sadd.s32 %s20, 1
      %s28 = ssub.s32 %s20, %s27
      %p29 = scmp.eq.s32.totalorder %s28, 0
      %s31 = sadd.s32 %s30, 1
      %s32 = scalar_select %p29, %s30, %s31
      %p35 = pneg %p29
      %p36 = scmp.eq.s32.totalorder %s20, 1
      %p37 = por %p35, %p36
      %p38 = scmp.ne.s32.totalorder %s30, %s33
      %p39 = scmp.eq.s32.totalorder %s20, 0
      %p40 = por %p38, %p39
      %p41 = scmp.ne.s32.totalorder %s30, %s33
      %p42 = scmp.eq.s32.totalorder %s25, 1
      %p43 = por %p41, %p42
      %p44 = scmp.ne.s32.totalorder %s33, %s34
      %p45 = scmp.eq.s32.totalorder %s25, 0
      %p46 = por %p44, %p45
      %p47 = scmp.ne.s32.totalorder %s33, %s34
      %p48 = scmp.eq.s32.totalorder %s26, 1
      %p49 = por %p47, %p48
      %p51 = scmp.ne.s32.totalorder %s34, %s50
      %p52 = scmp.eq.s32.totalorder %s26, 0
      %p53 = por %p51, %p52
      %s55 = sadd.s32 %s54, 1
      %p58 = scmp.eq.s32.totalorder %s20, 1
      %p59 = scmp.ne.s32.totalorder %s54, %s56
      %p60 = scmp.eq.s32.totalorder %s20, 0
      %p61 = por %p59, %p60
      %p62 = scmp.ne.s32.totalorder %s54, %s56
      %p63 = scmp.eq.s32.totalorder %s25, 1
      %p64 = por %p62, %p63
      %p65 = scmp.ne.s32.totalorder %s56, %s57
      %p66 = scmp.eq.s32.totalorder %s25, 0
      %p67 = por %p65, %p66
      %p68 = scmp.ne.s32.totalorder %s56, %s57
      %p69 = scmp.eq.s32.totalorder %s26, 1
      %p70 = por %p68, %p69
      %p72 = scmp.ne.s32.totalorder %s57, %s71
      %p73 = scmp.eq.s32.totalorder %s26, 0
      %p74 = por %p72, %p73
      %s76 = sadd.s32 %s75, 1
      %p79 = scmp.eq.s32.totalorder %s20, 1
      %p80 = scmp.ne.s32.totalorder %s75, %s77
      %p81 = scmp.eq.s32.totalorder %s20, 0
      %p82 = por %p80, %p81
      %p83 = scmp.ne.s32.totalorder %s75, %s77
      %p84 = scmp.eq.s32.totalorder %s25, 1
      %p85 = por %p83, %p84
      %p86 = scmp.ne.s32.totalorder %s77, %s78
      %p87 = scmp.eq.s32.totalorder %s25, 0
      %p88 = por %p86, %p87
      %p89 = scmp.ne.s32.totalorder %s77, %s78
      %p90 = scmp.eq.s32.totalorder %s26, 1
      %p91 = por %p89, %p90
      %p93 = scmp.ne.s32.totalorder %s78, %s92
      %p94 = scmp.eq.s32.totalorder %s26, 0
      %p95 = por %p93, %p94
      %s97 = sadd.s32 %s96, 1
      %p100 = scmp.eq.s32.totalorder %s20, 1
      %p101 = scmp.ne.s32.totalorder %s96, %s98
      %p102 = scmp.eq.s32.totalorder %s20, 0
      %p103 = por %p101, %p102
      %p104 = scmp.ne.s32.totalorder %s96, %s98
      %p105 = scmp.eq.s32.totalorder %s25, 1
      %p106 = por %p104, %p105
      %p107 = scmp.ne.s32.totalorder %s98, %s99
      %p108 = scmp.eq.s32.totalorder %s25, 0
      %p109 = por %p107, %p108
      %p110 = scmp.ne.s32.totalorder %s98, %s99
      %p111 = scmp.eq.s32.totalorder %s26, 1
      %p112 = por %p110, %p111
      %p114 = scmp.ne.s32.totalorder %s99, %s113
      %p115 = scmp.eq.s32.totalorder %s26, 0
      %p116 = por %p114, %p115
      %s118 = sadd.s32 %s117, 1
      %p121 = scmp.eq.s32.totalorder %s20, 1
      %p122 = scmp.ne.s32.totalorder %s117, %s119
      %p123 = scmp.eq.s32.totalorder %s20, 0
      %p124 = por %p122, %p123
      %p125 = scmp.ne.s32.totalorder %s117, %s119
      %p126 = scmp.eq.s32.totalorder %s25, 1
      %p127 = por %p125, %p126
      %p128 = scmp.ne.s32.totalorder %s119, %s120
      %p129 = scmp.eq.s32.totalorder %s25, 0
      %p130 = por %p128, %p129
      %p131 = scmp.ne.s32.totalorder %s119, %s120
      %p132 = scmp.eq.s32.totalorder %s26, 1
      %p133 = por %p131, %p132
      %p135 = scmp.ne.s32.totalorder %s120, %s134
      %p136 = scmp.eq.s32.totalorder %s26, 0
      %p137 = por %p135, %p136
      %s139 = sadd.s32 %s138, 1
      %p142 = scmp.eq.s32.totalorder %s20, 1
      %p143 = scmp.ne.s32.totalorder %s138, %s140
      %p144 = scmp.eq.s32.totalorder %s20, 0
      %p145 = por %p143, %p144
      %p146 = scmp.ne.s32.totalorder %s138, %s140
      %p147 = scmp.eq.s32.totalorder %s25, 1
      %p148 = por %p146, %p147
      %p149 = scmp.ne.s32.totalorder %s140, %s141
      %p150 = scmp.eq.s32.totalorder %s25, 0
      %p151 = por %p149, %p150
      %p152 = scmp.ne.s32.totalorder %s140, %s141
      %p153 = scmp.eq.s32.totalorder %s26, 1
      %p154 = por %p152, %p153
      %p156 = scmp.ne.s32.totalorder %s141, %s155
      %p157 = scmp.eq.s32.totalorder %s26, 0
      %p158 = por %p156, %p157
      %s159 = ssub.s32 %s20, %s27
      %p160 = scmp.eq.s32.totalorder %s159, 0
      %s162 = sadd.s32 %s161, 1
      %s163 = scalar_select %p160, %s161, %s162
      %p166 = pneg %p160
      %p167 = scmp.eq.s32.totalorder %s20, 1
      %p168 = por %p166, %p167
      %p169 = scmp.ne.s32.totalorder %s161, %s164
      %p170 = scmp.eq.s32.totalorder %s20, 0
      %p171 = por %p169, %p170
      %p172 = scmp.ne.s32.totalorder %s161, %s164
      %p173 = scmp.eq.s32.totalorder %s25, 1
      %p174 = por %p172, %p173
      %p175 = scmp.ne.s32.totalorder %s164, %s165
      %p176 = scmp.eq.s32.totalorder %s25, 0
      %p177 = por %p175, %p176
      %p178 = scmp.ne.s32.totalorder %s164, %s165
      %p179 = scmp.eq.s32.totalorder %s26, 1
      %p180 = por %p178, %p179
      %p182 = scmp.ne.s32.totalorder %s165, %s181
      %p183 = scmp.eq.s32.totalorder %s26, 0
      %p184 = por %p182, %p183
      %p185 = scmp.le.s32.totalorder 1, %s20
      %p186 = scmp.lt.s32.totalorder %s20, 3
      %p187 = pnand %p185, %p186
      %p188 = pneg %p187
      // Predicated region
      $region9: #{tpu_custom_call.1} parent=5 // pred_check
        _
      $region10: #{tpu_custom_call.1} parent=5 // pred_check_branch
        %190 = sbr.rel (%p187) target = $region12
      $region11: #{tpu_custom_call.1} parent=5 // pred_region
        %s191 = ssub.s32 %s20, 1
        // Predicated region
        $region13: #{tpu_custom_call.1} parent=11 // pred_check
          %p192 = pneg %p67
        $region14: #{tpu_custom_call.1} parent=11 // pred_check_branch
          %194 = sbr.rel (%p192) target = $region16
        $region15: #{tpu_custom_call.1} parent=11 // pred_region
          %196 = vsyncadd [#allocation6], 0
          %s198 = sshll.u32 %s1, 4
          %s199 = int_to_ptr.hbm [resolvable:$true] %s198
          %s200 = sshll.u32 [#allocation5], 4
          %s201 = int_to_ptr.vmem [resolvable:$true] %s200
          %203 = dma.hbm_to_vmem [thread:$0]  %s199, 16, %s201, [#allocation6]
        $region16: #{tpu_custom_call.1} parent=11 // pred_fallthru
          _
        // Predicated region
        $region17: #{tpu_custom_call.1} parent=11 // pred_check
          %p204 = pneg %p88
        $region18: #{tpu_custom_call.1} parent=11 // pred_check_branch
          %206 = sbr.rel (%p204) target = $region20
        $region19: #{tpu_custom_call.1} parent=11 // pred_region
          _
        $region20: #{tpu_custom_call.1} parent=11 // pred_fallthru
          _
        // Predicated region
        $region21: #{tpu_custom_call.1} parent=11 // pred_check
          %p207 = pneg %p109
        $region22: #{tpu_custom_call.1} parent=11 // pred_check_branch
          %209 = sbr.rel (%p207) target = $region24
        $region23: #{tpu_custom_call.1} parent=11 // pred_region
          %211 = vsyncadd [#allocation6], 0
          %s212 = sshll.u32 %s3, 4
          %s213 = int_to_ptr.hbm [resolvable:$true] %s212
          %s214 = sshll.u32 [#allocation7], 4
          %s215 = int_to_ptr.vmem [resolvable:$true] %s214
          %220 = dma.hbm_to_vmem [thread:$0]  %s213, 6144, %s215, [#allocation6], 128, 128, 8
        $region24: #{tpu_custom_call.1} parent=11 // pred_fallthru
          _
        // Predicated region
        $region25: #{tpu_custom_call.1} parent=11 // pred_check
          %p221 = pneg %p130
        $region26: #{tpu_custom_call.1} parent=11 // pred_check_branch
          %223 = sbr.rel (%p221) target = $region28
        $region27: #{tpu_custom_call.1} parent=11 // pred_region
          _
        $region28: #{tpu_custom_call.1} parent=11 // pred_fallthru
          _
        // Predicated region
        $region29: #{tpu_custom_call.1} parent=11 // pred_check
          %p224 = pneg %p151
        $region30: #{tpu_custom_call.1} parent=11 // pred_check_branch
          %226 = sbr.rel (%p224) target = $region32
        $region31: #{tpu_custom_call.1} parent=11 // pred_region
          %228 = vsyncadd [#allocation9], 0
          %s229 = sshll.u32 %s5, 4
          %s230 = int_to_ptr.hbm [resolvable:$true] %s229
          %s231 = sshll.u32 [#allocation8], 4
          %s232 = int_to_ptr.vmem [resolvable:$true] %s231
          %237 = dma.hbm_to_vmem [thread:$0]  %s230, 6144, %s232, [#allocation9], 128, 128, 8
        $region32: #{tpu_custom_call.1} parent=11 // pred_fallthru
          _
      $region12: #{tpu_custom_call.1} parent=5 // pred_fallthru
        _
      %p238 = scmp.lt.s32.totalorder %s20, 2
      // Predicated region
      $region33: #{tpu_custom_call.1} parent=5 // pred_check
        %p239 = pneg %p238
      $region34: #{tpu_custom_call.1} parent=5 // pred_check_branch
        %241 = sbr.rel (%p239) target = $region36
      $region35: #{tpu_custom_call.1} parent=5 // pred_region
        // Predicated region
        $region37: #{tpu_custom_call.1} parent=35 // pred_check
          %p242 = pneg %p40
        $region38: #{tpu_custom_call.1} parent=35 // pred_check_branch
          %244 = sbr.rel (%p242) target = $region40
        $region39: #{tpu_custom_call.1} parent=35 // pred_region
          %s245 = sand.u32 %s30, 1
          %s246 = scalar_lea.sflag [#allocation3], %s245
          %s247 = sand.u32 %s30, 1
          %s248 = smul.addr %s247, 128
          %s249 = scalar_lea.vmem [#allocation2], %s248
          %s250 = smul.u32 8, %s20
          %252 = vsyncadd %s246, 0
          %s253 = smul.addr %s250, 2
          %s254 = smul.addr %s253, 8
          %s255 = scalar_lea.hbm %s0, %s254
          %s256 = sshll.u32 %s255, 4
          %s257 = int_to_ptr.hbm [resolvable:$true] %s256
          %s258 = sshll.u32 %s249, 4
          %s259 = int_to_ptr.vmem [resolvable:$true] %s258
          %264 = dma.hbm_to_vmem [thread:$0]  %s257, 2048, %s259, %s246, 128, 128, 8
        $region40: #{tpu_custom_call.1} parent=35 // pred_fallthru
          _
      $region36: #{tpu_custom_call.1} parent=5 // pred_fallthru
        _
      %p265 = scmp.le.s32.totalorder 1, %s20
      %p266 = scmp.lt.s32.totalorder %s20, 3
      %p267 = pnand %p265, %p266
      %p268 = pneg %p267
      // Predicated region
      $region41: #{tpu_custom_call.1} parent=5 // pred_check
        _
      $region42: #{tpu_custom_call.1} parent=5 // pred_check_branch
        %270 = sbr.rel (%p267) target = $region44
      $region43: #{tpu_custom_call.1} parent=5 // pred_region
        %s271 = ssub.s32 %s20, 1
        %s272 = sand.u32 %s33, 1
        %s273 = scalar_lea.sflag [#allocation3], %s272
        %s274 = sand.u32 %s33, 1
        %s275 = smul.addr %s274, 128
        %s276 = scalar_lea.vmem [#allocation2], %s275
        // Predicated region
        $region45: #{tpu_custom_call.1} parent=43 // pred_check
          %p277 = pneg %p46
        $region46: #{tpu_custom_call.1} parent=43 // pred_check_branch
          %279 = sbr.rel (%p277) target = $region48
        $region47: #{tpu_custom_call.1} parent=43 // pred_region
          %281 = dma.done %s273, 2048
        $region48: #{tpu_custom_call.1} parent=43 // pred_fallthru
          _
        // Predicated region
        $region49: #{tpu_custom_call.1} parent=43 // pred_check
          %p282 = pneg %p67
        $region50: #{tpu_custom_call.1} parent=43 // pred_check_branch
          %284 = sbr.rel (%p282) target = $region52
        $region51: #{tpu_custom_call.1} parent=43 // pred_region
          %286 = dma.done [#allocation6], 16
        $region52: #{tpu_custom_call.1} parent=43 // pred_fallthru
          _
        // Predicated region
        $region53: #{tpu_custom_call.1} parent=43 // pred_check
          %p287 = pneg %p109
        $region54: #{tpu_custom_call.1} parent=43 // pred_check_branch
          %289 = sbr.rel (%p287) target = $region56
        $region55: #{tpu_custom_call.1} parent=43 // pred_region
          %291 = dma.done [#allocation6], 6144
        $region56: #{tpu_custom_call.1} parent=43 // pred_fallthru
          _
        // Predicated region
        $region57: #{tpu_custom_call.1} parent=43 // pred_check
          %p292 = pneg %p151
        $region58: #{tpu_custom_call.1} parent=43 // pred_check_branch
          %294 = sbr.rel (%p292) target = $region60
        $region59: #{tpu_custom_call.1} parent=43 // pred_region
          %296 = dma.done [#allocation9], 6144
        $region60: #{tpu_custom_call.1} parent=43 // pred_fallthru
          _
        %s297 = sand.u32 %s33, 1
        %s298 = scalar_lea.sflag [#allocation3], %s297
        %s299 = sand.u32 %s33, 1
        %s300 = smul.addr %s299, 128
        %s301 = scalar_lea.vmem [#allocation2], %s300
        %p302 = pneg %p46
        %p303 = pneg %p43
        %p304 = pneg %p67
        %p305 = pneg %p64
        %p306 = pneg %p88
        %p307 = pneg %p85
        %p308 = pneg %p109
        %p309 = pneg %p106
        %p310 = pneg %p130
        %p311 = pneg %p127
        %p312 = pneg %p151
        %p313 = pneg %p148
        %p314 = pneg %p177
        %p315 = pneg %p174
        %s316 = sand.u32 %s164, 1
        %s317 = scalar_lea.sflag [#allocation4], %s316
        %s318 = sand.u32 %s164, 1
        %s319 = smul.addr %s318, 128
        %s320 = scalar_lea.vmem [#allocation10], %s319
        %s321 = smul.u32 8, %s25
        %s322 = smul.u32 8, %s25
        %v323 = vld [vmem:[%s276] sm:$0xff]
        %v324 = vld [vmem:[%s276 + $0x8] sm:$0xff]
        %v325 = vld [vmem:[%s276 + $0x10] sm:$0xff]
        %v326 = vld [vmem:[%s276 + $0x18] sm:$0xff]
        %v327 = vld [vmem:[%s276 + $0x20] sm:$0xff]
        %v328 = vld [vmem:[%s276 + $0x28] sm:$0xff]
        %v329 = vld [vmem:[%s276 + $0x30] sm:$0xff]
        %v330 = vld [vmem:[%s276 + $0x38] sm:$0xff]
        %v331 = vld [vmem:[%s276 + $0x40] sm:$0xff]
        %v332 = vld [vmem:[%s276 + $0x48] sm:$0xff]
        %v333 = vld [vmem:[%s276 + $0x50] sm:$0xff]
        %v334 = vld [vmem:[%s276 + $0x58] sm:$0xff]
        %v335 = vld [vmem:[%s276 + $0x60] sm:$0xff]
        %v336 = vld [vmem:[%s276 + $0x68] sm:$0xff]
        %v337 = vld [vmem:[%s276 + $0x70] sm:$0xff]
        %v338 = vld [vmem:[%s276 + $0x78] sm:$0xff]
        %v339 = vlaneseq
        %v340 = vshrl.u32 %v339, 7
        %v341 = vadd.s32 %v340, 8
        %v342 = vadd.s32 %v340, 16
        %v343 = vadd.s32 %v340, 24
        %v344 = vadd.s32 %v340, 32
        %v345 = vadd.s32 %v340, 40
        %v346 = vadd.s32 %v340, 48
        %v347 = vadd.s32 %v340, 56
        %v348 = vadd.s32 %v340, 64
        %v349 = vadd.s32 %v340, 72
        %v350 = vadd.s32 %v340, 80
        %v351 = vadd.s32 %v340, 88
        %v352 = vadd.s32 %v340, 96
        %v353 = vadd.s32 %v340, 104
        %v354 = vadd.s32 %v340, 112
        %v355 = vadd.s32 %v340, 120
        %vm356 = vcmp.lt.s32.totalorder %v340, 0
        %v357 = vsub.s32 0, %v340
        %v358 = vsel %vm356, %v357, %v340
        %v359 = vshrl.u32 %v358, 4
        %v360 = vand.u32 %v358, 15
        %v361 = vsub.s32 0, %v360
        %v362 = vsel %vm356, %v361, %v360
        %vm363 = vcmp.lt.s32.totalorder %v341, 0
        %v364 = vsub.s32 0, %v341
        %v365 = vsel %vm363, %v364, %v341
        %v366 = vshrl.u32 %v365, 4
        %v367 = vand.u32 %v365, 15
        %v368 = vsub.s32 0, %v367
        %v369 = vsel %vm363, %v368, %v367
        %vm370 = vcmp.lt.s32.totalorder %v342, 0
        %v371 = vsub.s32 0, %v342
        %v372 = vsel %vm370, %v371, %v342
        %v373 = vshrl.u32 %v372, 4
        %v374 = vand.u32 %v372, 15
        %v375 = vsub.s32 0, %v374
        %v376 = vsel %vm370, %v375, %v374
        %vm377 = vcmp.lt.s32.totalorder %v343, 0
        %v378 = vsub.s32 0, %v343
        %v379 = vsel %vm377, %v378, %v343
        %v380 = vshrl.u32 %v379, 4
        %v381 = vand.u32 %v379, 15
        %v382 = vsub.s32 0, %v381
        %v383 = vsel %vm377, %v382, %v381
        %vm384 = vcmp.lt.s32.totalorder %v344, 0
        %v385 = vsub.s32 0, %v344
        %v386 = vsel %vm384, %v385, %v344
        %v387 = vshrl.u32 %v386, 4
        %v388 = vand.u32 %v386, 15
        %v389 = vsub.s32 0, %v388
        %v390 = vsel %vm384, %v389, %v388
        %vm391 = vcmp.lt.s32.totalorder %v345, 0
        %v392 = vsub.s32 0, %v345
        %v393 = vsel %vm391, %v392, %v345
        %v394 = vshrl.u32 %v393, 4
        %v395 = vand.u32 %v393, 15
        %v396 = vsub.s32 0, %v395
        %v397 = vsel %vm391, %v396, %v395
        %vm398 = vcmp.lt.s32.totalorder %v346, 0
        %v399 = vsub.s32 0, %v346
        %v400 = vsel %vm398, %v399, %v346
        %v401 = vshrl.u32 %v400, 4
        %v402 = vand.u32 %v400, 15
        %v403 = vsub.s32 0, %v402
        %v404 = vsel %vm398, %v403, %v402
        %vm405 = vcmp.lt.s32.totalorder %v347, 0
        %v406 = vsub.s32 0, %v347
        %v407 = vsel %vm405, %v406, %v347
        %v408 = vshrl.u32 %v407, 4
        %v409 = vand.u32 %v407, 15
        %v410 = vsub.s32 0, %v409
        %v411 = vsel %vm405, %v410, %v409
        %vm412 = vcmp.lt.s32.totalorder %v348, 0
        %v413 = vsub.s32 0, %v348
        %v414 = vsel %vm412, %v413, %v348
        %v415 = vshrl.u32 %v414, 4
        %v416 = vand.u32 %v414, 15
        %v417 = vsub.s32 0, %v416
        %v418 = vsel %vm412, %v417, %v416
        %vm419 = vcmp.lt.s32.totalorder %v349, 0
        %v420 = vsub.s32 0, %v349
        %v421 = vsel %vm419, %v420, %v349
        %v422 = vshrl.u32 %v421, 4
        %v423 = vand.u32 %v421, 15
        %v424 = vsub.s32 0, %v423
        %v425 = vsel %vm419, %v424, %v423
        %vm426 = vcmp.lt.s32.totalorder %v350, 0
        %v427 = vsub.s32 0, %v350
        %v428 = vsel %vm426, %v427, %v350
        %v429 = vshrl.u32 %v428, 4
        %v430 = vand.u32 %v428, 15
        %v431 = vsub.s32 0, %v430
        %v432 = vsel %vm426, %v431, %v430
        %vm433 = vcmp.lt.s32.totalorder %v351, 0
        %v434 = vsub.s32 0, %v351
        %v435 = vsel %vm433, %v434, %v351
        %v436 = vshrl.u32 %v435, 4
        %v437 = vand.u32 %v435, 15
        %v438 = vsub.s32 0, %v437
        %v439 = vsel %vm433, %v438, %v437
        %vm440 = vcmp.lt.s32.totalorder %v352, 0
        %v441 = vsub.s32 0, %v352
        %v442 = vsel %vm440, %v441, %v352
        %v443 = vshrl.u32 %v442, 4
        %v444 = vand.u32 %v442, 15
        %v445 = vsub.s32 0, %v444
        %v446 = vsel %vm440, %v445, %v444
        %vm447 = vcmp.lt.s32.totalorder %v353, 0
        %v448 = vsub.s32 0, %v353
        %v449 = vsel %vm447, %v448, %v353
        %v450 = vshrl.u32 %v449, 4
        %v451 = vand.u32 %v449, 15
        %v452 = vsub.s32 0, %v451
        %v453 = vsel %vm447, %v452, %v451
        %vm454 = vcmp.lt.s32.totalorder %v354, 0
        %v455 = vsub.s32 0, %v354
        %v456 = vsel %vm454, %v455, %v354
        %v457 = vshrl.u32 %v456, 4
        %v458 = vand.u32 %v456, 15
        %v459 = vsub.s32 0, %v458
        %v460 = vsel %vm454, %v459, %v458
        %vm461 = vcmp.lt.s32.totalorder %v355, 0
        %v462 = vsub.s32 0, %v355
        %v463 = vsel %vm461, %v462, %v355
        %v464 = vshrl.u32 %v463, 4
        %v465 = vand.u32 %v463, 15
        %v466 = vsub.s32 0, %v465
        %v467 = vsel %vm461, %v466, %v465
        %vm468 = vcmp.ne.s32.totalorder %v362, 0
        %vm469 = vcmp.ne.s32.totalorder %v369, 0
        %vm470 = vcmp.ne.s32.totalorder %v376, 0
        %vm471 = vcmp.ne.s32.totalorder %v383, 0
        %vm472 = vcmp.ne.s32.totalorder %v390, 0
        %vm473 = vcmp.ne.s32.totalorder %v397, 0
        %vm474 = vcmp.ne.s32.totalorder %v404, 0
        %vm475 = vcmp.ne.s32.totalorder %v411, 0
        %vm476 = vcmp.ne.s32.totalorder %v418, 0
        %vm477 = vcmp.ne.s32.totalorder %v425, 0
        %vm478 = vcmp.ne.s32.totalorder %v432, 0
        %vm479 = vcmp.ne.s32.totalorder %v439, 0
        %vm480 = vcmp.ne.s32.totalorder %v446, 0
        %vm481 = vcmp.ne.s32.totalorder %v453, 0
        %vm482 = vcmp.ne.s32.totalorder %v460, 0
        %vm483 = vcmp.ne.s32.totalorder %v467, 0
        %vm484 = vcmp.lt.s32.totalorder %v362, 0
        %vm485 = vcmp.lt.s32.totalorder %v369, 0
        %vm486 = vcmp.lt.s32.totalorder %v376, 0
        %vm487 = vcmp.lt.s32.totalorder %v383, 0
        %vm488 = vcmp.lt.s32.totalorder %v390, 0
        %vm489 = vcmp.lt.s32.totalorder %v397, 0
        %vm490 = vcmp.lt.s32.totalorder %v404, 0
        %vm491 = vcmp.lt.s32.totalorder %v411, 0
        %vm492 = vcmp.lt.s32.totalorder %v418, 0
        %vm493 = vcmp.lt.s32.totalorder %v425, 0
        %vm494 = vcmp.lt.s32.totalorder %v432, 0
        %vm495 = vcmp.lt.s32.totalorder %v439, 0
        %vm496 = vcmp.lt.s32.totalorder %v446, 0
        %vm497 = vcmp.lt.s32.totalorder %v453, 0
        %vm498 = vcmp.lt.s32.totalorder %v460, 0
        %vm499 = vcmp.lt.s32.totalorder %v467, 0
        %vm500 = vmand %vm484, %vm468
        %vm501 = vmand %vm485, %vm469
        %vm502 = vmand %vm486, %vm470
        %vm503 = vmand %vm487, %vm471
        %vm504 = vmand %vm488, %vm472
        %vm505 = vmand %vm489, %vm473
        %vm506 = vmand %vm490, %vm474
        %vm507 = vmand %vm491, %vm475
        %vm508 = vmand %vm492, %vm476
        %vm509 = vmand %vm493, %vm477
        %vm510 = vmand %vm494, %vm478
        %vm511 = vmand %vm495, %vm479
        %vm512 = vmand %vm496, %vm480
        %vm513 = vmand %vm497, %vm481
        %vm514 = vmand %vm498, %vm482
        %vm515 = vmand %vm499, %vm483
        %v516 = vadd.s32 %v362, 16
        %v517 = vadd.s32 %v369, 16
        %v518 = vadd.s32 %v376, 16
        %v519 = vadd.s32 %v383, 16
        %v520 = vadd.s32 %v390, 16
        %v521 = vadd.s32 %v397, 16
        %v522 = vadd.s32 %v404, 16
        %v523 = vadd.s32 %v411, 16
        %v524 = vadd.s32 %v418, 16
        %v525 = vadd.s32 %v425, 16
        %v526 = vadd.s32 %v432, 16
        %v527 = vadd.s32 %v439, 16
        %v528 = vadd.s32 %v446, 16
        %v529 = vadd.s32 %v453, 16
        %v530 = vadd.s32 %v460, 16
        %v531 = vadd.s32 %v467, 16
        %v532 = vsel %vm500, %v516, %v362
        %v533 = vsel %vm501, %v517, %v369
        %v534 = vsel %vm502, %v518, %v376
        %v535 = vsel %vm503, %v519, %v383
        %v536 = vsel %vm504, %v520, %v390
        %v537 = vsel %vm505, %v521, %v397
        %v538 = vsel %vm506, %v522, %v404
        %v539 = vsel %vm507, %v523, %v411
        %v540 = vsel %vm508, %v524, %v418
        %v541 = vsel %vm509, %v525, %v425
        %v542 = vsel %vm510, %v526, %v432
        %v543 = vsel %vm511, %v527, %v439
        %v544 = vsel %vm512, %v528, %v446
        %v545 = vsel %vm513, %v529, %v453
        %v546 = vsel %vm514, %v530, %v460
        %v547 = vsel %vm515, %v531, %v467
        %vm548 = vcmp.ne.s32.totalorder %v532, 0
        %vm549 = vcmp.ne.s32.totalorder %v533, 0
        %vm550 = vcmp.ne.s32.totalorder %v534, 0
        %vm551 = vcmp.ne.s32.totalorder %v535, 0
        %vm552 = vcmp.ne.s32.totalorder %v536, 0
        %vm553 = vcmp.ne.s32.totalorder %v537, 0
        %vm554 = vcmp.ne.s32.totalorder %v538, 0
        %vm555 = vcmp.ne.s32.totalorder %v539, 0
        %vm556 = vcmp.ne.s32.totalorder %v540, 0
        %vm557 = vcmp.ne.s32.totalorder %v541, 0
        %vm558 = vcmp.ne.s32.totalorder %v542, 0
        %vm559 = vcmp.ne.s32.totalorder %v543, 0
        %vm560 = vcmp.ne.s32.totalorder %v544, 0
        %vm561 = vcmp.ne.s32.totalorder %v545, 0
        %vm562 = vcmp.ne.s32.totalorder %v546, 0
        %vm563 = vcmp.ne.s32.totalorder %v547, 0
        %vm564 = vcmp.ne.s32.totalorder %v532, 15
        %vm565 = vcmp.ne.s32.totalorder %v533, 15
        %vm566 = vcmp.ne.s32.totalorder %v534, 15
        %vm567 = vcmp.ne.s32.totalorder %v535, 15
        %vm568 = vcmp.ne.s32.totalorder %v536, 15
        %vm569 = vcmp.ne.s32.totalorder %v537, 15
        %vm570 = vcmp.ne.s32.totalorder %v538, 15
        %vm571 = vcmp.ne.s32.totalorder %v539, 15
        %vm572 = vcmp.ne.s32.totalorder %v540, 15
        %vm573 = vcmp.ne.s32.totalorder %v541, 15
        %vm574 = vcmp.ne.s32.totalorder %v542, 15
        %vm575 = vcmp.ne.s32.totalorder %v543, 15
        %vm576 = vcmp.ne.s32.totalorder %v544, 15
        %vm577 = vcmp.ne.s32.totalorder %v545, 15
        %vm578 = vcmp.ne.s32.totalorder %v546, 15
        %vm579 = vcmp.ne.s32.totalorder %v547, 15
        %v580 = vld [vmem:[#allocation5] sm:$0x1]
        %v582 = vperm.slane %v580, 0
        %v584 = vmul.f32 %v323, %v582
        %v585 = vmul.f32 %v324, %v582
        %v586 = vmul.f32 %v325, %v582
        %v587 = vmul.f32 %v326, %v582
        %v588 = vmul.f32 %v327, %v582
        %v589 = vmul.f32 %v328, %v582
        %v590 = vmul.f32 %v329, %v582
        %v591 = vmul.f32 %v330, %v582
        %v592 = vmul.f32 %v331, %v582
        %v593 = vmul.f32 %v332, %v582
        %v594 = vmul.f32 %v333, %v582
        %v595 = vmul.f32 %v334, %v582
        %v596 = vmul.f32 %v335, %v582
        %v597 = vmul.f32 %v336, %v582
        %v598 = vmul.f32 %v337, %v582
        %v599 = vmul.f32 %v338, %v582
        %v600 = vld [vmem:[%s2] sm:$0x1]
        %v602 = vperm.slane %v600, 0
        %v604 = vadd.f32 %v584, %v602
        %v605 = vadd.f32 %v585, %v602
        %v606 = vadd.f32 %v586, %v602
        %v607 = vadd.f32 %v587, %v602
        %v608 = vadd.f32 %v588, %v602
        %v609 = vadd.f32 %v589, %v602
        %v610 = vadd.f32 %v590, %v602
        %v611 = vadd.f32 %v591, %v602
        %v612 = vadd.f32 %v592, %v602
        %v613 = vadd.f32 %v593, %v602
        %v614 = vadd.f32 %v594, %v602
        %v615 = vadd.f32 %v595, %v602
        %v616 = vadd.f32 %v596, %v602
        %v617 = vadd.f32 %v597, %v602
        %v618 = vadd.f32 %v598, %v602
        %v619 = vadd.f32 %v599, %v602
        %v620 = vmax.f32 %v604, 0.0
        %v621 = vmax.f32 %v605, 0.0
        %v622 = vmax.f32 %v606, 0.0
        %v623 = vmax.f32 %v607, 0.0
        %v624 = vmax.f32 %v608, 0.0
        %v625 = vmax.f32 %v609, 0.0
        %v626 = vmax.f32 %v610, 0.0
        %v627 = vmax.f32 %v611, 0.0
        %v628 = vmax.f32 %v612, 0.0
        %v629 = vmax.f32 %v613, 0.0
        %v630 = vmax.f32 %v614, 0.0
        %v631 = vmax.f32 %v615, 0.0
        %v632 = vmax.f32 %v616, 0.0
        %v633 = vmax.f32 %v617, 0.0
        %v634 = vmax.f32 %v618, 0.0
        %v635 = vmax.f32 %v619, 0.0
        %v636 = vrot.slane %v620, 7
        %v637 = vrot.slane %v621, 7
        %v638 = vrot.slane %v622, 7
        %v639 = vrot.slane %v623, 7
        %v640 = vrot.slane %v624, 7
        %v641 = vrot.slane %v625, 7
        %v642 = vrot.slane %v626, 7
        %v643 = vrot.slane %v627, 7
        %v644 = vrot.slane %v628, 7
        %v645 = vrot.slane %v629, 7
        %v646 = vrot.slane %v630, 7
        %v647 = vrot.slane %v631, 7
        %v648 = vrot.slane %v632, 7
        %v649 = vrot.slane %v633, 7
        %v650 = vrot.slane %v634, 7
        %v651 = vrot.slane %v635, 7
        %vm652 = vcmp.lt.s32.totalorder %v340, 1
        %v653 = vsel %vm652, %v650, %v651
        %v654 = vsel %vm652, %v649, %v650
        %v655 = vsel %vm652, %v648, %v649
        %v656 = vsel %vm652, %v647, %v648
        %v657 = vsel %vm652, %v646, %v647
        %v658 = vsel %vm652, %v645, %v646
        %v659 = vsel %vm652, %v644, %v645
        %v660 = vsel %vm652, %v643, %v644
        %v661 = vsel %vm652, %v642, %v643
        %v662 = vsel %vm652, %v641, %v642
        %v663 = vsel %vm652, %v640, %v641
        %v664 = vsel %vm652, %v639, %v640
        %v665 = vsel %vm652, %v638, %v639
        %v666 = vsel %vm652, %v637, %v638
        %v667 = vsel %vm652, %v636, %v637
        %v668 = vsel %vm652, %v651, %v636
        %v669 = vsel %vm548, %v668, 0.0
        %v670 = vsel %vm549, %v667, 0.0
        %v671 = vsel %vm550, %v666, 0.0
        %v672 = vsel %vm551, %v665, 0.0
        %v673 = vsel %vm552, %v664, 0.0
        %v674 = vsel %vm553, %v663, 0.0
        %v675 = vsel %vm554, %v662, 0.0
        %v676 = vsel %vm555, %v661, 0.0
        %v677 = vsel %vm556, %v660, 0.0
        %v678 = vsel %vm557, %v659, 0.0
        %v679 = vsel %vm558, %v658, 0.0
        %v680 = vsel %vm559, %v657, 0.0
        %v681 = vsel %vm560, %v656, 0.0
        %v682 = vsel %vm561, %v655, 0.0
        %v683 = vsel %vm562, %v654, 0.0
        %v684 = vsel %vm563, %v653, 0.0
        %v685 = vrot.slane %v620, 1
        %v686 = vrot.slane %v621, 1
        %v687 = vrot.slane %v622, 1
        %v688 = vrot.slane %v623, 1
        %v689 = vrot.slane %v624, 1
        %v690 = vrot.slane %v625, 1
        %v691 = vrot.slane %v626, 1
        %v692 = vrot.slane %v627, 1
        %v693 = vrot.slane %v628, 1
        %v694 = vrot.slane %v629, 1
        %v695 = vrot.slane %v630, 1
        %v696 = vrot.slane %v631, 1
        %v697 = vrot.slane %v632, 1
        %v698 = vrot.slane %v633, 1
        %v699 = vrot.slane %v634, 1
        %v700 = vrot.slane %v635, 1
        %vm701 = vcmp.lt.s32.totalorder %v340, 7
        %v702 = vsel %vm701, %v699, %v700
        %v703 = vsel %vm701, %v698, %v699
        %v704 = vsel %vm701, %v697, %v698
        %v705 = vsel %vm701, %v696, %v697
        %v706 = vsel %vm701, %v695, %v696
        %v707 = vsel %vm701, %v694, %v695
        %v708 = vsel %vm701, %v693, %v694
        %v709 = vsel %vm701, %v692, %v693
        %v710 = vsel %vm701, %v691, %v692
        %v711 = vsel %vm701, %v690, %v691
        %v712 = vsel %vm701, %v689, %v690
        %v713 = vsel %vm701, %v688, %v689
        %v714 = vsel %vm701, %v687, %v688
        %v715 = vsel %vm701, %v686, %v687
        %v716 = vsel %vm701, %v685, %v686
        %v717 = vsel %vm701, %v700, %v685
        %v718 = vsel %vm564, %v716, 0.0
        %v719 = vsel %vm565, %v715, 0.0
        %v720 = vsel %vm566, %v714, 0.0
        %v721 = vsel %vm567, %v713, 0.0
        %v722 = vsel %vm568, %v712, 0.0
        %v723 = vsel %vm569, %v711, 0.0
        %v724 = vsel %vm570, %v710, 0.0
        %v725 = vsel %vm571, %v709, 0.0
        %v726 = vsel %vm572, %v708, 0.0
        %v727 = vsel %vm573, %v707, 0.0
        %v728 = vsel %vm574, %v706, 0.0
        %v729 = vsel %vm575, %v705, 0.0
        %v730 = vsel %vm576, %v704, 0.0
        %v731 = vsel %vm577, %v703, 0.0
        %v732 = vsel %vm578, %v702, 0.0
        %v733 = vsel %vm579, %v717, 0.0
        %v734 = vld [vmem:[#allocation7] sm:$0xff]
        %v735 = vld [vmem:[#allocation7 + $0x8] sm:$0xff]
        %v736 = vld [vmem:[#allocation7 + $0x10] sm:$0xff]
        %v737 = vld [vmem:[#allocation7 + $0x18] sm:$0xff]
        %v738 = vld [vmem:[#allocation7 + $0x20] sm:$0xff]
        %v739 = vld [vmem:[#allocation7 + $0x28] sm:$0xff]
        %v740 = vld [vmem:[#allocation7 + $0x30] sm:$0xff]
        %v741 = vld [vmem:[#allocation7 + $0x38] sm:$0xff]
        %v742 = vld [vmem:[#allocation7 + $0x40] sm:$0xff]
        %v743 = vld [vmem:[#allocation7 + $0x48] sm:$0xff]
        %v744 = vld [vmem:[#allocation7 + $0x50] sm:$0xff]
        %v745 = vld [vmem:[#allocation7 + $0x58] sm:$0xff]
        %v746 = vld [vmem:[#allocation7 + $0x60] sm:$0xff]
        %v747 = vld [vmem:[#allocation7 + $0x68] sm:$0xff]
        %v748 = vld [vmem:[#allocation7 + $0x70] sm:$0xff]
        %v749 = vld [vmem:[#allocation7 + $0x78] sm:$0xff]
        %v750 = vld [vmem:[#allocation7 + $0x80] sm:$0xff]
        %v751 = vld [vmem:[#allocation7 + $0x88] sm:$0xff]
        %v752 = vld [vmem:[#allocation7 + $0x90] sm:$0xff]
        %v753 = vld [vmem:[#allocation7 + $0x98] sm:$0xff]
        %v754 = vld [vmem:[#allocation7 + $0xa0] sm:$0xff]
        %v755 = vld [vmem:[#allocation7 + $0xa8] sm:$0xff]
        %v756 = vld [vmem:[#allocation7 + $0xb0] sm:$0xff]
        %v757 = vld [vmem:[#allocation7 + $0xb8] sm:$0xff]
        %v758 = vld [vmem:[#allocation7 + $0xc0] sm:$0xff]
        %v759 = vld [vmem:[#allocation7 + $0xc8] sm:$0xff]
        %v760 = vld [vmem:[#allocation7 + $0xd0] sm:$0xff]
        %v761 = vld [vmem:[#allocation7 + $0xd8] sm:$0xff]
        %v762 = vld [vmem:[#allocation7 + $0xe0] sm:$0xff]
        %v763 = vld [vmem:[#allocation7 + $0xe8] sm:$0xff]
        %v764 = vld [vmem:[#allocation7 + $0xf0] sm:$0xff]
        %v765 = vld [vmem:[#allocation7 + $0xf8] sm:$0xff]
        %v766 = vld [vmem:[#allocation7 + $0x100] sm:$0xff]
        %v767 = vld [vmem:[#allocation7 + $0x108] sm:$0xff]
        %v768 = vld [vmem:[#allocation7 + $0x110] sm:$0xff]
        %v769 = vld [vmem:[#allocation7 + $0x118] sm:$0xff]
        %v770 = vld [vmem:[#allocation7 + $0x120] sm:$0xff]
        %v771 = vld [vmem:[#allocation7 + $0x128] sm:$0xff]
        %v772 = vld [vmem:[#allocation7 + $0x130] sm:$0xff]
        %v773 = vld [vmem:[#allocation7 + $0x138] sm:$0xff]
        %v774 = vld [vmem:[#allocation7 + $0x140] sm:$0xff]
        %v775 = vld [vmem:[#allocation7 + $0x148] sm:$0xff]
        %v776 = vld [vmem:[#allocation7 + $0x150] sm:$0xff]
        %v777 = vld [vmem:[#allocation7 + $0x158] sm:$0xff]
        %v778 = vld [vmem:[#allocation7 + $0x160] sm:$0xff]
        %v779 = vld [vmem:[#allocation7 + $0x168] sm:$0xff]
        %v780 = vld [vmem:[#allocation7 + $0x170] sm:$0xff]
        %v781 = vld [vmem:[#allocation7 + $0x178] sm:$0xff]
        %v782 = vld [vmem:[%s4] sm:$0x1]
        %v784 = vperm.slane %v782, 0
        %786 = vmatpush.msra.mxu0 %v749
        %787 = vmatpush.msra.mxu0 %v748
        %788 = vmatpush.msra.mxu0 %v747
        %789 = vmatpush.msra.mxu0 %v746
        %790 = vmatpush.msra.mxu0 %v745
        %791 = vmatpush.msra.mxu0 %v744
        %792 = vmatpush.msra.mxu0 %v743
        %793 = vmatpush.msra.mxu0 %v742
        %794 = vmatpush.msra.mxu0 %v741
        %795 = vmatpush.msra.mxu0 %v740
        %796 = vmatpush.msra.mxu0 %v739
        %797 = vmatpush.msra.mxu0 %v738
        %798 = vmatpush.msra.mxu0 %v737
        %799 = vmatpush.msra.mxu0 %v736
        %800 = vmatpush.msra.mxu0 %v735
        %801 = vmatpush.msra.mxu0 %v734
        %802 = vmatmul.f32.gmra.mxu0 %v669
        %v803 = vpop.f32.mrf.mxu0
        %v804 = vadd.f32 %v784, %v803
        %805 = vmatmul.f32.gmra.mxu0 %v670
        %v806 = vpop.f32.mrf.mxu0
        %v807 = vadd.f32 %v784, %v806
        %808 = vmatmul.f32.gmra.mxu0 %v671
        %v809 = vpop.f32.mrf.mxu0
        %v810 = vadd.f32 %v784, %v809
        %811 = vmatmul.f32.gmra.mxu0 %v672
        %v812 = vpop.f32.mrf.mxu0
        %v813 = vadd.f32 %v784, %v812
        %814 = vmatmul.f32.gmra.mxu0 %v673
        %v815 = vpop.f32.mrf.mxu0
        %v816 = vadd.f32 %v784, %v815
        %817 = vmatmul.f32.gmra.mxu0 %v674
        %v818 = vpop.f32.mrf.mxu0
        %v819 = vadd.f32 %v784, %v818
        %820 = vmatmul.f32.gmra.mxu0 %v675
        %v821 = vpop.f32.mrf.mxu0
        %v822 = vadd.f32 %v784, %v821
        %823 = vmatmul.f32.gmra.mxu0 %v676
        %v824 = vpop.f32.mrf.mxu0
        %v825 = vadd.f32 %v784, %v824
        %826 = vmatmul.f32.gmra.mxu0 %v677
        %v827 = vpop.f32.mrf.mxu0
        %v828 = vadd.f32 %v784, %v827
        %829 = vmatmul.f32.gmra.mxu0 %v678
        %v830 = vpop.f32.mrf.mxu0
        %v831 = vadd.f32 %v784, %v830
        %832 = vmatmul.f32.gmra.mxu0 %v679
        %v833 = vpop.f32.mrf.mxu0
        %v834 = vadd.f32 %v784, %v833
        %835 = vmatmul.f32.gmra.mxu0 %v680
        %v836 = vpop.f32.mrf.mxu0
        %v837 = vadd.f32 %v784, %v836
        %838 = vmatmul.f32.gmra.mxu0 %v681
        %v839 = vpop.f32.mrf.mxu0
        %v840 = vadd.f32 %v784, %v839
        %841 = vmatmul.f32.gmra.mxu0 %v682
        %v842 = vpop.f32.mrf.mxu0
        %v843 = vadd.f32 %v784, %v842
        %844 = vmatmul.f32.gmra.mxu0 %v683
        %v845 = vpop.f32.mrf.mxu0
        %v846 = vadd.f32 %v784, %v845
        %847 = vmatmul.f32.gmra.mxu0 %v684
        %v848 = vpop.f32.mrf.mxu0
        %v849 = vadd.f32 %v784, %v848
        %850 = vdwg.mxu0
        %851 = vmatpush.msra.mxu0 %v765
        %852 = vmatpush.msra.mxu0 %v764
        %853 = vmatpush.msra.mxu0 %v763
        %854 = vmatpush.msra.mxu0 %v762
        %855 = vmatpush.msra.mxu0 %v761
        %856 = vmatpush.msra.mxu0 %v760
        %857 = vmatpush.msra.mxu0 %v759
        %858 = vmatpush.msra.mxu0 %v758
        %859 = vmatpush.msra.mxu0 %v757
        %860 = vmatpush.msra.mxu0 %v756
        %861 = vmatpush.msra.mxu0 %v755
        %862 = vmatpush.msra.mxu0 %v754
        %863 = vmatpush.msra.mxu0 %v753
        %864 = vmatpush.msra.mxu0 %v752
        %865 = vmatpush.msra.mxu0 %v751
        %866 = vmatpush.msra.mxu0 %v750
        %867 = vmatmul.f32.gmra.mxu0 %v620
        %v868 = vpop.f32.mrf.mxu0
        %v869 = vadd.f32 %v804, %v868
        %870 = vmatmul.f32.gmra.mxu0 %v621
        %v871 = vpop.f32.mrf.mxu0
        %v872 = vadd.f32 %v807, %v871
        %873 = vmatmul.f32.gmra.mxu0 %v622
        %v874 = vpop.f32.mrf.mxu0
        %v875 = vadd.f32 %v810, %v874
        %876 = vmatmul.f32.gmra.mxu0 %v623
        %v877 = vpop.f32.mrf.mxu0
        %v878 = vadd.f32 %v813, %v877
        %879 = vmatmul.f32.gmra.mxu0 %v624
        %v880 = vpop.f32.mrf.mxu0
        %v881 = vadd.f32 %v816, %v880
        %882 = vmatmul.f32.gmra.mxu0 %v625
        %v883 = vpop.f32.mrf.mxu0
        %v884 = vadd.f32 %v819, %v883
        %885 = vmatmul.f32.gmra.mxu0 %v626
        %v886 = vpop.f32.mrf.mxu0
        %v887 = vadd.f32 %v822, %v886
        %888 = vmatmul.f32.gmra.mxu0 %v627
        %v889 = vpop.f32.mrf.mxu0
        %v890 = vadd.f32 %v825, %v889
        %891 = vmatmul.f32.gmra.mxu0 %v628
        %v892 = vpop.f32.mrf.mxu0
        %v893 = vadd.f32 %v828, %v892
        %894 = vmatmul.f32.gmra.mxu0 %v629
        %v895 = vpop.f32.mrf.mxu0
        %v896 = vadd.f32 %v831, %v895
        %897 = vmatmul.f32.gmra.mxu0 %v630
        %v898 = vpop.f32.mrf.mxu0
        %v899 = vadd.f32 %v834, %v898
        %900 = vmatmul.f32.gmra.mxu0 %v631
        %v901 = vpop.f32.mrf.mxu0
        %v902 = vadd.f32 %v837, %v901
        %903 = vmatmul.f32.gmra.mxu0 %v632
        %v904 = vpop.f32.mrf.mxu0
        %v905 = vadd.f32 %v840, %v904
        %906 = vmatmul.f32.gmra.mxu0 %v633
        %v907 = vpop.f32.mrf.mxu0
        %v908 = vadd.f32 %v843, %v907
        %909 = vmatmul.f32.gmra.mxu0 %v634
        %v910 = vpop.f32.mrf.mxu0
        %v911 = vadd.f32 %v846, %v910
        %912 = vmatmul.f32.gmra.mxu0 %v635
        %v913 = vpop.f32.mrf.mxu0
        %v914 = vadd.f32 %v849, %v913
        %915 = vdwg.mxu0
        %916 = vmatpush.msra.mxu0 %v781
        %917 = vmatpush.msra.mxu0 %v780
        %918 = vmatpush.msra.mxu0 %v779
        %919 = vmatpush.msra.mxu0 %v778
        %920 = vmatpush.msra.mxu0 %v777
        %921 = vmatpush.msra.mxu0 %v776
        %922 = vmatpush.msra.mxu0 %v775
        %923 = vmatpush.msra.mxu0 %v774
        %924 = vmatpush.msra.mxu0 %v773
        %925 = vmatpush.msra.mxu0 %v772
        %926 = vmatpush.msra.mxu0 %v771
        %927 = vmatpush.msra.mxu0 %v770
        %928 = vmatpush.msra.mxu0 %v769
        %929 = vmatpush.msra.mxu0 %v768
        %930 = vmatpush.msra.mxu0 %v767
        %931 = vmatpush.msra.mxu0 %v766
        %932 = vmatmul.f32.gmra.mxu0 %v718
        %v933 = vpop.f32.mrf.mxu0
        %v934 = vadd.f32 %v869, %v933
        %935 = vmatmul.f32.gmra.mxu0 %v719
        %v936 = vpop.f32.mrf.mxu0
        %v937 = vadd.f32 %v872, %v936
        %938 = vmatmul.f32.gmra.mxu0 %v720
        %v939 = vpop.f32.mrf.mxu0
        %v940 = vadd.f32 %v875, %v939
        %941 = vmatmul.f32.gmra.mxu0 %v721
        %v942 = vpop.f32.mrf.mxu0
        %v943 = vadd.f32 %v878, %v942
        %944 = vmatmul.f32.gmra.mxu0 %v722
        %v945 = vpop.f32.mrf.mxu0
        %v946 = vadd.f32 %v881, %v945
        %947 = vmatmul.f32.gmra.mxu0 %v723
        %v948 = vpop.f32.mrf.mxu0
        %v949 = vadd.f32 %v884, %v948
        %950 = vmatmul.f32.gmra.mxu0 %v724
        %v951 = vpop.f32.mrf.mxu0
        %v952 = vadd.f32 %v887, %v951
        %953 = vmatmul.f32.gmra.mxu0 %v725
        %v954 = vpop.f32.mrf.mxu0
        %v955 = vadd.f32 %v890, %v954
        %956 = vmatmul.f32.gmra.mxu0 %v726
        %v957 = vpop.f32.mrf.mxu0
        %v958 = vadd.f32 %v893, %v957
        %959 = vmatmul.f32.gmra.mxu0 %v727
        %v960 = vpop.f32.mrf.mxu0
        %v961 = vadd.f32 %v896, %v960
        %962 = vmatmul.f32.gmra.mxu0 %v728
        %v963 = vpop.f32.mrf.mxu0
        %v964 = vadd.f32 %v899, %v963
        %965 = vmatmul.f32.gmra.mxu0 %v729
        %v966 = vpop.f32.mrf.mxu0
        %v967 = vadd.f32 %v902, %v966
        %968 = vmatmul.f32.gmra.mxu0 %v730
        %v969 = vpop.f32.mrf.mxu0
        %v970 = vadd.f32 %v905, %v969
        %971 = vmatmul.f32.gmra.mxu0 %v731
        %v972 = vpop.f32.mrf.mxu0
        %v973 = vadd.f32 %v908, %v972
        %974 = vmatmul.f32.gmra.mxu0 %v732
        %v975 = vpop.f32.mrf.mxu0
        %v976 = vadd.f32 %v911, %v975
        %977 = vmatmul.f32.gmra.mxu0 %v733
        %v978 = vpop.f32.mrf.mxu0
        %v979 = vadd.f32 %v914, %v978
        %980 = vdwg.mxu0
        %v981 = vmax.f32 %v934, 0.0
        %v982 = vmax.f32 %v937, 0.0
        %v983 = vmax.f32 %v940, 0.0
        %v984 = vmax.f32 %v943, 0.0
        %v985 = vmax.f32 %v946, 0.0
        %v986 = vmax.f32 %v949, 0.0
        %v987 = vmax.f32 %v952, 0.0
        %v988 = vmax.f32 %v955, 0.0
        %v989 = vmax.f32 %v958, 0.0
        %v990 = vmax.f32 %v961, 0.0
        %v991 = vmax.f32 %v964, 0.0
        %v992 = vmax.f32 %v967, 0.0
        %v993 = vmax.f32 %v970, 0.0
        %v994 = vmax.f32 %v973, 0.0
        %v995 = vmax.f32 %v976, 0.0
        %v996 = vmax.f32 %v979, 0.0
        %v997 = vrot.slane %v981, 7
        %v998 = vrot.slane %v982, 7
        %v999 = vrot.slane %v983, 7
        %v1000 = vrot.slane %v984, 7
        %v1001 = vrot.slane %v985, 7
        %v1002 = vrot.slane %v986, 7
        %v1003 = vrot.slane %v987, 7
        %v1004 = vrot.slane %v988, 7
        %v1005 = vrot.slane %v989, 7
        %v1006 = vrot.slane %v990, 7
        %v1007 = vrot.slane %v991, 7
        %v1008 = vrot.slane %v992, 7
        %v1009 = vrot.slane %v993, 7
        %v1010 = vrot.slane %v994, 7
        %v1011 = vrot.slane %v995, 7
        %v1012 = vrot.slane %v996, 7
        %v1013 = vsel %vm652, %v1011, %v1012
        %v1014 = vsel %vm652, %v1010, %v1011
        %v1015 = vsel %vm652, %v1009, %v1010
        %v1016 = vsel %vm652, %v1008, %v1009
        %v1017 = vsel %vm652, %v1007, %v1008
        %v1018 = vsel %vm652, %v1006, %v1007
        %v1019 = vsel %vm652, %v1005, %v1006
        %v1020 = vsel %vm652, %v1004, %v1005
        %v1021 = vsel %vm652, %v1003, %v1004
        %v1022 = vsel %vm652, %v1002, %v1003
        %v1023 = vsel %vm652, %v1001, %v1002
        %v1024 = vsel %vm652, %v1000, %v1001
        %v1025 = vsel %vm652, %v999, %v1000
        %v1026 = vsel %vm652, %v998, %v999
        %v1027 = vsel %vm652, %v997, %v998
        %v1028 = vsel %vm652, %v1012, %v997
        %v1029 = vsel %vm548, %v1028, 0.0
        %v1030 = vsel %vm549, %v1027, 0.0
        %v1031 = vsel %vm550, %v1026, 0.0
        %v1032 = vsel %vm551, %v1025, 0.0
        %v1033 = vsel %vm552, %v1024, 0.0
        %v1034 = vsel %vm553, %v1023, 0.0
        %v1035 = vsel %vm554, %v1022, 0.0
        %v1036 = vsel %vm555, %v1021, 0.0
        %v1037 = vsel %vm556, %v1020, 0.0
        %v1038 = vsel %vm557, %v1019, 0.0
        %v1039 = vsel %vm558, %v1018, 0.0
        %v1040 = vsel %vm559, %v1017, 0.0
        %v1041 = vsel %vm560, %v1016, 0.0
        %v1042 = vsel %vm561, %v1015, 0.0
        %v1043 = vsel %vm562, %v1014, 0.0
        %v1044 = vsel %vm563, %v1013, 0.0
        %v1045 = vrot.slane %v981, 1
        %v1046 = vrot.slane %v982, 1
        %v1047 = vrot.slane %v983, 1
        %v1048 = vrot.slane %v984, 1
        %v1049 = vrot.slane %v985, 1
        %v1050 = vrot.slane %v986, 1
        %v1051 = vrot.slane %v987, 1
        %v1052 = vrot.slane %v988, 1
        %v1053 = vrot.slane %v989, 1
        %v1054 = vrot.slane %v990, 1
        %v1055 = vrot.slane %v991, 1
        %v1056 = vrot.slane %v992, 1
        %v1057 = vrot.slane %v993, 1
        %v1058 = vrot.slane %v994, 1
        %v1059 = vrot.slane %v995, 1
        %v1060 = vrot.slane %v996, 1
        %v1061 = vsel %vm701, %v1059, %v1060
        %v1062 = vsel %vm701, %v1058, %v1059
        %v1063 = vsel %vm701, %v1057, %v1058
        %v1064 = vsel %vm701, %v1056, %v1057
        %v1065 = vsel %vm701, %v1055, %v1056
        %v1066 = vsel %vm701, %v1054, %v1055
        %v1067 = vsel %vm701, %v1053, %v1054
        %v1068 = vsel %vm701, %v1052, %v1053
        %v1069 = vsel %vm701, %v1051, %v1052
        %v1070 = vsel %vm701, %v1050, %v1051
        %v1071 = vsel %vm701, %v1049, %v1050
        %v1072 = vsel %vm701, %v1048, %v1049
        %v1073 = vsel %vm701, %v1047, %v1048
        %v1074 = vsel %vm701, %v1046, %v1047
        %v1075 = vsel %vm701, %v1045, %v1046
        %v1076 = vsel %vm701, %v1060, %v1045
        %v1077 = vsel %vm564, %v1075, 0.0
        %v1078 = vsel %vm565, %v1074, 0.0
        %v1079 = vsel %vm566, %v1073, 0.0
        %v1080 = vsel %vm567, %v1072, 0.0
        %v1081 = vsel %vm568, %v1071, 0.0
        %v1082 = vsel %vm569, %v1070, 0.0
        %v1083 = vsel %vm570, %v1069, 0.0
        %v1084 = vsel %vm571, %v1068, 0.0
        %v1085 = vsel %vm572, %v1067, 0.0
        %v1086 = vsel %vm573, %v1066, 0.0
        %v1087 = vsel %vm574, %v1065, 0.0
        %v1088 = vsel %vm575, %v1064, 0.0
        %v1089 = vsel %vm576, %v1063, 0.0
        %v1090 = vsel %vm577, %v1062, 0.0
        %v1091 = vsel %vm578, %v1061, 0.0
        %v1092 = vsel %vm579, %v1076, 0.0
        %v1093 = vld [vmem:[#allocation8] sm:$0xff]
        %v1094 = vld [vmem:[#allocation8 + $0x8] sm:$0xff]
        %v1095 = vld [vmem:[#allocation8 + $0x10] sm:$0xff]
        %v1096 = vld [vmem:[#allocation8 + $0x18] sm:$0xff]
        %v1097 = vld [vmem:[#allocation8 + $0x20] sm:$0xff]
        %v1098 = vld [vmem:[#allocation8 + $0x28] sm:$0xff]
        %v1099 = vld [vmem:[#allocation8 + $0x30] sm:$0xff]
        %v1100 = vld [vmem:[#allocation8 + $0x38] sm:$0xff]
        %v1101 = vld [vmem:[#allocation8 + $0x40] sm:$0xff]
        %v1102 = vld [vmem:[#allocation8 + $0x48] sm:$0xff]
        %v1103 = vld [vmem:[#allocation8 + $0x50] sm:$0xff]
        %v1104 = vld [vmem:[#allocation8 + $0x58] sm:$0xff]
        %v1105 = vld [vmem:[#allocation8 + $0x60] sm:$0xff]
        %v1106 = vld [vmem:[#allocation8 + $0x68] sm:$0xff]
        %v1107 = vld [vmem:[#allocation8 + $0x70] sm:$0xff]
        %v1108 = vld [vmem:[#allocation8 + $0x78] sm:$0xff]
        %v1109 = vld [vmem:[#allocation8 + $0x80] sm:$0xff]
        %v1110 = vld [vmem:[#allocation8 + $0x88] sm:$0xff]
        %v1111 = vld [vmem:[#allocation8 + $0x90] sm:$0xff]
        %v1112 = vld [vmem:[#allocation8 + $0x98] sm:$0xff]
        %v1113 = vld [vmem:[#allocation8 + $0xa0] sm:$0xff]
        %v1114 = vld [vmem:[#allocation8 + $0xa8] sm:$0xff]
        %v1115 = vld [vmem:[#allocation8 + $0xb0] sm:$0xff]
        %v1116 = vld [vmem:[#allocation8 + $0xb8] sm:$0xff]
        %v1117 = vld [vmem:[#allocation8 + $0xc0] sm:$0xff]
        %v1118 = vld [vmem:[#allocation8 + $0xc8] sm:$0xff]
        %v1119 = vld [vmem:[#allocation8 + $0xd0] sm:$0xff]
        %v1120 = vld [vmem:[#allocation8 + $0xd8] sm:$0xff]
        %v1121 = vld [vmem:[#allocation8 + $0xe0] sm:$0xff]
        %v1122 = vld [vmem:[#allocation8 + $0xe8] sm:$0xff]
        %v1123 = vld [vmem:[#allocation8 + $0xf0] sm:$0xff]
        %v1124 = vld [vmem:[#allocation8 + $0xf8] sm:$0xff]
        %v1125 = vld [vmem:[#allocation8 + $0x100] sm:$0xff]
        %v1126 = vld [vmem:[#allocation8 + $0x108] sm:$0xff]
        %v1127 = vld [vmem:[#allocation8 + $0x110] sm:$0xff]
        %v1128 = vld [vmem:[#allocation8 + $0x118] sm:$0xff]
        %v1129 = vld [vmem:[#allocation8 + $0x120] sm:$0xff]
        %v1130 = vld [vmem:[#allocation8 + $0x128] sm:$0xff]
        %v1131 = vld [vmem:[#allocation8 + $0x130] sm:$0xff]
        %v1132 = vld [vmem:[#allocation8 + $0x138] sm:$0xff]
        %v1133 = vld [vmem:[#allocation8 + $0x140] sm:$0xff]
        %v1134 = vld [vmem:[#allocation8 + $0x148] sm:$0xff]
        %v1135 = vld [vmem:[#allocation8 + $0x150] sm:$0xff]
        %v1136 = vld [vmem:[#allocation8 + $0x158] sm:$0xff]
        %v1137 = vld [vmem:[#allocation8 + $0x160] sm:$0xff]
        %v1138 = vld [vmem:[#allocation8 + $0x168] sm:$0xff]
        %v1139 = vld [vmem:[#allocation8 + $0x170] sm:$0xff]
        %v1140 = vld [vmem:[#allocation8 + $0x178] sm:$0xff]
        %1141 = vmatpush.msra.mxu0 %v1108
        %1142 = vmatpush.msra.mxu0 %v1107
        %1143 = vmatpush.msra.mxu0 %v1106
        %1144 = vmatpush.msra.mxu0 %v1105
        %1145 = vmatpush.msra.mxu0 %v1104
        %1146 = vmatpush.msra.mxu0 %v1103
        %1147 = vmatpush.msra.mxu0 %v1102
        %1148 = vmatpush.msra.mxu0 %v1101
        %1149 = vmatpush.msra.mxu0 %v1100
        %1150 = vmatpush.msra.mxu0 %v1099
        %1151 = vmatpush.msra.mxu0 %v1098
        %1152 = vmatpush.msra.mxu0 %v1097
        %1153 = vmatpush.msra.mxu0 %v1096
        %1154 = vmatpush.msra.mxu0 %v1095
        %1155 = vmatpush.msra.mxu0 %v1094
        %1156 = vmatpush.msra.mxu0 %v1093
        %1157 = vmatmul.f32.gmra.mxu0 %v1029
        %v1158 = vpop.f32.mrf.mxu0
        %v1159 = vadd.f32 0.0, %v1158
        %1160 = vmatmul.f32.gmra.mxu0 %v1030
        %v1161 = vpop.f32.mrf.mxu0
        %v1162 = vadd.f32 0.0, %v1161
        %1163 = vmatmul.f32.gmra.mxu0 %v1031
        %v1164 = vpop.f32.mrf.mxu0
        %v1165 = vadd.f32 0.0, %v1164
        %1166 = vmatmul.f32.gmra.mxu0 %v1032
        %v1167 = vpop.f32.mrf.mxu0
        %v1168 = vadd.f32 0.0, %v1167
        %1169 = vmatmul.f32.gmra.mxu0 %v1033
        %v1170 = vpop.f32.mrf.mxu0
        %v1171 = vadd.f32 0.0, %v1170
        %1172 = vmatmul.f32.gmra.mxu0 %v1034
        %v1173 = vpop.f32.mrf.mxu0
        %v1174 = vadd.f32 0.0, %v1173
        %1175 = vmatmul.f32.gmra.mxu0 %v1035
        %v1176 = vpop.f32.mrf.mxu0
        %v1177 = vadd.f32 0.0, %v1176
        %1178 = vmatmul.f32.gmra.mxu0 %v1036
        %v1179 = vpop.f32.mrf.mxu0
        %v1180 = vadd.f32 0.0, %v1179
        %1181 = vmatmul.f32.gmra.mxu0 %v1037
        %v1182 = vpop.f32.mrf.mxu0
        %v1183 = vadd.f32 0.0, %v1182
        %1184 = vmatmul.f32.gmra.mxu0 %v1038
        %v1185 = vpop.f32.mrf.mxu0
        %v1186 = vadd.f32 0.0, %v1185
        %1187 = vmatmul.f32.gmra.mxu0 %v1039
        %v1188 = vpop.f32.mrf.mxu0
        %v1189 = vadd.f32 0.0, %v1188
        %1190 = vmatmul.f32.gmra.mxu0 %v1040
        %v1191 = vpop.f32.mrf.mxu0
        %v1192 = vadd.f32 0.0, %v1191
        %1193 = vmatmul.f32.gmra.mxu0 %v1041
        %v1194 = vpop.f32.mrf.mxu0
        %v1195 = vadd.f32 0.0, %v1194
        %1196 = vmatmul.f32.gmra.mxu0 %v1042
        %v1197 = vpop.f32.mrf.mxu0
        %v1198 = vadd.f32 0.0, %v1197
        %1199 = vmatmul.f32.gmra.mxu0 %v1043
        %v1200 = vpop.f32.mrf.mxu0
        %v1201 = vadd.f32 0.0, %v1200
        %1202 = vmatmul.f32.gmra.mxu0 %v1044
        %v1203 = vpop.f32.mrf.mxu0
        %v1204 = vadd.f32 0.0, %v1203
        %1205 = vdwg.mxu0
        %1206 = vmatpush.msra.mxu0 %v1124
        %1207 = vmatpush.msra.mxu0 %v1123
        %1208 = vmatpush.msra.mxu0 %v1122
        %1209 = vmatpush.msra.mxu0 %v1121
        %1210 = vmatpush.msra.mxu0 %v1120
        %1211 = vmatpush.msra.mxu0 %v1119
        %1212 = vmatpush.msra.mxu0 %v1118
        %1213 = vmatpush.msra.mxu0 %v1117
        %1214 = vmatpush.msra.mxu0 %v1116
        %1215 = vmatpush.msra.mxu0 %v1115
        %1216 = vmatpush.msra.mxu0 %v1114
        %1217 = vmatpush.msra.mxu0 %v1113
        %1218 = vmatpush.msra.mxu0 %v1112
        %1219 = vmatpush.msra.mxu0 %v1111
        %1220 = vmatpush.msra.mxu0 %v1110
        %1221 = vmatpush.msra.mxu0 %v1109
        %1222 = vmatmul.f32.gmra.mxu0 %v981
        %v1223 = vpop.f32.mrf.mxu0
        %v1224 = vadd.f32 %v1159, %v1223
        %1225 = vmatmul.f32.gmra.mxu0 %v982
        %v1226 = vpop.f32.mrf.mxu0
        %v1227 = vadd.f32 %v1162, %v1226
        %1228 = vmatmul.f32.gmra.mxu0 %v983
        %v1229 = vpop.f32.mrf.mxu0
        %v1230 = vadd.f32 %v1165, %v1229
        %1231 = vmatmul.f32.gmra.mxu0 %v984
        %v1232 = vpop.f32.mrf.mxu0
        %v1233 = vadd.f32 %v1168, %v1232
        %1234 = vmatmul.f32.gmra.mxu0 %v985
        %v1235 = vpop.f32.mrf.mxu0
        %v1236 = vadd.f32 %v1171, %v1235
        %1237 = vmatmul.f32.gmra.mxu0 %v986
        %v1238 = vpop.f32.mrf.mxu0
        %v1239 = vadd.f32 %v1174, %v1238
        %1240 = vmatmul.f32.gmra.mxu0 %v987
        %v1241 = vpop.f32.mrf.mxu0
        %v1242 = vadd.f32 %v1177, %v1241
        %1243 = vmatmul.f32.gmra.mxu0 %v988
        %v1244 = vpop.f32.mrf.mxu0
        %v1245 = vadd.f32 %v1180, %v1244
        %1246 = vmatmul.f32.gmra.mxu0 %v989
        %v1247 = vpop.f32.mrf.mxu0
        %v1248 = vadd.f32 %v1183, %v1247
        %1249 = vmatmul.f32.gmra.mxu0 %v990
        %v1250 = vpop.f32.mrf.mxu0
        %v1251 = vadd.f32 %v1186, %v1250
        %1252 = vmatmul.f32.gmra.mxu0 %v991
        %v1253 = vpop.f32.mrf.mxu0
        %v1254 = vadd.f32 %v1189, %v1253
        %1255 = vmatmul.f32.gmra.mxu0 %v992
        %v1256 = vpop.f32.mrf.mxu0
        %v1257 = vadd.f32 %v1192, %v1256
        %1258 = vmatmul.f32.gmra.mxu0 %v993
        %v1259 = vpop.f32.mrf.mxu0
        %v1260 = vadd.f32 %v1195, %v1259
        %1261 = vmatmul.f32.gmra.mxu0 %v994
        %v1262 = vpop.f32.mrf.mxu0
        %v1263 = vadd.f32 %v1198, %v1262
        %1264 = vmatmul.f32.gmra.mxu0 %v995
        %v1265 = vpop.f32.mrf.mxu0
        %v1266 = vadd.f32 %v1201, %v1265
        %1267 = vmatmul.f32.gmra.mxu0 %v996
        %v1268 = vpop.f32.mrf.mxu0
        %v1269 = vadd.f32 %v1204, %v1268
        %1270 = vdwg.mxu0
        %1271 = vmatpush.msra.mxu0 %v1140
        %1272 = vmatpush.msra.mxu0 %v1139
        %1273 = vmatpush.msra.mxu0 %v1138
        %1274 = vmatpush.msra.mxu0 %v1137
        %1275 = vmatpush.msra.mxu0 %v1136
        %1276 = vmatpush.msra.mxu0 %v1135
        %1277 = vmatpush.msra.mxu0 %v1134
        %1278 = vmatpush.msra.mxu0 %v1133
        %1279 = vmatpush.msra.mxu0 %v1132
        %1280 = vmatpush.msra.mxu0 %v1131
        %1281 = vmatpush.msra.mxu0 %v1130
        %1282 = vmatpush.msra.mxu0 %v1129
        %1283 = vmatpush.msra.mxu0 %v1128
        %1284 = vmatpush.msra.mxu0 %v1127
        %1285 = vmatpush.msra.mxu0 %v1126
        %1286 = vmatpush.msra.mxu0 %v1125
        %1287 = vmatmul.f32.gmra.mxu0 %v1077
        %v1288 = vpop.f32.mrf.mxu0
        %v1289 = vadd.f32 %v1224, %v1288
        %1290 = vmatmul.f32.gmra.mxu0 %v1078
        %v1291 = vpop.f32.mrf.mxu0
        %v1292 = vadd.f32 %v1227, %v1291
        %1293 = vmatmul.f32.gmra.mxu0 %v1079
        %v1294 = vpop.f32.mrf.mxu0
        %v1295 = vadd.f32 %v1230, %v1294
        %1296 = vmatmul.f32.gmra.mxu0 %v1080
        %v1297 = vpop.f32.mrf.mxu0
        %v1298 = vadd.f32 %v1233, %v1297
        %1299 = vmatmul.f32.gmra.mxu0 %v1081
        %v1300 = vpop.f32.mrf.mxu0
        %v1301 = vadd.f32 %v1236, %v1300
        %1302 = vmatmul.f32.gmra.mxu0 %v1082
        %v1303 = vpop.f32.mrf.mxu0
        %v1304 = vadd.f32 %v1239, %v1303
        %1305 = vmatmul.f32.gmra.mxu0 %v1083
        %v1306 = vpop.f32.mrf.mxu0
        %v1307 = vadd.f32 %v1242, %v1306
        %1308 = vmatmul.f32.gmra.mxu0 %v1084
        %v1309 = vpop.f32.mrf.mxu0
        %v1310 = vadd.f32 %v1245, %v1309
        %1311 = vmatmul.f32.gmra.mxu0 %v1085
        %v1312 = vpop.f32.mrf.mxu0
        %v1313 = vadd.f32 %v1248, %v1312
        %1314 = vmatmul.f32.gmra.mxu0 %v1086
        %v1315 = vpop.f32.mrf.mxu0
        %v1316 = vadd.f32 %v1251, %v1315
        %1317 = vmatmul.f32.gmra.mxu0 %v1087
        %v1318 = vpop.f32.mrf.mxu0
        %v1319 = vadd.f32 %v1254, %v1318
        %1320 = vmatmul.f32.gmra.mxu0 %v1088
        %v1321 = vpop.f32.mrf.mxu0
        %v1322 = vadd.f32 %v1257, %v1321
        %1323 = vmatmul.f32.gmra.mxu0 %v1089
        %v1324 = vpop.f32.mrf.mxu0
        %v1325 = vadd.f32 %v1260, %v1324
        %1326 = vmatmul.f32.gmra.mxu0 %v1090
        %v1327 = vpop.f32.mrf.mxu0
        %v1328 = vadd.f32 %v1263, %v1327
        %1329 = vmatmul.f32.gmra.mxu0 %v1091
        %v1330 = vpop.f32.mrf.mxu0
        %v1331 = vadd.f32 %v1266, %v1330
        %1332 = vmatmul.f32.gmra.mxu0 %v1092
        %v1333 = vpop.f32.mrf.mxu0
        %v1334 = vadd.f32 %v1269, %v1333
        %1335 = vdwg.mxu0
        %v1336 = vadd.f32 %v323, %v1289
        %v1337 = vadd.f32 %v324, %v1292
        %v1338 = vadd.f32 %v325, %v1295
        %v1339 = vadd.f32 %v326, %v1298
        %v1340 = vadd.f32 %v327, %v1301
        %v1341 = vadd.f32 %v328, %v1304
        %v1342 = vadd.f32 %v329, %v1307
        %v1343 = vadd.f32 %v330, %v1310
        %v1344 = vadd.f32 %v331, %v1313
        %v1345 = vadd.f32 %v332, %v1316
        %v1346 = vadd.f32 %v333, %v1319
        %v1347 = vadd.f32 %v334, %v1322
        %v1348 = vadd.f32 %v335, %v1325
        %v1349 = vadd.f32 %v336, %v1328
        %v1350 = vadd.f32 %v337, %v1331
        %v1351 = vadd.f32 %v338, %v1334
        %1352 = vst [vmem:[%s320] sm:$0xff] %v1336
        %1353 = vst [vmem:[%s320 + $0x8] sm:$0xff] %v1337
        %1354 = vst [vmem:[%s320 + $0x10] sm:$0xff] %v1338
        %1355 = vst [vmem:[%s320 + $0x18] sm:$0xff] %v1339
        %1356 = vst [vmem:[%s320 + $0x20] sm:$0xff] %v1340
        %1357 = vst [vmem:[%s320 + $0x28] sm:$0xff] %v1341
        %1358 = vst [vmem:[%s320 + $0x30] sm:$0xff] %v1342
        %1359 = vst [vmem:[%s320 + $0x38] sm:$0xff] %v1343
        %1360 = vst [vmem:[%s320 + $0x40] sm:$0xff] %v1344
        %1361 = vst [vmem:[%s320 + $0x48] sm:$0xff] %v1345
        %1362 = vst [vmem:[%s320 + $0x50] sm:$0xff] %v1346
        %1363 = vst [vmem:[%s320 + $0x58] sm:$0xff] %v1347
        %1364 = vst [vmem:[%s320 + $0x60] sm:$0xff] %v1348
        %1365 = vst [vmem:[%s320 + $0x68] sm:$0xff] %v1349
        %1366 = vst [vmem:[%s320 + $0x70] sm:$0xff] %v1350
        %1367 = vst [vmem:[%s320 + $0x78] sm:$0xff] %v1351
        %s1368 = sand.u32 %s164, 1
        %s1369 = scalar_lea.sflag [#allocation4], %s1368
        %s1370 = sand.u32 %s164, 1
        %s1371 = smul.addr %s1370, 128
        %s1372 = scalar_lea.vmem [#allocation10], %s1371
        // Predicated region
        $region61: #{tpu_custom_call.1} parent=43 // pred_check
          %p1373 = pneg %p174
        $region62: #{tpu_custom_call.1} parent=43 // pred_check_branch
          %1375 = sbr.rel (%p1373) target = $region64
        $region63: #{tpu_custom_call.1} parent=43 // pred_region
          %s1376 = smul.u32 8, %s25
          %1378 = vsyncadd %s1369, 0
          %s1379 = smul.addr %s1376, 2
          %s1380 = smul.addr %s1379, 8
          %s1381 = scalar_lea.hbm %s6, %s1380
          %s1382 = sshll.u32 %s1372, 4
          %s1383 = int_to_ptr.vmem [resolvable:$true] %s1382
          %s1384 = sshll.u32 %s1381, 4
          %s1385 = int_to_ptr.hbm [resolvable:$true] %s1384
          %1390 = dma.vmem_to_hbm [thread:$0]  %s1383, 2048, %s1385, %s1369, 128, 128, 8
        $region64: #{tpu_custom_call.1} parent=43 // pred_fallthru
          _
      $region44: #{tpu_custom_call.1} parent=5 // pred_fallthru
        _
      %p1391 = scmp.le.s32.totalorder 2, %s20
      // Predicated region
      $region65: #{tpu_custom_call.1} parent=5 // pred_check
        %p1392 = pneg %p1391
      $region66: #{tpu_custom_call.1} parent=5 // pred_check_branch
        %1394 = sbr.rel (%p1392) target = $region68
      $region67: #{tpu_custom_call.1} parent=5 // pred_region
        %s1395 = ssub.s32 %s20, 2
        // Predicated region
        $region69: #{tpu_custom_call.1} parent=67 // pred_check
          %p1396 = pneg %p180
        $region70: #{tpu_custom_call.1} parent=67 // pred_check_branch
          %1398 = sbr.rel (%p1396) target = $region72
        $region71: #{tpu_custom_call.1} parent=67 // pred_region
          %s1399 = sand.u32 %s165, 1
          %s1400 = scalar_lea.sflag [#allocation4], %s1399
          %s1401 = sand.u32 %s165, 1
          %s1402 = smul.addr %s1401, 128
          %s1403 = scalar_lea.vmem [#allocation10], %s1402
          %1405 = dma.done %s1400, 2048
        $region72: #{tpu_custom_call.1} parent=67 // pred_fallthru
          _
      $region68: #{tpu_custom_call.1} parent=5 // pred_fallthru
        _
    $region6: #{tpu_custom_call.1} parent=1 // loop_footer
      %s24 = sadd.s32 1, %s20
    $region7: #{tpu_custom_call.1} parent=1 // loop_footer_branch
      %19 = sbr.rel target = $region3
    $region8: #{tpu_custom_call.1} parent=1 // loop_exit
      _
    %1406 = vsyncpa [#allocation3], 1
    %s1407 = scalar_lea.sflag [#allocation3], 1
    %1408 = vsyncpa %s1407, 1
    %1409 = vsyncpa [#allocation6], 1
    %1410 = vsyncpa [#allocation9], 1
    %1411 = vsyncpa [#allocation4], 1
    %s1412 = scalar_lea.sflag [#allocation4], 1
    %1413 = vsyncpa %s1412, 1

// kernel: tpu_custom_call.1
$region0: #{tpu_custom_call.1}
  #allocation0 [shape = 'u32[]', space=smem, size = 0x4, offset = 0x4, fixed_abs, tag = 'smem constant byte address 0x4 - core index']
  #allocation1 [shape = 'u32[72,128]{1,0:T(1,128)}', space=vmem, size = 0x9000, scoped, tag = 'internal scratch']
  %s0 = inlined_call_operand.hbm [shape: f32[16,16,128], index: 0, kind: input, shape index: {}]
  %s1 = inlined_call_operand.hbm [shape: f32[1,128], index: 1, kind: input, shape index: {}]
  %s2 = inlined_call_operand.vmem [shape: f32[1,128], index: 2, kind: input, shape index: {}]
  %s3 = inlined_call_operand.hbm [shape: f32[384,128], index: 3, kind: input, shape index: {}]
  %s4 = inlined_call_operand.vmem [shape: f32[1,128], index: 4, kind: input, shape index: {}]
  %s5 = inlined_call_operand.hbm [shape: f32[384,128], index: 5, kind: input, shape index: {}]
  %s6 = inlined_call_operand.hbm [shape: f32[16,16,128], index: 6, kind: output, shape index: {}]
  %s7 = sld [smem:[#allocation0]]
  $region73: #{tpu_custom_call.1} parent=0
    _
  %s9 = ssub.s32 1, %s7
  %s10 = scalar_select 0, %s9, %s7
  $region1: #{tpu_custom_call.1} parent=0
    #allocation2 [shape = 'u8[131072]{0}', space=vmem, size = 0x20000, scoped, tag = 'input window, operand 0']
    #allocation3 [shape = 's32[2]{0}', space=sflag, size = 0x8, scoped, tag = 'scoped memory for tpu_custom_call.1']
    #allocation4 [shape = 's32[2]{0}', space=sflag, size = 0x8, scoped, tag = 'scoped memory for tpu_custom_call.1']
    #allocation5 [shape = 'u8[512]{0}', space=vmem, size = 0x400, scoped, tag = 'input window, operand 1, single buffered']
    #allocation6 [shape = 's32[1]{0}', space=sflag, size = 0x4, scoped, tag = 'scoped memory for tpu_custom_call.1']
    #allocation7 [shape = 'u8[196608]{0}', space=vmem, size = 0x30000, scoped, tag = 'input window, operand 3, single buffered']
    #allocation8 [shape = 'u8[196608]{0}', space=vmem, size = 0x30000, scoped, tag = 'input window, operand 5, single buffered']
    #allocation9 [shape = 's32[1]{0}', space=sflag, size = 0x4, scoped, tag = 'scoped memory for tpu_custom_call.1']
    #allocation10 [shape = 'u8[131072]{0}', space=vmem, size = 0x20000, scoped, tag = 'output window, operand 0']
    %11 = vsyncpa [#allocation3], 0
    %s12 = scalar_lea.sflag [#allocation3], 1
    %13 = vsyncpa %s12, 0
    %14 = vsyncpa [#allocation6], 0
    %15 = vsyncpa [#allocation9], 0
    %16 = vsyncpa [#allocation4], 0
    %s17 = scalar_lea.sflag [#allocation4], 1
    %18 = vsyncpa %s17, 0
    loop: start=0, step=1, limit=4
    $region2: #{tpu_custom_call.1} parent=1 // loop_pre_header
      _
    $region3: #{tpu_custom_call.1} parent=1 // loop_header
      %s20 = sphi 0, %s24
      %p21 = scmp.ge.s32.totalorder %s20, 4
      %s30 = sphi 0, %s32
      %s33 = sphi 0, %s30
      %s34 = sphi 0, %s33
      %s50 = sphi 0, %s34
      %s54 = sphi 0, %s54
      %s56 = sphi 0, %s54
      %s57 = sphi 0, %s56
      %s71 = sphi 0, %s57
      %s75 = sphi 0, %s75
      %s77 = sphi 0, %s75
      %s78 = sphi 0, %s77
      %s92 = sphi 0, %s78
      %s96 = sphi 0, %s96
      %s98 = sphi 0, %s96
      %s99 = sphi 0, %s98
      %s113 = sphi 0, %s99
      %s117 = sphi 0, %s117
      %s119 = sphi 0, %s117
      %s120 = sphi 0, %s119
      %s134 = sphi 0, %s120
      %s138 = sphi 0, %s138
      %s140 = sphi 0, %s138
      %s141 = sphi 0, %s140
      %s155 = sphi 0, %s141
      %s161 = sphi 0, %s163
      %s164 = sphi 0, %s161
      %s165 = sphi 0, %s164
      %s181 = sphi 0, %s165
    $region4: #{tpu_custom_call.1} parent=1 // loop_header_branch
      %23 = sbr.rel (%p21) target = $region8
    $region5: #{tpu_custom_call.1} parent=1 // loop_body
      %s25 = ssub.s32 %s20, 1
      %s26 = ssub.s32 %s20, 2
      %s27 = sadd.s32 %s20, 1
      %s28 = ssub.s32 %s20, %s27
      %p29 = scmp.eq.s32.totalorder %s28, 0
      %s31 = sadd.s32 %s30, 1
      %s32 = scalar_select %p29, %s30, %s31
      %p35 = pneg %p29
      %p36 = scmp.eq.s32.totalorder %s20, 1
      %p37 = por %p35, %p36
      %p38 = scmp.ne.s32.totalorder %s30, %s33
      %p39 = scmp.eq.s32.totalorder %s20, 0
      %p40 = por %p38, %p39
      %p41 = scmp.ne.s32.totalorder %s30, %s33
      %p42 = scmp.eq.s32.totalorder %s25, 1
      %p43 = por %p41, %p42
      %p44 = scmp.ne.s32.totalorder %s33, %s34
      %p45 = scmp.eq.s32.totalorder %s25, 0
      %p46 = por %p44, %p45
      %p47 = scmp.ne.s32.totalorder %s33, %s34
      %p48 = scmp.eq.s32.totalorder %s26, 1
      %p49 = por %p47, %p48
      %p51 = scmp.ne.s32.totalorder %s34, %s50
      %p52 = scmp.eq.s32.totalorder %s26, 0
      %p53 = por %p51, %p52
      %s55 = sadd.s32 %s54, 1
      %p58 = scmp.eq.s32.totalorder %s20, 1
      %p59 = scmp.ne.s32.totalorder %s54, %s56
      %p60 = scmp.eq.s32.totalorder %s20, 0
      %p61 = por %p59, %p60
      %p62 = scmp.ne.s32.totalorder %s54, %s56
      %p63 = scmp.eq.s32.totalorder %s25, 1
      %p64 = por %p62, %p63
      %p65 = scmp.ne.s32.totalorder %s56, %s57
      %p66 = scmp.eq.s32.totalorder %s25, 0
      %p67 = por %p65, %p66
      %p68 = scmp.ne.s32.totalorder %s56, %s57
      %p69 = scmp.eq.s32.totalorder %s26, 1
      %p70 = por %p68, %p69
      %p72 = scmp.ne.s32.totalorder %s57, %s71
      %p73 = scmp.eq.s32.totalorder %s26, 0
      %p74 = por %p72, %p73
      %s76 = sadd.s32 %s75, 1
      %p79 = scmp.eq.s32.totalorder %s20, 1
      %p80 = scmp.ne.s32.totalorder %s75, %s77
      %p81 = scmp.eq.s32.totalorder %s20, 0
      %p82 = por %p80, %p81
      %p83 = scmp.ne.s32.totalorder %s75, %s77
      %p84 = scmp.eq.s32.totalorder %s25, 1
      %p85 = por %p83, %p84
      %p86 = scmp.ne.s32.totalorder %s77, %s78
      %p87 = scmp.eq.s32.totalorder %s25, 0
      %p88 = por %p86, %p87
      %p89 = scmp.ne.s32.totalorder %s77, %s78
      %p90 = scmp.eq.s32.totalorder %s26, 1
      %p91 = por %p89, %p90
      %p93 = scmp.ne.s32.totalorder %s78, %s92
      %p94 = scmp.eq.s32.totalorder %s26, 0
      %p95 = por %p93, %p94
      %s97 = sadd.s32 %s96, 1
      %p100 = scmp.eq.s32.totalorder %s20, 1
      %p101 = scmp.ne.s32.totalorder %s96, %s98
      %p102 = scmp.eq.s32.totalorder %s20, 0
      %p103 = por %p101, %p102
      %p104 = scmp.ne.s32.totalorder %s96, %s98
      %p105 = scmp.eq.s32.totalorder %s25, 1
      %p106 = por %p104, %p105
      %p107 = scmp.ne.s32.totalorder %s98, %s99
      %p108 = scmp.eq.s32.totalorder %s25, 0
      %p109 = por %p107, %p108
      %p110 = scmp.ne.s32.totalorder %s98, %s99
      %p111 = scmp.eq.s32.totalorder %s26, 1
      %p112 = por %p110, %p111
      %p114 = scmp.ne.s32.totalorder %s99, %s113
      %p115 = scmp.eq.s32.totalorder %s26, 0
      %p116 = por %p114, %p115
      %s118 = sadd.s32 %s117, 1
      %p121 = scmp.eq.s32.totalorder %s20, 1
      %p122 = scmp.ne.s32.totalorder %s117, %s119
      %p123 = scmp.eq.s32.totalorder %s20, 0
      %p124 = por %p122, %p123
      %p125 = scmp.ne.s32.totalorder %s117, %s119
      %p126 = scmp.eq.s32.totalorder %s25, 1
      %p127 = por %p125, %p126
      %p128 = scmp.ne.s32.totalorder %s119, %s120
      %p129 = scmp.eq.s32.totalorder %s25, 0
      %p130 = por %p128, %p129
      %p131 = scmp.ne.s32.totalorder %s119, %s120
      %p132 = scmp.eq.s32.totalorder %s26, 1
      %p133 = por %p131, %p132
      %p135 = scmp.ne.s32.totalorder %s120, %s134
      %p136 = scmp.eq.s32.totalorder %s26, 0
      %p137 = por %p135, %p136
      %s139 = sadd.s32 %s138, 1
      %p142 = scmp.eq.s32.totalorder %s20, 1
      %p143 = scmp.ne.s32.totalorder %s138, %s140
      %p144 = scmp.eq.s32.totalorder %s20, 0
      %p145 = por %p143, %p144
      %p146 = scmp.ne.s32.totalorder %s138, %s140
      %p147 = scmp.eq.s32.totalorder %s25, 1
      %p148 = por %p146, %p147
      %p149 = scmp.ne.s32.totalorder %s140, %s141
      %p150 = scmp.eq.s32.totalorder %s25, 0
      %p151 = por %p149, %p150
      %p152 = scmp.ne.s32.totalorder %s140, %s141
      %p153 = scmp.eq.s32.totalorder %s26, 1
      %p154 = por %p152, %p153
      %p156 = scmp.ne.s32.totalorder %s141, %s155
      %p157 = scmp.eq.s32.totalorder %s26, 0
      %p158 = por %p156, %p157
      %s159 = ssub.s32 %s20, %s27
      %p160 = scmp.eq.s32.totalorder %s159, 0
      %s162 = sadd.s32 %s161, 1
      %s163 = scalar_select %p160, %s161, %s162
      %p166 = pneg %p160
      %p167 = scmp.eq.s32.totalorder %s20, 1
      %p168 = por %p166, %p167
      %p169 = scmp.ne.s32.totalorder %s161, %s164
      %p170 = scmp.eq.s32.totalorder %s20, 0
      %p171 = por %p169, %p170
      %p172 = scmp.ne.s32.totalorder %s161, %s164
      %p173 = scmp.eq.s32.totalorder %s25, 1
      %p174 = por %p172, %p173
      %p175 = scmp.ne.s32.totalorder %s164, %s165
      %p176 = scmp.eq.s32.totalorder %s25, 0
      %p177 = por %p175, %p176
      %p178 = scmp.ne.s32.totalorder %s164, %s165
      %p179 = scmp.eq.s32.totalorder %s26, 1
      %p180 = por %p178, %p179
      %p182 = scmp.ne.s32.totalorder %s165, %s181
      %p183 = scmp.eq.s32.totalorder %s26, 0
      %p184 = por %p182, %p183
      %p185 = scmp.le.s32.totalorder 1, %s20
      %p186 = scmp.lt.s32.totalorder %s20, 3
      %p187 = pnand %p185, %p186
      %p188 = pneg %p187
      // Predicated region
      $region9: #{tpu_custom_call.1} parent=5 // pred_check
        _
      $region10: #{tpu_custom_call.1} parent=5 // pred_check_branch
        %190 = sbr.rel (%p187) target = $region12
      $region11: #{tpu_custom_call.1} parent=5 // pred_region
        %s191 = ssub.s32 %s20, 1
        // Predicated region
        $region13: #{tpu_custom_call.1} parent=11 // pred_check
          %p192 = pneg %p67
        $region14: #{tpu_custom_call.1} parent=11 // pred_check_branch
          %194 = sbr.rel (%p192) target = $region16
        $region15: #{tpu_custom_call.1} parent=11 // pred_region
          %196 = vsyncadd [#allocation6], 0
          %s198 = sshll.u32 %s1, 4
          %s199 = int_to_ptr.hbm [resolvable:$true] %s198
          %s200 = sshll.u32 [#allocation5], 4
          %s201 = int_to_ptr.vmem [resolvable:$true] %s200
          %203 = dma.hbm_to_vmem [thread:$0]  %s199, 16, %s201, [#allocation6]
        $region16: #{tpu_custom_call.1} parent=11 // pred_fallthru
          _
        // Predicated region
        $region17: #{tpu_custom_call.1} parent=11 // pred_check
          %p204 = pneg %p88
        $region18: #{tpu_custom_call.1} parent=11 // pred_check_branch
          %206 = sbr.rel (%p204) target = $region20
        $region19: #{tpu_custom_call.1} parent=11 // pred_region
          _
        $region20: #{tpu_custom_call.1} parent=11 // pred_fallthru
          _
        // Predicated region
        $region21: #{tpu_custom_call.1} parent=11 // pred_check
          %p207 = pneg %p109
        $region22: #{tpu_custom_call.1} parent=11 // pred_check_branch
          %209 = sbr.rel (%p207) target = $region24
        $region23: #{tpu_custom_call.1} parent=11 // pred_region
          %211 = vsyncadd [#allocation6], 0
          %s212 = sshll.u32 %s3, 4
          %s213 = int_to_ptr.hbm [resolvable:$true] %s212
          %s214 = sshll.u32 [#allocation7], 4
          %s215 = int_to_ptr.vmem [resolvable:$true] %s214
          %220 = dma.hbm_to_vmem [thread:$0]  %s213, 6144, %s215, [#allocation6], 128, 128, 8
        $region24: #{tpu_custom_call.1} parent=11 // pred_fallthru
          _
        // Predicated region
        $region25: #{tpu_custom_call.1} parent=11 // pred_check
          %p221 = pneg %p130
        $region26: #{tpu_custom_call.1} parent=11 // pred_check_branch
          %223 = sbr.rel (%p221) target = $region28
        $region27: #{tpu_custom_call.1} parent=11 // pred_region
          _
        $region28: #{tpu_custom_call.1} parent=11 // pred_fallthru
          _
        // Predicated region
        $region29: #{tpu_custom_call.1} parent=11 // pred_check
          %p224 = pneg %p151
        $region30: #{tpu_custom_call.1} parent=11 // pred_check_branch
          %226 = sbr.rel (%p224) target = $region32
        $region31: #{tpu_custom_call.1} parent=11 // pred_region
          %228 = vsyncadd [#allocation9], 0
          %s229 = sshll.u32 %s5, 4
          %s230 = int_to_ptr.hbm [resolvable:$true] %s229
          %s231 = sshll.u32 [#allocation8], 4
          %s232 = int_to_ptr.vmem [resolvable:$true] %s231
          %237 = dma.hbm_to_vmem [thread:$0]  %s230, 6144, %s232, [#allocation9], 128, 128, 8
        $region32: #{tpu_custom_call.1} parent=11 // pred_fallthru
          _
      $region12: #{tpu_custom_call.1} parent=5 // pred_fallthru
        _
      %p238 = scmp.lt.s32.totalorder %s20, 2
      // Predicated region
      $region33: #{tpu_custom_call.1} parent=5 // pred_check
        %p239 = pneg %p238
      $region34: #{tpu_custom_call.1} parent=5 // pred_check_branch
        %241 = sbr.rel (%p239) target = $region36
      $region35: #{tpu_custom_call.1} parent=5 // pred_region
        // Predicated region
        $region37: #{tpu_custom_call.1} parent=35 // pred_check
          %p242 = pneg %p40
        $region38: #{tpu_custom_call.1} parent=35 // pred_check_branch
          %244 = sbr.rel (%p242) target = $region40
        $region39: #{tpu_custom_call.1} parent=35 // pred_region
          %s245 = sand.u32 %s30, 1
          %s246 = scalar_lea.sflag [#allocation3], %s245
          %s247 = sand.u32 %s30, 1
          %s248 = smul.addr %s247, 128
          %s249 = scalar_lea.vmem [#allocation2], %s248
          %s250 = smul.u32 8, %s20
          %252 = vsyncadd %s246, 0
          %s253 = smul.addr %s250, 2
          %s254 = smul.addr %s253, 8
          %s255 = scalar_lea.hbm %s0, %s254
          %s256 = sshll.u32 %s255, 4
          %s257 = int_to_ptr.hbm [resolvable:$true] %s256
          %s258 = sshll.u32 %s249, 4
          %s259 = int_to_ptr.vmem [resolvable:$true] %s258
          %264 = dma.hbm_to_vmem [thread:$0]  %s257, 2048, %s259, %s246, 128, 128, 8
        $region40: #{tpu_custom_call.1} parent=35 // pred_fallthru
          _
      $region36: #{tpu_custom_call.1} parent=5 // pred_fallthru
        _
      %p265 = scmp.le.s32.totalorder 1, %s20
      %p266 = scmp.lt.s32.totalorder %s20, 3
      %p267 = pnand %p265, %p266
      %p268 = pneg %p267
      // Predicated region
      $region41: #{tpu_custom_call.1} parent=5 // pred_check
        _
      $region42: #{tpu_custom_call.1} parent=5 // pred_check_branch
        %270 = sbr.rel (%p267) target = $region44
      $region43: #{tpu_custom_call.1} parent=5 // pred_region
        %s271 = ssub.s32 %s20, 1
        %s272 = sand.u32 %s33, 1
        %s273 = scalar_lea.sflag [#allocation3], %s272
        %s274 = sand.u32 %s33, 1
        %s275 = smul.addr %s274, 128
        %s276 = scalar_lea.vmem [#allocation2], %s275
        // Predicated region
        $region45: #{tpu_custom_call.1} parent=43 // pred_check
          %p277 = pneg %p46
        $region46: #{tpu_custom_call.1} parent=43 // pred_check_branch
          %279 = sbr.rel (%p277) target = $region48
        $region47: #{tpu_custom_call.1} parent=43 // pred_region
          %281 = dma.done %s273, 2048
        $region48: #{tpu_custom_call.1} parent=43 // pred_fallthru
          _
        // Predicated region
        $region49: #{tpu_custom_call.1} parent=43 // pred_check
          %p282 = pneg %p67
        $region50: #{tpu_custom_call.1} parent=43 // pred_check_branch
          %284 = sbr.rel (%p282) target = $region52
        $region51: #{tpu_custom_call.1} parent=43 // pred_region
          %286 = dma.done [#allocation6], 16
        $region52: #{tpu_custom_call.1} parent=43 // pred_fallthru
          _
        // Predicated region
        $region53: #{tpu_custom_call.1} parent=43 // pred_check
          %p287 = pneg %p109
        $region54: #{tpu_custom_call.1} parent=43 // pred_check_branch
          %289 = sbr.rel (%p287) target = $region56
        $region55: #{tpu_custom_call.1} parent=43 // pred_region
          %291 = dma.done [#allocation6], 6144
        $region56: #{tpu_custom_call.1} parent=43 // pred_fallthru
          _
        // Predicated region
        $region57: #{tpu_custom_call.1} parent=43 // pred_check
          %p292 = pneg %p151
        $region58: #{tpu_custom_call.1} parent=43 // pred_check_branch
          %294 = sbr.rel (%p292) target = $region60
        $region59: #{tpu_custom_call.1} parent=43 // pred_region
          %296 = dma.done [#allocation9], 6144
        $region60: #{tpu_custom_call.1} parent=43 // pred_fallthru
          _
        %s297 = sand.u32 %s33, 1
        %s298 = scalar_lea.sflag [#allocation3], %s297
        %s299 = sand.u32 %s33, 1
        %s300 = smul.addr %s299, 128
        %s301 = scalar_lea.vmem [#allocation2], %s300
        %p302 = pneg %p46
        %p303 = pneg %p43
        %p304 = pneg %p67
        %p305 = pneg %p64
        %p306 = pneg %p88
        %p307 = pneg %p85
        %p308 = pneg %p109
        %p309 = pneg %p106
        %p310 = pneg %p130
        %p311 = pneg %p127
        %p312 = pneg %p151
        %p313 = pneg %p148
        %p314 = pneg %p177
        %p315 = pneg %p174
        %s316 = sand.u32 %s164, 1
        %s317 = scalar_lea.sflag [#allocation4], %s316
        %s318 = sand.u32 %s164, 1
        %s319 = smul.addr %s318, 128
        %s320 = scalar_lea.vmem [#allocation10], %s319
        %s321 = smul.u32 8, %s25
        %s322 = smul.u32 8, %s25
        %v323 = vld [vmem:[%s276] sm:$0xff]
        %v324 = vld [vmem:[%s276 + $0x8] sm:$0xff]
        %v325 = vld [vmem:[%s276 + $0x10] sm:$0xff]
        %v326 = vld [vmem:[%s276 + $0x18] sm:$0xff]
        %v327 = vld [vmem:[%s276 + $0x20] sm:$0xff]
        %v328 = vld [vmem:[%s276 + $0x28] sm:$0xff]
        %v329 = vld [vmem:[%s276 + $0x30] sm:$0xff]
        %v330 = vld [vmem:[%s276 + $0x38] sm:$0xff]
        %v331 = vld [vmem:[%s276 + $0x40] sm:$0xff]
        %v332 = vld [vmem:[%s276 + $0x48] sm:$0xff]
        %v333 = vld [vmem:[%s276 + $0x50] sm:$0xff]
        %v334 = vld [vmem:[%s276 + $0x58] sm:$0xff]
        %v335 = vld [vmem:[%s276 + $0x60] sm:$0xff]
        %v336 = vld [vmem:[%s276 + $0x68] sm:$0xff]
        %v337 = vld [vmem:[%s276 + $0x70] sm:$0xff]
        %v338 = vld [vmem:[%s276 + $0x78] sm:$0xff]
        %v339 = vlaneseq
        %v340 = vshrl.u32 %v339, 7
        %v341 = vadd.s32 %v340, 8
        %v342 = vadd.s32 %v340, 16
        %v343 = vadd.s32 %v340, 24
        %v344 = vadd.s32 %v340, 32
        %v345 = vadd.s32 %v340, 40
        %v346 = vadd.s32 %v340, 48
        %v347 = vadd.s32 %v340, 56
        %v348 = vadd.s32 %v340, 64
        %v349 = vadd.s32 %v340, 72
        %v350 = vadd.s32 %v340, 80
        %v351 = vadd.s32 %v340, 88
        %v352 = vadd.s32 %v340, 96
        %v353 = vadd.s32 %v340, 104
        %v354 = vadd.s32 %v340, 112
        %v355 = vadd.s32 %v340, 120
        %vm356 = vcmp.lt.s32.totalorder %v340, 0
        %v357 = vsub.s32 0, %v340
        %v358 = vsel %vm356, %v357, %v340
        %v359 = vshrl.u32 %v358, 4
        %v360 = vand.u32 %v358, 15
        %v361 = vsub.s32 0, %v360
        %v362 = vsel %vm356, %v361, %v360
        %vm363 = vcmp.lt.s32.totalorder %v341, 0
        %v364 = vsub.s32 0, %v341
        %v365 = vsel %vm363, %v364, %v341
        %v366 = vshrl.u32 %v365, 4
        %v367 = vand.u32 %v365, 15
        %v368 = vsub.s32 0, %v367
        %v369 = vsel %vm363, %v368, %v367
        %vm370 = vcmp.lt.s32.totalorder %v342, 0
        %v371 = vsub.s32 0, %v342
        %v372 = vsel %vm370, %v371, %v342
        %v373 = vshrl.u32 %v372, 4
        %v374 = vand.u32 %v372, 15
        %v375 = vsub.s32 0, %v374
        %v376 = vsel %vm370, %v375, %v374
        %vm377 = vcmp.lt.s32.totalorder %v343, 0
        %v378 = vsub.s32 0, %v343
        %v379 = vsel %vm377, %v378, %v343
        %v380 = vshrl.u32 %v379, 4
        %v381 = vand.u32 %v379, 15
        %v382 = vsub.s32 0, %v381
        %v383 = vsel %vm377, %v382, %v381
        %vm384 = vcmp.lt.s32.totalorder %v344, 0
        %v385 = vsub.s32 0, %v344
        %v386 = vsel %vm384, %v385, %v344
        %v387 = vshrl.u32 %v386, 4
        %v388 = vand.u32 %v386, 15
        %v389 = vsub.s32 0, %v388
        %v390 = vsel %vm384, %v389, %v388
        %vm391 = vcmp.lt.s32.totalorder %v345, 0
        %v392 = vsub.s32 0, %v345
        %v393 = vsel %vm391, %v392, %v345
        %v394 = vshrl.u32 %v393, 4
        %v395 = vand.u32 %v393, 15
        %v396 = vsub.s32 0, %v395
        %v397 = vsel %vm391, %v396, %v395
        %vm398 = vcmp.lt.s32.totalorder %v346, 0
        %v399 = vsub.s32 0, %v346
        %v400 = vsel %vm398, %v399, %v346
        %v401 = vshrl.u32 %v400, 4
        %v402 = vand.u32 %v400, 15
        %v403 = vsub.s32 0, %v402
        %v404 = vsel %vm398, %v403, %v402
        %vm405 = vcmp.lt.s32.totalorder %v347, 0
        %v406 = vsub.s32 0, %v347
        %v407 = vsel %vm405, %v406, %v347
        %v408 = vshrl.u32 %v407, 4
        %v409 = vand.u32 %v407, 15
        %v410 = vsub.s32 0, %v409
        %v411 = vsel %vm405, %v410, %v409
        %vm412 = vcmp.lt.s32.totalorder %v348, 0
        %v413 = vsub.s32 0, %v348
        %v414 = vsel %vm412, %v413, %v348
        %v415 = vshrl.u32 %v414, 4
        %v416 = vand.u32 %v414, 15
        %v417 = vsub.s32 0, %v416
        %v418 = vsel %vm412, %v417, %v416
        %vm419 = vcmp.lt.s32.totalorder %v349, 0
        %v420 = vsub.s32 0, %v349
        %v421 = vsel %vm419, %v420, %v349
        %v422 = vshrl.u32 %v421, 4
        %v423 = vand.u32 %v421, 15
        %v424 = vsub.s32 0, %v423
        %v425 = vsel %vm419, %v424, %v423
        %vm426 = vcmp.lt.s32.totalorder %v350, 0
        %v427 = vsub.s32 0, %v350
        %v428 = vsel %vm426, %v427, %v350
        %v429 = vshrl.u32 %v428, 4
        %v430 = vand.u32 %v428, 15
        %v431 = vsub.s32 0, %v430
        %v432 = vsel %vm426, %v431, %v430
        %vm433 = vcmp.lt.s32.totalorder %v351, 0
        %v434 = vsub.s32 0, %v351
        %v435 = vsel %vm433, %v434, %v351
        %v436 = vshrl.u32 %v435, 4
        %v437 = vand.u32 %v435, 15
        %v438 = vsub.s32 0, %v437
        %v439 = vsel %vm433, %v438, %v437
        %vm440 = vcmp.lt.s32.totalorder %v352, 0
        %v441 = vsub.s32 0, %v352
        %v442 = vsel %vm440, %v441, %v352
        %v443 = vshrl.u32 %v442, 4
        %v444 = vand.u32 %v442, 15
        %v445 = vsub.s32 0, %v444
        %v446 = vsel %vm440, %v445, %v444
        %vm447 = vcmp.lt.s32.totalorder %v353, 0
        %v448 = vsub.s32 0, %v353
        %v449 = vsel %vm447, %v448, %v353
        %v450 = vshrl.u32 %v449, 4
        %v451 = vand.u32 %v449, 15
        %v452 = vsub.s32 0, %v451
        %v453 = vsel %vm447, %v452, %v451
        %vm454 = vcmp.lt.s32.totalorder %v354, 0
        %v455 = vsub.s32 0, %v354
        %v456 = vsel %vm454, %v455, %v354
        %v457 = vshrl.u32 %v456, 4
        %v458 = vand.u32 %v456, 15
        %v459 = vsub.s32 0, %v458
        %v460 = vsel %vm454, %v459, %v458
        %vm461 = vcmp.lt.s32.totalorder %v355, 0
        %v462 = vsub.s32 0, %v355
        %v463 = vsel %vm461, %v462, %v355
        %v464 = vshrl.u32 %v463, 4
        %v465 = vand.u32 %v463, 15
        %v466 = vsub.s32 0, %v465
        %v467 = vsel %vm461, %v466, %v465
        %vm468 = vcmp.ne.s32.totalorder %v362, 0
        %vm469 = vcmp.ne.s32.totalorder %v369, 0
        %vm470 = vcmp.ne.s32.totalorder %v376, 0
        %vm471 = vcmp.ne.s32.totalorder %v383, 0
        %vm472 = vcmp.ne.s32.totalorder %v390, 0
        %vm473 = vcmp.ne.s32.totalorder %v397, 0
        %vm474 = vcmp.ne.s32.totalorder %v404, 0
        %vm475 = vcmp.ne.s32.totalorder %v411, 0
        %vm476 = vcmp.ne.s32.totalorder %v418, 0
        %vm477 = vcmp.ne.s32.totalorder %v425, 0
        %vm478 = vcmp.ne.s32.totalorder %v432, 0
        %vm479 = vcmp.ne.s32.totalorder %v439, 0
        %vm480 = vcmp.ne.s32.totalorder %v446, 0
        %vm481 = vcmp.ne.s32.totalorder %v453, 0
        %vm482 = vcmp.ne.s32.totalorder %v460, 0
        %vm483 = vcmp.ne.s32.totalorder %v467, 0
        %vm484 = vcmp.lt.s32.totalorder %v362, 0
        %vm485 = vcmp.lt.s32.totalorder %v369, 0
        %vm486 = vcmp.lt.s32.totalorder %v376, 0
        %vm487 = vcmp.lt.s32.totalorder %v383, 0
        %vm488 = vcmp.lt.s32.totalorder %v390, 0
        %vm489 = vcmp.lt.s32.totalorder %v397, 0
        %vm490 = vcmp.lt.s32.totalorder %v404, 0
        %vm491 = vcmp.lt.s32.totalorder %v411, 0
        %vm492 = vcmp.lt.s32.totalorder %v418, 0
        %vm493 = vcmp.lt.s32.totalorder %v425, 0
        %vm494 = vcmp.lt.s32.totalorder %v432, 0
        %vm495 = vcmp.lt.s32.totalorder %v439, 0
        %vm496 = vcmp.lt.s32.totalorder %v446, 0
        %vm497 = vcmp.lt.s32.totalorder %v453, 0
        %vm498 = vcmp.lt.s32.totalorder %v460, 0
        %vm499 = vcmp.lt.s32.totalorder %v467, 0
        %vm500 = vmand %vm484, %vm468
        %vm501 = vmand %vm485, %vm469
        %vm502 = vmand %vm486, %vm470
        %vm503 = vmand %vm487, %vm471
        %vm504 = vmand %vm488, %vm472
        %vm505 = vmand %vm489, %vm473
        %vm506 = vmand %vm490, %vm474
        %vm507 = vmand %vm491, %vm475
        %vm508 = vmand %vm492, %vm476
        %vm509 = vmand %vm493, %vm477
        %vm510 = vmand %vm494, %vm478
        %vm511 = vmand %vm495, %vm479
        %vm512 = vmand %vm496, %vm480
        %vm513 = vmand %vm497, %vm481
        %vm514 = vmand %vm498, %vm482
        %vm515 = vmand %vm499, %vm483
        %v516 = vadd.s32 %v362, 16
        %v517 = vadd.s32 %v369, 16
        %v518 = vadd.s32 %v376, 16
        %v519 = vadd.s32 %v383, 16
        %v520 = vadd.s32 %v390, 16
        %v521 = vadd.s32 %v397, 16
        %v522 = vadd.s32 %v404, 16
        %v523 = vadd.s32 %v411, 16
        %v524 = vadd.s32 %v418, 16
        %v525 = vadd.s32 %v425, 16
        %v526 = vadd.s32 %v432, 16
        %v527 = vadd.s32 %v439, 16
        %v528 = vadd.s32 %v446, 16
        %v529 = vadd.s32 %v453, 16
        %v530 = vadd.s32 %v460, 16
        %v531 = vadd.s32 %v467, 16
        %v532 = vsel %vm500, %v516, %v362
        %v533 = vsel %vm501, %v517, %v369
        %v534 = vsel %vm502, %v518, %v376
        %v535 = vsel %vm503, %v519, %v383
        %v536 = vsel %vm504, %v520, %v390
        %v537 = vsel %vm505, %v521, %v397
        %v538 = vsel %vm506, %v522, %v404
        %v539 = vsel %vm507, %v523, %v411
        %v540 = vsel %vm508, %v524, %v418
        %v541 = vsel %vm509, %v525, %v425
        %v542 = vsel %vm510, %v526, %v432
        %v543 = vsel %vm511, %v527, %v439
        %v544 = vsel %vm512, %v528, %v446
        %v545 = vsel %vm513, %v529, %v453
        %v546 = vsel %vm514, %v530, %v460
        %v547 = vsel %vm515, %v531, %v467
        %vm548 = vcmp.ne.s32.totalorder %v532, 0
        %vm549 = vcmp.ne.s32.totalorder %v533, 0
        %vm550 = vcmp.ne.s32.totalorder %v534, 0
        %vm551 = vcmp.ne.s32.totalorder %v535, 0
        %vm552 = vcmp.ne.s32.totalorder %v536, 0
        %vm553 = vcmp.ne.s32.totalorder %v537, 0
        %vm554 = vcmp.ne.s32.totalorder %v538, 0
        %vm555 = vcmp.ne.s32.totalorder %v539, 0
        %vm556 = vcmp.ne.s32.totalorder %v540, 0
        %vm557 = vcmp.ne.s32.totalorder %v541, 0
        %vm558 = vcmp.ne.s32.totalorder %v542, 0
        %vm559 = vcmp.ne.s32.totalorder %v543, 0
        %vm560 = vcmp.ne.s32.totalorder %v544, 0
        %vm561 = vcmp.ne.s32.totalorder %v545, 0
        %vm562 = vcmp.ne.s32.totalorder %v546, 0
        %vm563 = vcmp.ne.s32.totalorder %v547, 0
        %vm564 = vcmp.ne.s32.totalorder %v532, 15
        %vm565 = vcmp.ne.s32.totalorder %v533, 15
        %vm566 = vcmp.ne.s32.totalorder %v534, 15
        %vm567 = vcmp.ne.s32.totalorder %v535, 15
        %vm568 = vcmp.ne.s32.totalorder %v536, 15
        %vm569 = vcmp.ne.s32.totalorder %v537, 15
        %vm570 = vcmp.ne.s32.totalorder %v538, 15
        %vm571 = vcmp.ne.s32.totalorder %v539, 15
        %vm572 = vcmp.ne.s32.totalorder %v540, 15
        %vm573 = vcmp.ne.s32.totalorder %v541, 15
        %vm574 = vcmp.ne.s32.totalorder %v542, 15
        %vm575 = vcmp.ne.s32.totalorder %v543, 15
        %vm576 = vcmp.ne.s32.totalorder %v544, 15
        %vm577 = vcmp.ne.s32.totalorder %v545, 15
        %vm578 = vcmp.ne.s32.totalorder %v546, 15
        %vm579 = vcmp.ne.s32.totalorder %v547, 15
        %v580 = vld [vmem:[#allocation5] sm:$0x1]
        %v582 = vperm.slane %v580, 0
        %v584 = vmul.f32 %v323, %v582
        %v585 = vmul.f32 %v324, %v582
        %v586 = vmul.f32 %v325, %v582
        %v587 = vmul.f32 %v326, %v582
        %v588 = vmul.f32 %v327, %v582
        %v589 = vmul.f32 %v328, %v582
        %v590 = vmul.f32 %v329, %v582
        %v591 = vmul.f32 %v330, %v582
        %v592 = vmul.f32 %v331, %v582
        %v593 = vmul.f32 %v332, %v582
        %v594 = vmul.f32 %v333, %v582
        %v595 = vmul.f32 %v334, %v582
        %v596 = vmul.f32 %v335, %v582
        %v597 = vmul.f32 %v336, %v582
        %v598 = vmul.f32 %v337, %v582
        %v599 = vmul.f32 %v338, %v582
        %v600 = vld [vmem:[%s2] sm:$0x1]
        %v602 = vperm.slane %v600, 0
        %v604 = vadd.f32 %v584, %v602
        %v605 = vadd.f32 %v585, %v602
        %v606 = vadd.f32 %v586, %v602
        %v607 = vadd.f32 %v587, %v602
        %v608 = vadd.f32 %v588, %v602
        %v609 = vadd.f32 %v589, %v602
        %v610 = vadd.f32 %v590, %v602
        %v611 = vadd.f32 %v591, %v602
        %v612 = vadd.f32 %v592, %v602
        %v613 = vadd.f32 %v593, %v602
        %v614 = vadd.f32 %v594, %v602
        %v615 = vadd.f32 %v595, %v602
        %v616 = vadd.f32 %v596, %v602
        %v617 = vadd.f32 %v597, %v602
        %v618 = vadd.f32 %v598, %v602
        %v619 = vadd.f32 %v599, %v602
        %v620 = vmax.f32 %v604, 0.0
        %v621 = vmax.f32 %v605, 0.0
        %v622 = vmax.f32 %v606, 0.0
        %v623 = vmax.f32 %v607, 0.0
        %v624 = vmax.f32 %v608, 0.0
        %v625 = vmax.f32 %v609, 0.0
        %v626 = vmax.f32 %v610, 0.0
        %v627 = vmax.f32 %v611, 0.0
        %v628 = vmax.f32 %v612, 0.0
        %v629 = vmax.f32 %v613, 0.0
        %v630 = vmax.f32 %v614, 0.0
        %v631 = vmax.f32 %v615, 0.0
        %v632 = vmax.f32 %v616, 0.0
        %v633 = vmax.f32 %v617, 0.0
        %v634 = vmax.f32 %v618, 0.0
        %v635 = vmax.f32 %v619, 0.0
        %v636 = vrot.slane %v620, 7
        %v637 = vrot.slane %v621, 7
        %v638 = vrot.slane %v622, 7
        %v639 = vrot.slane %v623, 7
        %v640 = vrot.slane %v624, 7
        %v641 = vrot.slane %v625, 7
        %v642 = vrot.slane %v626, 7
        %v643 = vrot.slane %v627, 7
        %v644 = vrot.slane %v628, 7
        %v645 = vrot.slane %v629, 7
        %v646 = vrot.slane %v630, 7
        %v647 = vrot.slane %v631, 7
        %v648 = vrot.slane %v632, 7
        %v649 = vrot.slane %v633, 7
        %v650 = vrot.slane %v634, 7
        %v651 = vrot.slane %v635, 7
        %vm652 = vcmp.lt.s32.totalorder %v340, 1
        %v653 = vsel %vm652, %v650, %v651
        %v654 = vsel %vm652, %v649, %v650
        %v655 = vsel %vm652, %v648, %v649
        %v656 = vsel %vm652, %v647, %v648
        %v657 = vsel %vm652, %v646, %v647
        %v658 = vsel %vm652, %v645, %v646
        %v659 = vsel %vm652, %v644, %v645
        %v660 = vsel %vm652, %v643, %v644
        %v661 = vsel %vm652, %v642, %v643
        %v662 = vsel %vm652, %v641, %v642
        %v663 = vsel %vm652, %v640, %v641
        %v664 = vsel %vm652, %v639, %v640
        %v665 = vsel %vm652, %v638, %v639
        %v666 = vsel %vm652, %v637, %v638
        %v667 = vsel %vm652, %v636, %v637
        %v668 = vsel %vm652, %v651, %v636
        %v669 = vsel %vm548, %v668, 0.0
        %v670 = vsel %vm549, %v667, 0.0
        %v671 = vsel %vm550, %v666, 0.0
        %v672 = vsel %vm551, %v665, 0.0
        %v673 = vsel %vm552, %v664, 0.0
        %v674 = vsel %vm553, %v663, 0.0
        %v675 = vsel %vm554, %v662, 0.0
        %v676 = vsel %vm555, %v661, 0.0
        %v677 = vsel %vm556, %v660, 0.0
        %v678 = vsel %vm557, %v659, 0.0
        %v679 = vsel %vm558, %v658, 0.0
        %v680 = vsel %vm559, %v657, 0.0
        %v681 = vsel %vm560, %v656, 0.0
        %v682 = vsel %vm561, %v655, 0.0
        %v683 = vsel %vm562, %v654, 0.0
        %v684 = vsel %vm563, %v653, 0.0
        %v685 = vrot.slane %v620, 1
        %v686 = vrot.slane %v621, 1
        %v687 = vrot.slane %v622, 1
        %v688 = vrot.slane %v623, 1
        %v689 = vrot.slane %v624, 1
        %v690 = vrot.slane %v625, 1
        %v691 = vrot.slane %v626, 1
        %v692 = vrot.slane %v627, 1
        %v693 = vrot.slane %v628, 1
        %v694 = vrot.slane %v629, 1
        %v695 = vrot.slane %v630, 1
        %v696 = vrot.slane %v631, 1
        %v697 = vrot.slane %v632, 1
        %v698 = vrot.slane %v633, 1
        %v699 = vrot.slane %v634, 1
        %v700 = vrot.slane %v635, 1
        %vm701 = vcmp.lt.s32.totalorder %v340, 7
        %v702 = vsel %vm701, %v699, %v700
        %v703 = vsel %vm701, %v698, %v699
        %v704 = vsel %vm701, %v697, %v698
        %v705 = vsel %vm701, %v696, %v697
        %v706 = vsel %vm701, %v695, %v696
        %v707 = vsel %vm701, %v694, %v695
        %v708 = vsel %vm701, %v693, %v694
        %v709 = vsel %vm701, %v692, %v693
        %v710 = vsel %vm701, %v691, %v692
        %v711 = vsel %vm701, %v690, %v691
        %v712 = vsel %vm701, %v689, %v690
        %v713 = vsel %vm701, %v688, %v689
        %v714 = vsel %vm701, %v687, %v688
        %v715 = vsel %vm701, %v686, %v687
        %v716 = vsel %vm701, %v685, %v686
        %v717 = vsel %vm701, %v700, %v685
        %v718 = vsel %vm564, %v716, 0.0
        %v719 = vsel %vm565, %v715, 0.0
        %v720 = vsel %vm566, %v714, 0.0
        %v721 = vsel %vm567, %v713, 0.0
        %v722 = vsel %vm568, %v712, 0.0
        %v723 = vsel %vm569, %v711, 0.0
        %v724 = vsel %vm570, %v710, 0.0
        %v725 = vsel %vm571, %v709, 0.0
        %v726 = vsel %vm572, %v708, 0.0
        %v727 = vsel %vm573, %v707, 0.0
        %v728 = vsel %vm574, %v706, 0.0
        %v729 = vsel %vm575, %v705, 0.0
        %v730 = vsel %vm576, %v704, 0.0
        %v731 = vsel %vm577, %v703, 0.0
        %v732 = vsel %vm578, %v702, 0.0
        %v733 = vsel %vm579, %v717, 0.0
        %v734 = vld [vmem:[#allocation7] sm:$0xff]
        %v735 = vld [vmem:[#allocation7 + $0x8] sm:$0xff]
        %v736 = vld [vmem:[#allocation7 + $0x10] sm:$0xff]
        %v737 = vld [vmem:[#allocation7 + $0x18] sm:$0xff]
        %v738 = vld [vmem:[#allocation7 + $0x20] sm:$0xff]
        %v739 = vld [vmem:[#allocation7 + $0x28] sm:$0xff]
        %v740 = vld [vmem:[#allocation7 + $0x30] sm:$0xff]
        %v741 = vld [vmem:[#allocation7 + $0x38] sm:$0xff]
        %v742 = vld [vmem:[#allocation7 + $0x40] sm:$0xff]
        %v743 = vld [vmem:[#allocation7 + $0x48] sm:$0xff]
        %v744 = vld [vmem:[#allocation7 + $0x50] sm:$0xff]
        %v745 = vld [vmem:[#allocation7 + $0x58] sm:$0xff]
        %v746 = vld [vmem:[#allocation7 + $0x60] sm:$0xff]
        %v747 = vld [vmem:[#allocation7 + $0x68] sm:$0xff]
        %v748 = vld [vmem:[#allocation7 + $0x70] sm:$0xff]
        %v749 = vld [vmem:[#allocation7 + $0x78] sm:$0xff]
        %v750 = vld [vmem:[#allocation7 + $0x80] sm:$0xff]
        %v751 = vld [vmem:[#allocation7 + $0x88] sm:$0xff]
        %v752 = vld [vmem:[#allocation7 + $0x90] sm:$0xff]
        %v753 = vld [vmem:[#allocation7 + $0x98] sm:$0xff]
        %v754 = vld [vmem:[#allocation7 + $0xa0] sm:$0xff]
        %v755 = vld [vmem:[#allocation7 + $0xa8] sm:$0xff]
        %v756 = vld [vmem:[#allocation7 + $0xb0] sm:$0xff]
        %v757 = vld [vmem:[#allocation7 + $0xb8] sm:$0xff]
        %v758 = vld [vmem:[#allocation7 + $0xc0] sm:$0xff]
        %v759 = vld [vmem:[#allocation7 + $0xc8] sm:$0xff]
        %v760 = vld [vmem:[#allocation7 + $0xd0] sm:$0xff]
        %v761 = vld [vmem:[#allocation7 + $0xd8] sm:$0xff]
        %v762 = vld [vmem:[#allocation7 + $0xe0] sm:$0xff]
        %v763 = vld [vmem:[#allocation7 + $0xe8] sm:$0xff]
        %v764 = vld [vmem:[#allocation7 + $0xf0] sm:$0xff]
        %v765 = vld [vmem:[#allocation7 + $0xf8] sm:$0xff]
        %v766 = vld [vmem:[#allocation7 + $0x100] sm:$0xff]
        %v767 = vld [vmem:[#allocation7 + $0x108] sm:$0xff]
        %v768 = vld [vmem:[#allocation7 + $0x110] sm:$0xff]
        %v769 = vld [vmem:[#allocation7 + $0x118] sm:$0xff]
        %v770 = vld [vmem:[#allocation7 + $0x120] sm:$0xff]
        %v771 = vld [vmem:[#allocation7 + $0x128] sm:$0xff]
        %v772 = vld [vmem:[#allocation7 + $0x130] sm:$0xff]
        %v773 = vld [vmem:[#allocation7 + $0x138] sm:$0xff]
        %v774 = vld [vmem:[#allocation7 + $0x140] sm:$0xff]
        %v775 = vld [vmem:[#allocation7 + $0x148] sm:$0xff]
        %v776 = vld [vmem:[#allocation7 + $0x150] sm:$0xff]
        %v777 = vld [vmem:[#allocation7 + $0x158] sm:$0xff]
        %v778 = vld [vmem:[#allocation7 + $0x160] sm:$0xff]
        %v779 = vld [vmem:[#allocation7 + $0x168] sm:$0xff]
        %v780 = vld [vmem:[#allocation7 + $0x170] sm:$0xff]
        %v781 = vld [vmem:[#allocation7 + $0x178] sm:$0xff]
        %v782 = vld [vmem:[%s4] sm:$0x1]
        %v784 = vperm.slane %v782, 0
        %786 = vmatpush.msra.mxu0 %v749
        %787 = vmatpush.msra.mxu0 %v748
        %788 = vmatpush.msra.mxu0 %v747
        %789 = vmatpush.msra.mxu0 %v746
        %790 = vmatpush.msra.mxu0 %v745
        %791 = vmatpush.msra.mxu0 %v744
        %792 = vmatpush.msra.mxu0 %v743
        %793 = vmatpush.msra.mxu0 %v742
        %794 = vmatpush.msra.mxu0 %v741
        %795 = vmatpush.msra.mxu0 %v740
        %796 = vmatpush.msra.mxu0 %v739
        %797 = vmatpush.msra.mxu0 %v738
        %798 = vmatpush.msra.mxu0 %v737
        %799 = vmatpush.msra.mxu0 %v736
        %800 = vmatpush.msra.mxu0 %v735
        %801 = vmatpush.msra.mxu0 %v734
        %802 = vmatmul.f32.gmra.mxu0 %v669
        %v803 = vpop.f32.mrf.mxu0
        %v804 = vadd.f32 %v784, %v803
        %805 = vmatmul.f32.gmra.mxu0 %v670
        %v806 = vpop.f32.mrf.mxu0
        %v807 = vadd.f32 %v784, %v806
        %808 = vmatmul.f32.gmra.mxu0 %v671
        %v809 = vpop.f32.mrf.mxu0
        %v810 = vadd.f32 %v784, %v809
        %811 = vmatmul.f32.gmra.mxu0 %v672
        %v812 = vpop.f32.mrf.mxu0
        %v813 = vadd.f32 %v784, %v812
        %814 = vmatmul.f32.gmra.mxu0 %v673
        %v815 = vpop.f32.mrf.mxu0
        %v816 = vadd.f32 %v784, %v815
        %817 = vmatmul.f32.gmra.mxu0 %v674
        %v818 = vpop.f32.mrf.mxu0
        %v819 = vadd.f32 %v784, %v818
        %820 = vmatmul.f32.gmra.mxu0 %v675
        %v821 = vpop.f32.mrf.mxu0
        %v822 = vadd.f32 %v784, %v821
        %823 = vmatmul.f32.gmra.mxu0 %v676
        %v824 = vpop.f32.mrf.mxu0
        %v825 = vadd.f32 %v784, %v824
        %826 = vmatmul.f32.gmra.mxu0 %v677
        %v827 = vpop.f32.mrf.mxu0
        %v828 = vadd.f32 %v784, %v827
        %829 = vmatmul.f32.gmra.mxu0 %v678
        %v830 = vpop.f32.mrf.mxu0
        %v831 = vadd.f32 %v784, %v830
        %832 = vmatmul.f32.gmra.mxu0 %v679
        %v833 = vpop.f32.mrf.mxu0
        %v834 = vadd.f32 %v784, %v833
        %835 = vmatmul.f32.gmra.mxu0 %v680
        %v836 = vpop.f32.mrf.mxu0
        %v837 = vadd.f32 %v784, %v836
        %838 = vmatmul.f32.gmra.mxu0 %v681
        %v839 = vpop.f32.mrf.mxu0
        %v840 = vadd.f32 %v784, %v839
        %841 = vmatmul.f32.gmra.mxu0 %v682
        %v842 = vpop.f32.mrf.mxu0
        %v843 = vadd.f32 %v784, %v842
        %844 = vmatmul.f32.gmra.mxu0 %v683
        %v845 = vpop.f32.mrf.mxu0
        %v846 = vadd.f32 %v784, %v845
        %847 = vmatmul.f32.gmra.mxu0 %v684
        %v848 = vpop.f32.mrf.mxu0
        %v849 = vadd.f32 %v784, %v848
        %850 = vdwg.mxu0
        %851 = vmatpush.msra.mxu0 %v765
        %852 = vmatpush.msra.mxu0 %v764
        %853 = vmatpush.msra.mxu0 %v763
        %854 = vmatpush.msra.mxu0 %v762
        %855 = vmatpush.msra.mxu0 %v761
        %856 = vmatpush.msra.mxu0 %v760
        %857 = vmatpush.msra.mxu0 %v759
        %858 = vmatpush.msra.mxu0 %v758
        %859 = vmatpush.msra.mxu0 %v757
        %860 = vmatpush.msra.mxu0 %v756
        %861 = vmatpush.msra.mxu0 %v755
        %862 = vmatpush.msra.mxu0 %v754
        %863 = vmatpush.msra.mxu0 %v753
        %864 = vmatpush.msra.mxu0 %v752
        %865 = vmatpush.msra.mxu0 %v751
        %866 = vmatpush.msra.mxu0 %v750
        %867 = vmatmul.f32.gmra.mxu0 %v620
        %v868 = vpop.f32.mrf.mxu0
        %v869 = vadd.f32 %v804, %v868
        %870 = vmatmul.f32.gmra.mxu0 %v621
        %v871 = vpop.f32.mrf.mxu0
        %v872 = vadd.f32 %v807, %v871
        %873 = vmatmul.f32.gmra.mxu0 %v622
        %v874 = vpop.f32.mrf.mxu0
        %v875 = vadd.f32 %v810, %v874
        %876 = vmatmul.f32.gmra.mxu0 %v623
        %v877 = vpop.f32.mrf.mxu0
        %v878 = vadd.f32 %v813, %v877
        %879 = vmatmul.f32.gmra.mxu0 %v624
        %v880 = vpop.f32.mrf.mxu0
        %v881 = vadd.f32 %v816, %v880
        %882 = vmatmul.f32.gmra.mxu0 %v625
        %v883 = vpop.f32.mrf.mxu0
        %v884 = vadd.f32 %v819, %v883
        %885 = vmatmul.f32.gmra.mxu0 %v626
        %v886 = vpop.f32.mrf.mxu0
        %v887 = vadd.f32 %v822, %v886
        %888 = vmatmul.f32.gmra.mxu0 %v627
        %v889 = vpop.f32.mrf.mxu0
        %v890 = vadd.f32 %v825, %v889
        %891 = vmatmul.f32.gmra.mxu0 %v628
        %v892 = vpop.f32.mrf.mxu0
        %v893 = vadd.f32 %v828, %v892
        %894 = vmatmul.f32.gmra.mxu0 %v629
        %v895 = vpop.f32.mrf.mxu0
        %v896 = vadd.f32 %v831, %v895
        %897 = vmatmul.f32.gmra.mxu0 %v630
        %v898 = vpop.f32.mrf.mxu0
        %v899 = vadd.f32 %v834, %v898
        %900 = vmatmul.f32.gmra.mxu0 %v631
        %v901 = vpop.f32.mrf.mxu0
        %v902 = vadd.f32 %v837, %v901
        %903 = vmatmul.f32.gmra.mxu0 %v632
        %v904 = vpop.f32.mrf.mxu0
        %v905 = vadd.f32 %v840, %v904
        %906 = vmatmul.f32.gmra.mxu0 %v633
        %v907 = vpop.f32.mrf.mxu0
        %v908 = vadd.f32 %v843, %v907
        %909 = vmatmul.f32.gmra.mxu0 %v634
        %v910 = vpop.f32.mrf.mxu0
        %v911 = vadd.f32 %v846, %v910
        %912 = vmatmul.f32.gmra.mxu0 %v635
        %v913 = vpop.f32.mrf.mxu0
        %v914 = vadd.f32 %v849, %v913
        %915 = vdwg.mxu0
        %916 = vmatpush.msra.mxu0 %v781
        %917 = vmatpush.msra.mxu0 %v780
        %918 = vmatpush.msra.mxu0 %v779
        %919 = vmatpush.msra.mxu0 %v778
        %920 = vmatpush.msra.mxu0 %v777
        %921 = vmatpush.msra.mxu0 %v776
        %922 = vmatpush.msra.mxu0 %v775
        %923 = vmatpush.msra.mxu0 %v774
        %924 = vmatpush.msra.mxu0 %v773
        %925 = vmatpush.msra.mxu0 %v772
        %926 = vmatpush.msra.mxu0 %v771
        %927 = vmatpush.msra.mxu0 %v770
        %928 = vmatpush.msra.mxu0 %v769
        %929 = vmatpush.msra.mxu0 %v768
        %930 = vmatpush.msra.mxu0 %v767
        %931 = vmatpush.msra.mxu0 %v766
        %932 = vmatmul.f32.gmra.mxu0 %v718
        %v933 = vpop.f32.mrf.mxu0
        %v934 = vadd.f32 %v869, %v933
        %935 = vmatmul.f32.gmra.mxu0 %v719
        %v936 = vpop.f32.mrf.mxu0
        %v937 = vadd.f32 %v872, %v936
        %938 = vmatmul.f32.gmra.mxu0 %v720
        %v939 = vpop.f32.mrf.mxu0
        %v940 = vadd.f32 %v875, %v939
        %941 = vmatmul.f32.gmra.mxu0 %v721
        %v942 = vpop.f32.mrf.mxu0
        %v943 = vadd.f32 %v878, %v942
        %944 = vmatmul.f32.gmra.mxu0 %v722
        %v945 = vpop.f32.mrf.mxu0
        %v946 = vadd.f32 %v881, %v945
        %947 = vmatmul.f32.gmra.mxu0 %v723
        %v948 = vpop.f32.mrf.mxu0
        %v949 = vadd.f32 %v884, %v948
        %950 = vmatmul.f32.gmra.mxu0 %v724
        %v951 = vpop.f32.mrf.mxu0
        %v952 = vadd.f32 %v887, %v951
        %953 = vmatmul.f32.gmra.mxu0 %v725
        %v954 = vpop.f32.mrf.mxu0
        %v955 = vadd.f32 %v890, %v954
        %956 = vmatmul.f32.gmra.mxu0 %v726
        %v957 = vpop.f32.mrf.mxu0
        %v958 = vadd.f32 %v893, %v957
        %959 = vmatmul.f32.gmra.mxu0 %v727
        %v960 = vpop.f32.mrf.mxu0
        %v961 = vadd.f32 %v896, %v960
        %962 = vmatmul.f32.gmra.mxu0 %v728
        %v963 = vpop.f32.mrf.mxu0
        %v964 = vadd.f32 %v899, %v963
        %965 = vmatmul.f32.gmra.mxu0 %v729
        %v966 = vpop.f32.mrf.mxu0
        %v967 = vadd.f32 %v902, %v966
        %968 = vmatmul.f32.gmra.mxu0 %v730
        %v969 = vpop.f32.mrf.mxu0
        %v970 = vadd.f32 %v905, %v969
        %971 = vmatmul.f32.gmra.mxu0 %v731
        %v972 = vpop.f32.mrf.mxu0
        %v973 = vadd.f32 %v908, %v972
        %974 = vmatmul.f32.gmra.mxu0 %v732
        %v975 = vpop.f32.mrf.mxu0
        %v976 = vadd.f32 %v911, %v975
        %977 = vmatmul.f32.gmra.mxu0 %v733
        %v978 = vpop.f32.mrf.mxu0
        %v979 = vadd.f32 %v914, %v978
        %980 = vdwg.mxu0
        %v981 = vmax.f32 %v934, 0.0
        %v982 = vmax.f32 %v937, 0.0
        %v983 = vmax.f32 %v940, 0.0
        %v984 = vmax.f32 %v943, 0.0
        %v985 = vmax.f32 %v946, 0.0
        %v986 = vmax.f32 %v949, 0.0
        %v987 = vmax.f32 %v952, 0.0
        %v988 = vmax.f32 %v955, 0.0
        %v989 = vmax.f32 %v958, 0.0
        %v990 = vmax.f32 %v961, 0.0
        %v991 = vmax.f32 %v964, 0.0
        %v992 = vmax.f32 %v967, 0.0
        %v993 = vmax.f32 %v970, 0.0
        %v994 = vmax.f32 %v973, 0.0
        %v995 = vmax.f32 %v976, 0.0
        %v996 = vmax.f32 %v979, 0.0
        %v997 = vrot.slane %v981, 7
        %v998 = vrot.slane %v982, 7
        %v999 = vrot.slane %v983, 7
        %v1000 = vrot.slane %v984, 7
        %v1001 = vrot.slane %v985, 7
        %v1002 = vrot.slane %v986, 7
        %v1003 = vrot.slane %v987, 7
        %v1004 = vrot.slane %v988, 7
        %v1005 = vrot.slane %v989, 7
        %v1006 = vrot.slane %v990, 7
        %v1007 = vrot.slane %v991, 7
        %v1008 = vrot.slane %v992, 7
        %v1009 = vrot.slane %v993, 7
        %v1010 = vrot.slane %v994, 7
        %v1011 = vrot.slane %v995, 7
        %v1012 = vrot.slane %v996, 7
        %v1013 = vsel %vm652, %v1011, %v1012
        %v1014 = vsel %vm652, %v1010, %v1011
        %v1015 = vsel %vm652, %v1009, %v1010
        %v1016 = vsel %vm652, %v1008, %v1009
        %v1017 = vsel %vm652, %v1007, %v1008
        %v1018 = vsel %vm652, %v1006, %v1007
        %v1019 = vsel %vm652, %v1005, %v1006
        %v1020 = vsel %vm652, %v1004, %v1005
        %v1021 = vsel %vm652, %v1003, %v1004
        %v1022 = vsel %vm652, %v1002, %v1003
        %v1023 = vsel %vm652, %v1001, %v1002
        %v1024 = vsel %vm652, %v1000, %v1001
        %v1025 = vsel %vm652, %v999, %v1000
        %v1026 = vsel %vm652, %v998, %v999
        %v1027 = vsel %vm652, %v997, %v998
        %v1028 = vsel %vm652, %v1012, %v997
        %v1029 = vsel %vm548, %v1028, 0.0
        %v1030 = vsel %vm549, %v1027, 0.0
        %v1031 = vsel %vm550, %v1026, 0.0
        %v1032 = vsel %vm551, %v1025, 0.0
        %v1033 = vsel %vm552, %v1024, 0.0
        %v1034 = vsel %vm553, %v1023, 0.0
        %v1035 = vsel %vm554, %v1022, 0.0
        %v1036 = vsel %vm555, %v1021, 0.0
        %v1037 = vsel %vm556, %v1020, 0.0
        %v1038 = vsel %vm557, %v1019, 0.0
        %v1039 = vsel %vm558, %v1018, 0.0
        %v1040 = vsel %vm559, %v1017, 0.0
        %v1041 = vsel %vm560, %v1016, 0.0
        %v1042 = vsel %vm561, %v1015, 0.0
        %v1043 = vsel %vm562, %v1014, 0.0
        %v1044 = vsel %vm563, %v1013, 0.0
        %v1045 = vrot.slane %v981, 1
        %v1046 = vrot.slane %v982, 1
        %v1047 = vrot.slane %v983, 1
        %v1048 = vrot.slane %v984, 1
        %v1049 = vrot.slane %v985, 1
        %v1050 = vrot.slane %v986, 1
        %v1051 = vrot.slane %v987, 1
        %v1052 = vrot.slane %v988, 1
        %v1053 = vrot.slane %v989, 1
        %v1054 = vrot.slane %v990, 1
        %v1055 = vrot.slane %v991, 1
        %v1056 = vrot.slane %v992, 1
        %v1057 = vrot.slane %v993, 1
        %v1058 = vrot.slane %v994, 1
        %v1059 = vrot.slane %v995, 1
        %v1060 = vrot.slane %v996, 1
        %v1061 = vsel %vm701, %v1059, %v1060
        %v1062 = vsel %vm701, %v1058, %v1059
        %v1063 = vsel %vm701, %v1057, %v1058
        %v1064 = vsel %vm701, %v1056, %v1057
        %v1065 = vsel %vm701, %v1055, %v1056
        %v1066 = vsel %vm701, %v1054, %v1055
        %v1067 = vsel %vm701, %v1053, %v1054
        %v1068 = vsel %vm701, %v1052, %v1053
        %v1069 = vsel %vm701, %v1051, %v1052
        %v1070 = vsel %vm701, %v1050, %v1051
        %v1071 = vsel %vm701, %v1049, %v1050
        %v1072 = vsel %vm701, %v1048, %v1049
        %v1073 = vsel %vm701, %v1047, %v1048
        %v1074 = vsel %vm701, %v1046, %v1047
        %v1075 = vsel %vm701, %v1045, %v1046
        %v1076 = vsel %vm701, %v1060, %v1045
        %v1077 = vsel %vm564, %v1075, 0.0
        %v1078 = vsel %vm565, %v1074, 0.0
        %v1079 = vsel %vm566, %v1073, 0.0
        %v1080 = vsel %vm567, %v1072, 0.0
        %v1081 = vsel %vm568, %v1071, 0.0
        %v1082 = vsel %vm569, %v1070, 0.0
        %v1083 = vsel %vm570, %v1069, 0.0
        %v1084 = vsel %vm571, %v1068, 0.0
        %v1085 = vsel %vm572, %v1067, 0.0
        %v1086 = vsel %vm573, %v1066, 0.0
        %v1087 = vsel %vm574, %v1065, 0.0
        %v1088 = vsel %vm575, %v1064, 0.0
        %v1089 = vsel %vm576, %v1063, 0.0
        %v1090 = vsel %vm577, %v1062, 0.0
        %v1091 = vsel %vm578, %v1061, 0.0
        %v1092 = vsel %vm579, %v1076, 0.0
        %v1093 = vld [vmem:[#allocation8] sm:$0xff]
        %v1094 = vld [vmem:[#allocation8 + $0x8] sm:$0xff]
        %v1095 = vld [vmem:[#allocation8 + $0x10] sm:$0xff]
        %v1096 = vld [vmem:[#allocation8 + $0x18] sm:$0xff]
        %v1097 = vld [vmem:[#allocation8 + $0x20] sm:$0xff]
        %v1098 = vld [vmem:[#allocation8 + $0x28] sm:$0xff]
        %v1099 = vld [vmem:[#allocation8 + $0x30] sm:$0xff]
        %v1100 = vld [vmem:[#allocation8 + $0x38] sm:$0xff]
        %v1101 = vld [vmem:[#allocation8 + $0x40] sm:$0xff]
        %v1102 = vld [vmem:[#allocation8 + $0x48] sm:$0xff]
        %v1103 = vld [vmem:[#allocation8 + $0x50] sm:$0xff]
        %v1104 = vld [vmem:[#allocation8 + $0x58] sm:$0xff]
        %v1105 = vld [vmem:[#allocation8 + $0x60] sm:$0xff]
        %v1106 = vld [vmem:[#allocation8 + $0x68] sm:$0xff]
        %v1107 = vld [vmem:[#allocation8 + $0x70] sm:$0xff]
        %v1108 = vld [vmem:[#allocation8 + $0x78] sm:$0xff]
        %v1109 = vld [vmem:[#allocation8 + $0x80] sm:$0xff]
        %v1110 = vld [vmem:[#allocation8 + $0x88] sm:$0xff]
        %v1111 = vld [vmem:[#allocation8 + $0x90] sm:$0xff]
        %v1112 = vld [vmem:[#allocation8 + $0x98] sm:$0xff]
        %v1113 = vld [vmem:[#allocation8 + $0xa0] sm:$0xff]
        %v1114 = vld [vmem:[#allocation8 + $0xa8] sm:$0xff]
        %v1115 = vld [vmem:[#allocation8 + $0xb0] sm:$0xff]
        %v1116 = vld [vmem:[#allocation8 + $0xb8] sm:$0xff]
        %v1117 = vld [vmem:[#allocation8 + $0xc0] sm:$0xff]
        %v1118 = vld [vmem:[#allocation8 + $0xc8] sm:$0xff]
        %v1119 = vld [vmem:[#allocation8 + $0xd0] sm:$0xff]
        %v1120 = vld [vmem:[#allocation8 + $0xd8] sm:$0xff]
        %v1121 = vld [vmem:[#allocation8 + $0xe0] sm:$0xff]
        %v1122 = vld [vmem:[#allocation8 + $0xe8] sm:$0xff]
        %v1123 = vld [vmem:[#allocation8 + $0xf0] sm:$0xff]
        %v1124 = vld [vmem:[#allocation8 + $0xf8] sm:$0xff]
        %v1125 = vld [vmem:[#allocation8 + $0x100] sm:$0xff]
        %v1126 = vld [vmem:[#allocation8 + $0x108] sm:$0xff]
        %v1127 = vld [vmem:[#allocation8 + $0x110] sm:$0xff]
        %v1128 = vld [vmem:[#allocation8 + $0x118] sm:$0xff]
        %v1129 = vld [vmem:[#allocation8 + $0x120] sm:$0xff]
        %v1130 = vld [vmem:[#allocation8 + $0x128] sm:$0xff]
        %v1131 = vld [vmem:[#allocation8 + $0x130] sm:$0xff]
        %v1132 = vld [vmem:[#allocation8 + $0x138] sm:$0xff]
        %v1133 = vld [vmem:[#allocation8 + $0x140] sm:$0xff]
        %v1134 = vld [vmem:[#allocation8 + $0x148] sm:$0xff]
        %v1135 = vld [vmem:[#allocation8 + $0x150] sm:$0xff]
        %v1136 = vld [vmem:[#allocation8 + $0x158] sm:$0xff]
        %v1137 = vld [vmem:[#allocation8 + $0x160] sm:$0xff]
        %v1138 = vld [vmem:[#allocation8 + $0x168] sm:$0xff]
        %v1139 = vld [vmem:[#allocation8 + $0x170] sm:$0xff]
        %v1140 = vld [vmem:[#allocation8 + $0x178] sm:$0xff]
        %1141 = vmatpush.msra.mxu0 %v1108
        %1142 = vmatpush.msra.mxu0 %v1107
        %1143 = vmatpush.msra.mxu0 %v1106
        %1144 = vmatpush.msra.mxu0 %v1105
        %1145 = vmatpush.msra.mxu0 %v1104
        %1146 = vmatpush.msra.mxu0 %v1103
        %1147 = vmatpush.msra.mxu0 %v1102
        %1148 = vmatpush.msra.mxu0 %v1101
        %1149 = vmatpush.msra.mxu0 %v1100
        %1150 = vmatpush.msra.mxu0 %v1099
        %1151 = vmatpush.msra.mxu0 %v1098
        %1152 = vmatpush.msra.mxu0 %v1097
        %1153 = vmatpush.msra.mxu0 %v1096
        %1154 = vmatpush.msra.mxu0 %v1095
        %1155 = vmatpush.msra.mxu0 %v1094
        %1156 = vmatpush.msra.mxu0 %v1093
        %1157 = vmatmul.f32.gmra.mxu0 %v1029
        %v1158 = vpop.f32.mrf.mxu0
        %v1159 = vadd.f32 0.0, %v1158
        %1160 = vmatmul.f32.gmra.mxu0 %v1030
        %v1161 = vpop.f32.mrf.mxu0
        %v1162 = vadd.f32 0.0, %v1161
        %1163 = vmatmul.f32.gmra.mxu0 %v1031
        %v1164 = vpop.f32.mrf.mxu0
        %v1165 = vadd.f32 0.0, %v1164
        %1166 = vmatmul.f32.gmra.mxu0 %v1032
        %v1167 = vpop.f32.mrf.mxu0
        %v1168 = vadd.f32 0.0, %v1167
        %1169 = vmatmul.f32.gmra.mxu0 %v1033
        %v1170 = vpop.f32.mrf.mxu0
        %v1171 = vadd.f32 0.0, %v1170
        %1172 = vmatmul.f32.gmra.mxu0 %v1034
        %v1173 = vpop.f32.mrf.mxu0
        %v1174 = vadd.f32 0.0, %v1173
        %1175 = vmatmul.f32.gmra.mxu0 %v1035
        %v1176 = vpop.f32.mrf.mxu0
        %v1177 = vadd.f32 0.0, %v1176
        %1178 = vmatmul.f32.gmra.mxu0 %v1036
        %v1179 = vpop.f32.mrf.mxu0
        %v1180 = vadd.f32 0.0, %v1179
        %1181 = vmatmul.f32.gmra.mxu0 %v1037
        %v1182 = vpop.f32.mrf.mxu0
        %v1183 = vadd.f32 0.0, %v1182
        %1184 = vmatmul.f32.gmra.mxu0 %v1038
        %v1185 = vpop.f32.mrf.mxu0
        %v1186 = vadd.f32 0.0, %v1185
        %1187 = vmatmul.f32.gmra.mxu0 %v1039
        %v1188 = vpop.f32.mrf.mxu0
        %v1189 = vadd.f32 0.0, %v1188
        %1190 = vmatmul.f32.gmra.mxu0 %v1040
        %v1191 = vpop.f32.mrf.mxu0
        %v1192 = vadd.f32 0.0, %v1191
        %1193 = vmatmul.f32.gmra.mxu0 %v1041
        %v1194 = vpop.f32.mrf.mxu0
        %v1195 = vadd.f32 0.0, %v1194
        %1196 = vmatmul.f32.gmra.mxu0 %v1042
        %v1197 = vpop.f32.mrf.mxu0
        %v1198 = vadd.f32 0.0, %v1197
        %1199 = vmatmul.f32.gmra.mxu0 %v1043
        %v1200 = vpop.f32.mrf.mxu0
        %v1201 = vadd.f32 0.0, %v1200
        %1202 = vmatmul.f32.gmra.mxu0 %v1044
        %v1203 = vpop.f32.mrf.mxu0
        %v1204 = vadd.f32 0.0, %v1203
        %1205 = vdwg.mxu0
        %1206 = vmatpush.msra.mxu0 %v1124
        %1207 = vmatpush.msra.mxu0 %v1123
        %1208 = vmatpush.msra.mxu0 %v1122
        %1209 = vmatpush.msra.mxu0 %v1121
        %1210 = vmatpush.msra.mxu0 %v1120
        %1211 = vmatpush.msra.mxu0 %v1119
        %1212 = vmatpush.msra.mxu0 %v1118
        %1213 = vmatpush.msra.mxu0 %v1117
        %1214 = vmatpush.msra.mxu0 %v1116
        %1215 = vmatpush.msra.mxu0 %v1115
        %1216 = vmatpush.msra.mxu0 %v1114
        %1217 = vmatpush.msra.mxu0 %v1113
        %1218 = vmatpush.msra.mxu0 %v1112
        %1219 = vmatpush.msra.mxu0 %v1111
        %1220 = vmatpush.msra.mxu0 %v1110
        %1221 = vmatpush.msra.mxu0 %v1109
        %1222 = vmatmul.f32.gmra.mxu0 %v981
        %v1223 = vpop.f32.mrf.mxu0
        %v1224 = vadd.f32 %v1159, %v1223
        %1225 = vmatmul.f32.gmra.mxu0 %v982
        %v1226 = vpop.f32.mrf.mxu0
        %v1227 = vadd.f32 %v1162, %v1226
        %1228 = vmatmul.f32.gmra.mxu0 %v983
        %v1229 = vpop.f32.mrf.mxu0
        %v1230 = vadd.f32 %v1165, %v1229
        %1231 = vmatmul.f32.gmra.mxu0 %v984
        %v1232 = vpop.f32.mrf.mxu0
        %v1233 = vadd.f32 %v1168, %v1232
        %1234 = vmatmul.f32.gmra.mxu0 %v985
        %v1235 = vpop.f32.mrf.mxu0
        %v1236 = vadd.f32 %v1171, %v1235
        %1237 = vmatmul.f32.gmra.mxu0 %v986
        %v1238 = vpop.f32.mrf.mxu0
        %v1239 = vadd.f32 %v1174, %v1238
        %1240 = vmatmul.f32.gmra.mxu0 %v987
        %v1241 = vpop.f32.mrf.mxu0
        %v1242 = vadd.f32 %v1177, %v1241
        %1243 = vmatmul.f32.gmra.mxu0 %v988
        %v1244 = vpop.f32.mrf.mxu0
        %v1245 = vadd.f32 %v1180, %v1244
        %1246 = vmatmul.f32.gmra.mxu0 %v989
        %v1247 = vpop.f32.mrf.mxu0
        %v1248 = vadd.f32 %v1183, %v1247
        %1249 = vmatmul.f32.gmra.mxu0 %v990
        %v1250 = vpop.f32.mrf.mxu0
        %v1251 = vadd.f32 %v1186, %v1250
        %1252 = vmatmul.f32.gmra.mxu0 %v991
        %v1253 = vpop.f32.mrf.mxu0
        %v1254 = vadd.f32 %v1189, %v1253
        %1255 = vmatmul.f32.gmra.mxu0 %v992
        %v1256 = vpop.f32.mrf.mxu0
        %v1257 = vadd.f32 %v1192, %v1256
        %1258 = vmatmul.f32.gmra.mxu0 %v993
        %v1259 = vpop.f32.mrf.mxu0
        %v1260 = vadd.f32 %v1195, %v1259
        %1261 = vmatmul.f32.gmra.mxu0 %v994
        %v1262 = vpop.f32.mrf.mxu0
        %v1263 = vadd.f32 %v1198, %v1262
        %1264 = vmatmul.f32.gmra.mxu0 %v995
        %v1265 = vpop.f32.mrf.mxu0
        %v1266 = vadd.f32 %v1201, %v1265
        %1267 = vmatmul.f32.gmra.mxu0 %v996
        %v1268 = vpop.f32.mrf.mxu0
        %v1269 = vadd.f32 %v1204, %v1268
        %1270 = vdwg.mxu0
        %1271 = vmatpush.msra.mxu0 %v1140
        %1272 = vmatpush.msra.mxu0 %v1139
        %1273 = vmatpush.msra.mxu0 %v1138
        %1274 = vmatpush.msra.mxu0 %v1137
        %1275 = vmatpush.msra.mxu0 %v1136
        %1276 = vmatpush.msra.mxu0 %v1135
        %1277 = vmatpush.msra.mxu0 %v1134
        %1278 = vmatpush.msra.mxu0 %v1133
        %1279 = vmatpush.msra.mxu0 %v1132
        %1280 = vmatpush.msra.mxu0 %v1131
        %1281 = vmatpush.msra.mxu0 %v1130
        %1282 = vmatpush.msra.mxu0 %v1129
        %1283 = vmatpush.msra.mxu0 %v1128
        %1284 = vmatpush.msra.mxu0 %v1127
        %1285 = vmatpush.msra.mxu0 %v1126
        %1286 = vmatpush.msra.mxu0 %v1125
        %1287 = vmatmul.f32.gmra.mxu0 %v1077
        %v1288 = vpop.f32.mrf.mxu0
        %v1289 = vadd.f32 %v1224, %v1288
        %1290 = vmatmul.f32.gmra.mxu0 %v1078
        %v1291 = vpop.f32.mrf.mxu0
        %v1292 = vadd.f32 %v1227, %v1291
        %1293 = vmatmul.f32.gmra.mxu0 %v1079
        %v1294 = vpop.f32.mrf.mxu0
        %v1295 = vadd.f32 %v1230, %v1294
        %1296 = vmatmul.f32.gmra.mxu0 %v1080
        %v1297 = vpop.f32.mrf.mxu0
        %v1298 = vadd.f32 %v1233, %v1297
        %1299 = vmatmul.f32.gmra.mxu0 %v1081
        %v1300 = vpop.f32.mrf.mxu0
        %v1301 = vadd.f32 %v1236, %v1300
        %1302 = vmatmul.f32.gmra.mxu0 %v1082
        %v1303 = vpop.f32.mrf.mxu0
        %v1304 = vadd.f32 %v1239, %v1303
        %1305 = vmatmul.f32.gmra.mxu0 %v1083
        %v1306 = vpop.f32.mrf.mxu0
        %v1307 = vadd.f32 %v1242, %v1306
        %1308 = vmatmul.f32.gmra.mxu0 %v1084
        %v1309 = vpop.f32.mrf.mxu0
        %v1310 = vadd.f32 %v1245, %v1309
        %1311 = vmatmul.f32.gmra.mxu0 %v1085
        %v1312 = vpop.f32.mrf.mxu0
        %v1313 = vadd.f32 %v1248, %v1312
        %1314 = vmatmul.f32.gmra.mxu0 %v1086
        %v1315 = vpop.f32.mrf.mxu0
        %v1316 = vadd.f32 %v1251, %v1315
        %1317 = vmatmul.f32.gmra.mxu0 %v1087
        %v1318 = vpop.f32.mrf.mxu0
        %v1319 = vadd.f32 %v1254, %v1318
        %1320 = vmatmul.f32.gmra.mxu0 %v1088
        %v1321 = vpop.f32.mrf.mxu0
        %v1322 = vadd.f32 %v1257, %v1321
        %1323 = vmatmul.f32.gmra.mxu0 %v1089
        %v1324 = vpop.f32.mrf.mxu0
        %v1325 = vadd.f32 %v1260, %v1324
        %1326 = vmatmul.f32.gmra.mxu0 %v1090
        %v1327 = vpop.f32.mrf.mxu0
        %v1328 = vadd.f32 %v1263, %v1327
        %1329 = vmatmul.f32.gmra.mxu0 %v1091
        %v1330 = vpop.f32.mrf.mxu0
        %v1331 = vadd.f32 %v1266, %v1330
        %1332 = vmatmul.f32.gmra.mxu0 %v1092
        %v1333 = vpop.f32.mrf.mxu0
        %v1334 = vadd.f32 %v1269, %v1333
        %1335 = vdwg.mxu0
        %v1336 = vadd.f32 %v323, %v1289
        %v1337 = vadd.f32 %v324, %v1292
        %v1338 = vadd.f32 %v325, %v1295
        %v1339 = vadd.f32 %v326, %v1298
        %v1340 = vadd.f32 %v327, %v1301
        %v1341 = vadd.f32 %v328, %v1304
        %v1342 = vadd.f32 %v329, %v1307
        %v1343 = vadd.f32 %v330, %v1310
        %v1344 = vadd.f32 %v331, %v1313
        %v1345 = vadd.f32 %v332, %v1316
        %v1346 = vadd.f32 %v333, %v1319
        %v1347 = vadd.f32 %v334, %v1322
        %v1348 = vadd.f32 %v335, %v1325
        %v1349 = vadd.f32 %v336, %v1328
        %v1350 = vadd.f32 %v337, %v1331
        %v1351 = vadd.f32 %v338, %v1334
        %1352 = vst [vmem:[%s320] sm:$0xff] %v1336
        %1353 = vst [vmem:[%s320 + $0x8] sm:$0xff] %v1337
        %1354 = vst [vmem:[%s320 + $0x10] sm:$0xff] %v1338
        %1355 = vst [vmem:[%s320 + $0x18] sm:$0xff] %v1339
        %1356 = vst [vmem:[%s320 + $0x20] sm:$0xff] %v1340
        %1357 = vst [vmem:[%s320 + $0x28] sm:$0xff] %v1341
        %1358 = vst [vmem:[%s320 + $0x30] sm:$0xff] %v1342
        %1359 = vst [vmem:[%s320 + $0x38] sm:$0xff] %v1343
        %1360 = vst [vmem:[%s320 + $0x40] sm:$0xff] %v1344
        %1361 = vst [vmem:[%s320 + $0x48] sm:$0xff] %v1345
        %1362 = vst [vmem:[%s320 + $0x50] sm:$0xff] %v1346
        %1363 = vst [vmem:[%s320 + $0x58] sm:$0xff] %v1347
        %1364 = vst [vmem:[%s320 + $0x60] sm:$0xff] %v1348
        %1365 = vst [vmem:[%s320 + $0x68] sm:$0xff] %v1349
        %1366 = vst [vmem:[%s320 + $0x70] sm:$0xff] %v1350
        %1367 = vst [vmem:[%s320 + $0x78] sm:$0xff] %v1351
        %s1368 = sand.u32 %s164, 1
        %s1369 = scalar_lea.sflag [#allocation4], %s1368
        %s1370 = sand.u32 %s164, 1
        %s1371 = smul.addr %s1370, 128
        %s1372 = scalar_lea.vmem [#allocation10], %s1371
        // Predicated region
        $region61: #{tpu_custom_call.1} parent=43 // pred_check
          %p1373 = pneg %p174
        $region62: #{tpu_custom_call.1} parent=43 // pred_check_branch
          %1375 = sbr.rel (%p1373) target = $region64
        $region63: #{tpu_custom_call.1} parent=43 // pred_region
          %s1376 = smul.u32 8, %s25
          %1378 = vsyncadd %s1369, 0
          %s1379 = smul.addr %s1376, 2
          %s1380 = smul.addr %s1379, 8
          %s1381 = scalar_lea.hbm %s6, %s1380
          %s1382 = sshll.u32 %s1372, 4
          %s1383 = int_to_ptr.vmem [resolvable:$true] %s1382
          %s1384 = sshll.u32 %s1381, 4
          %s1385 = int_to_ptr.hbm [resolvable:$true] %s1384
          %1390 = dma.vmem_to_hbm [thread:$0]  %s1383, 2048, %s1385, %s1369, 128, 128, 8
        $region64: #{tpu_custom_call.1} parent=43 // pred_fallthru
          _
      $region44: #{tpu_custom_call.1} parent=5 // pred_fallthru
        _
      %p1391 = scmp.le.s32.totalorder 2, %s20
      // Predicated region
      $region65: #{tpu_custom_call.1} parent=5 // pred_check
        %p1392 = pneg %p1391
      $region66: #{tpu_custom_call.1} parent=5 // pred_check_branch
        %1394 = sbr.rel (%p1392) target = $region68
      $region67: #{tpu_custom_call.1} parent=5 // pred_region
        %s1395 = ssub.s32 %s20, 2
        // Predicated region
        $region69: #{tpu_custom_call.1} parent=67 // pred_check
          %p1396 = pneg %p180
        $region70: #{tpu_custom_call.1} parent=67 // pred_check_branch
          %1398 = sbr.rel (%p1396) target = $region72
        $region71: #{tpu_custom_call.1} parent=67 // pred_region
          %s1399 = sand.u32 %s165, 1
          %s1400 = scalar_lea.sflag [#allocation4], %s1399
          %s1401 = sand.u32 %s165, 1
          %s1402 = smul.addr %s1401, 128
          %s1403 = scalar_lea.vmem [#allocation10], %s1402
          %1405 = dma.done %s1400, 2048
        $region72: #{tpu_custom_call.1} parent=67 // pred_fallthru
          _
      $region68: #{tpu_custom_call.1} parent=5 // pred_fallthru
        _
    $region6: #{tpu_custom_call.1} parent=1 // loop_footer
      %s24 = sadd.s32 1, %s20
    $region7: #{tpu_custom_call.1} parent=1 // loop_footer_branch
      %19 = sbr.rel target = $region3
    $region8: #{tpu_custom_call.1} parent=1 // loop_exit
      _
    %1406 = vsyncpa [#allocation3], 1
    %s1407 = scalar_lea.sflag [#allocation3], 1
    %1408 = vsyncpa %s1407, 1
    %1409 = vsyncpa [#allocation6], 1
    %1410 = vsyncpa [#allocation9], 1
    %1411 = vsyncpa [#allocation4], 1
    %s1412 = scalar_lea.sflag [#allocation4], 1
    %1413 = vsyncpa %s1412, 1

</llo_original>
